<compile_context>
chip_gen: v5e
topology: v5e:2x2
jax: 0.10.0
libtpu: 0.0.40
codegen_flags: <defaults>
</compile_context>

<pallas_src>
import jax
import jax.numpy as jnp
from jax.experimental import pallas as pl
from jax.experimental.pallas import tpu as pltpu


def _vmem_capacity_bytes():
    try:
        info = pltpu.get_tpu_info()
        return int(getattr(info, "vmem_capacity_bytes", 64 << 20))
    except Exception:
        return 64 << 20          # conservative default (v7x per-TensorCore VMEM)


def _plan_spatial_tile(hw, batch, D, PK, prob_itemsize):
    """Pick spatial tile tn (lane dim), padded extent, grid steps, vmem limit."""
    phys = _vmem_capacity_bytes()
    budget = int(phys * 0.70)                       # headroom for compiler scratch

    def step_bytes(tn):
        # double-buffered per-step I/O blocks (z, q, prob, sqerr)
        io = 2 * (2 * 4 * D * tn + prob_itemsize * tn * PK + 4 * 128)
        # in-kernel (tn, PK)-shaped temporaries: neg, e, prob, one_hot, iota, ...
        scratch = 6 * 4 * tn * PK + 4 * 4 * D * tn
        # resident constants (wbd, gbd, csq), counted double-buffered
        resident = 2 * 4 * (2 * D * PK + PK)
        return io + scratch + resident

    cap = 128
    t = 256
    while t <= 4096 and step_bytes(t) <= budget:    # generation-aware tile cap
        cap = t
        t += 128

    tn = 0
    for t in range(cap, 0, -128):                   # largest lane-aligned divisor
        if hw % t == 0:
            tn = t
            break
    if tn == 0:
        if hw <= cap:
            tn, hw_pad = hw, hw                     # full-extent block: always legal
        else:
            tn = cap                                # pad + mask the spatial tail
            hw_pad = -(-hw // tn) * tn
    else:
        hw_pad = hw

    # v7x megacore: try to give the "parallel" grid >= 2 steps.
    if batch * (hw_pad // tn) < 2 and tn >= 256 and tn % 256 == 0:
        tn //= 2

    n_sp = hw_pad // tn
    vmem_limit = min(int(phys * 0.85),
                     max(32 << 20, step_bytes(tn) + (8 << 20)))
    return tn, hw_pad, n_sp, vmem_limit


def product_vq_forward(z, codebooks, beta=0.25, prob_dtype=jnp.float32):
    """ProductQuantizerWrapper.forward (eval mode).

    z:         (B, D, H, W) float32, D = num_pq * pq_dim
    codebooks: (num_pq, K, pq_dim) float32 -- the raw `embeddings` buffers
    prob_dtype: set jnp.bfloat16 to halve the dominant distance_prob HBM write
                when the caller tolerates bf16 probabilities.
    Returns (q, outputs, distance_prob) matching the PyTorch module.
    """
    B, D, H, W = z.shape
    P, K, d = codebooks.shape
    if D != P * d:
        raise ValueError(f"Embed dim {D} should be num_pq*pq_dim = {P}*{d}.")
    HW = H * W
    N = B * HW
    if N < K:
        raise ValueError("reference gathers z_norm[:K]; needs B*H*W >= num_codebook")
    PK = P * K
    f32 = jnp.float32

    z3 = z.reshape(B, D, HW)          # channels-major view; no HBM transpose

    # ---- one-time precompute (resident constants, ~100 KiB) -----------------
    cb = codebooks.astype(f32)
    cb_n = cb / jnp.maximum(jnp.linalg.norm(cb, axis=-1, keepdims=True), 1e-12)
    eye_p = jnp.eye(P, dtype=f32)
    cbt = jnp.transpose(cb_n, (0, 2, 1))                              # (P, d, K)
    # block-diagonal 2*codebook_norm -> one fused MXU contraction per tile
    wbd = jnp.einsum('pdk,pq->pdqk', 2.0 * cbt, eye_p).reshape(D, PK)
    csq = jnp.sum(cb_n * cb_n, axis=-1).reshape(1, PK)                # (1, P*K)

    # Gather table for F.embedding(idx, z_norm): the first K flattened tokens,
    # normalized PER pq chunk (d channels), faithful to each sub-quantizer.
    nb = -(-K // HW)
    head = jnp.transpose(z3[:nb], (0, 2, 1)).reshape(nb * HW, D)[:K]  # (K, D)
    head_c = head.reshape(K, P, d).astype(f32)
    head_n = head_c / jnp.maximum(
        jnp.linalg.norm(head_c, axis=-1, keepdims=True), 1e-12)
    gsrct = jnp.transpose(head_n, (1, 2, 0))                          # (P, d, K)
    gbd = jnp.einsum('pdk,pq->pdqk', gsrct, eye_p).reshape(D, PK)

    # ---- tiling / VMEM plan --------------------------------------------------
    prob_itemsize = jnp.dtype(prob_dtype).itemsize
    tn, hw_pad, n_sp, vmem_limit = _plan_spatial_tile(HW, B, D, PK, prob_itemsize)
    needs_mask = hw_pad != HW
    if needs_mask:
        z3 = jnp.pad(z3, ((0, 0), (0, 0), (0, hw_pad - HW)))

    def kernel(z_ref, wbd_ref, csq_ref, gbd_ref, q_ref, prob_ref, sqe_ref, zn_ref):
        # --- per-chunk F.normalize(dim=1) over the d channels (static unroll) ---
        for p in range(P):
            zc = z_ref[0, p * d:(p + 1) * d, :]                   # (d, tn)
            ssq = jnp.sum(zc * zc, axis=0, keepdims=True)         # (1, tn)
            # x * rsqrt(max(|x|^2, eps^2)) == x / max(|x|, eps), eps = 1e-12 (EUP)
            zn_ref[p * d:(p + 1) * d, :] = zc * jax.lax.rsqrt(
                jnp.maximum(ssq, 1e-24))
        zn = zn_ref[...]                                          # (D, tn)

        # --- ONE fused block-diagonal distance matmul ---------------------------
        # neg[t, p*K+k] = 2<zn_p[:,t], cb_n[p,k]> - |cb_n[p,k]|^2
        #              = -distance + |zn_p[:,t]|^2 (row-constant: same argmin/softmax)
        neg = jax.lax.dot_general(
            zn, wbd_ref[...], (((0,), (0,)), ((), ())),
            preferred_element_type=jnp.float32) - csq_ref[...]     # (tn, P*K)

        iota_k = jax.lax.broadcasted_iota(jnp.int32, (tn, K), 1)
        prob_parts = []
        onehot_parts = []
        for p in range(P):            # static unroll; 128-lane-aligned slices
            neg_p = neg[:, p * K:(p + 1) * K]
            m = jnp.max(neg_p, axis=1, keepdims=True)             # shared by both
            e = jnp.exp(neg_p - m)
            denom = jnp.sum(e, axis=1, keepdims=True)
            prob_parts.append(e * pl.reciprocal(denom, approx=True))
            # first-occurrence argmin (torch.argmin tie-break), reusing the row max
            idx = jnp.min(jnp.where(neg_p == m, iota_k, K), axis=1, keepdims=True)
            onehot_parts.append((iota_k == idx).astype(jnp.float32))

        # single lane-dense slab store of the concatenated probabilities
        prob_ref[0] = jnp.concatenate(prob_parts, axis=1).astype(prob_ref.dtype)

        # --- ONE fused block-diagonal gather matmul -----------------------------
        one_hot = jnp.concatenate(onehot_parts, axis=1)           # (tn, P*K)
        zq = jax.lax.dot_general(
            gbd_ref[...], one_hot, (((1,), (1,)), ((), ())),
            preferred_element_type=jnp.float32)                   # (D, tn)
        q_ref[0] = zq

        # --- one squared-error reduction per tile -------------------------------
        diff = zq - zn
        if needs_mask:                 # only for the padded spatial tail
            s = (pl.program_id(1) * tn
                 + jax.lax.broadcasted_iota(jnp.int32, (1, tn), 1))
            diff = jnp.where(s < HW, diff, 0.0)
        sqe_ref[...] = jnp.sum(diff * diff) + jnp.zeros(sqe_ref.shape, jnp.float32)

    grid = (B, n_sp)
    q3, prob3, sq_part = pl.pallas_call(
        kernel,
        out_shape=(
            jax.ShapeDtypeStruct((B, D, hw_pad), f32),             # q (channels-major)
            jax.ShapeDtypeStruct((B, hw_pad, PK), prob_dtype),     # distance_prob
            jax.ShapeDtypeStruct((B * n_sp, 1, 128), f32),         # sq-error partials
        ),
        grid_spec=pltpu.PrefetchScalarGridSpec(
            num_scalar_prefetch=0,
            grid=grid,
            in_specs=[
                pl.BlockSpec((1, D, tn), lambda b, j: (b, 0, j)),
                pl.BlockSpec((D, PK), lambda b, j: (0, 0)),
                pl.BlockSpec((1, PK), lambda b, j: (0, 0)),
                pl.BlockSpec((D, PK), lambda b, j: (0, 0)),
            ],
            out_specs=[
                pl.BlockSpec((1, D, tn), lambda b, j: (b, 0, j)),
                pl.BlockSpec((1, tn, PK), lambda b, j: (b, j, 0)),
                pl.BlockSpec((1, 1, 128), lambda b, j: (b * n_sp + j, 0, 0)),
            ],
            scratch_shapes=[pltpu.VMEM((D, tn), jnp.float32)],     # normalized z block
        ),
        compiler_params=pltpu.CompilerParams(
            dimension_semantics=("parallel", "parallel"),
            vmem_limit_bytes=int(vmem_limit)),
    )(z3, wbd, csq, gbd)

    # ---- losses / stats (averaged over the P sub-quantizers) -----------------
    total_sqerr = jnp.sum(sq_part[:, 0, 0])
    commitment = total_sqerr / (N * D)          # mean_p F.mse_loss == total/(N*D)
    outputs = {
        'commitment-loss': commitment,
        'loss': beta * commitment,
        'codebook-sum': jnp.sum(jnp.abs(codebooks)) / P,
    }
    # TODO(synk): training-mode EMA codebook update / _init_embeddings /
    # all_reduce are buffer mutations outside the eval forward; not implemented.

    if needs_mask:
        q = q3[:, :, :HW].reshape(B, D, H, W)
        distance_prob = prob3[:, :HW, :].reshape(N, PK)
    else:
        q = q3.reshape(B, D, H, W)              # free reshape, no transpose
        distance_prob = prob3.reshape(N, PK)    # free reshape, already concatenated
    return q, outputs, distance_prob


def _reference(z, codebooks):
    """Pure-JAX replica of ProductQuantizerWrapper.forward (eval mode)."""
    B, D, H, W = z.shape
    P, K, d = codebooks.shape
    qs, probs = [], []
    commit = 0.0
    for p in range(P):
        zp = jnp.transpose(z[:, p * d:(p + 1) * d], (0, 2, 3, 1)).reshape(-1, d)
        zn = zp / jnp.maximum(jnp.linalg.norm(zp, axis=1, keepdims=True), 1e-12)
        cbn = codebooks[p] / jnp.maximum(
            jnp.linalg.norm(codebooks[p], axis=1, keepdims=True), 1e-12)
        cross = jnp.matmul(zn, cbn.T, precision=jax.lax.Precision.HIGHEST)
        dist = (jnp.sum(zn * zn, 1, keepdims=True)
                + jnp.sum(cbn * cbn, 1) - 2.0 * cross)
        probs.append(jax.nn.softmax(-dist, axis=1))
        idx = jnp.argmin(dist, axis=1)
        emb = zn[idx]
        qs.append(jnp.transpose(emb.reshape(B, H, W, d), (0, 3, 1, 2)))
        commit = commit + jnp.mean((zn - emb) ** 2)
    return (jnp.concatenate(qs, axis=1), commit / P,
            jnp.concatenate(probs, axis=-1))


if __name__ == "__main__":
    key = jax.random.PRNGKey(0)
    k_z, k_cb = jax.random.split(key)

    # Small shapes consistent with ProductQuantizerWrapper:
    # batch=2, embed_dim=32, 16x16 spatial, num_pq=4 -> pq_dim=8, num_codebook=128
    B, embed_dim, H, W = 2, 32, 16, 16
    num_pq, num_codebook = 4, 128
    pq_dim = embed_dim // num_pq
    beta = 0.25

    z = jax.random.normal(k_z, (B, embed_dim, H, W), dtype=jnp.float32)
    # EMAVectorQuantizer init: nn.init.uniform_(weight, -1/n_codes, 1/n_codes)
    codebooks = jax.random.uniform(
        k_cb, (num_pq, num_codebook, pq_dim), dtype=jnp.float32,
        minval=-1.0 / num_codebook, maxval=1.0 / num_codebook)

    q, outputs, distance_prob = product_vq_forward(z, codebooks, beta=beta)
    jax.block_until_ready((q, distance_prob, outputs['loss']))

    assert q.shape == (B, embed_dim, H, W)
    assert distance_prob.shape == (B * H * W, num_pq * num_codebook)

    # Loose sanity check vs. a pure-JAX reference: prob is argmin-independent;
    # q / commitment tolerate rare near-tie index flips and approx-reciprocal error.
    ref_q, ref_commit, ref_prob = _reference(z, codebooks)
    prob_err = float(jnp.max(jnp.abs(distance_prob.astype(jnp.float32) - ref_prob)))
    q_mismatch = float(jnp.mean((jnp.abs(q - ref_q) > 0.05).astype(jnp.float32)))
    commit_err = float(jnp.abs(outputs['commitment-loss'] - ref_commit))
    assert prob_err < 2e-2, f"distance_prob mismatch {prob_err}"
    assert q_mismatch < 0.10, f"q mismatch fraction {q_mismatch}"
    assert commit_err < 2e-2, f"commitment-loss mismatch {commit_err}"
    print("KERNEL_OK")
</pallas_src>

<mosaic_0001>
module attributes {stable_mosaic.version = 11 : i64} {
  func.func @kernel(%arg0: i32, %arg1: i32, %arg2: memref<1x32x256xf32, #tpu.memory_space<vmem>>, %arg3: memref<32x512xf32, #tpu.memory_space<vmem>>, %arg4: memref<1x512xf32, #tpu.memory_space<vmem>>, %arg5: memref<32x512xf32, #tpu.memory_space<vmem>>, %arg6: memref<1x32x256xf32, #tpu.memory_space<vmem>>, %arg7: memref<1x256x512xf32, #tpu.memory_space<vmem>>, %arg8: memref<1x1x128xf32, #tpu.memory_space<vmem>>, %arg9: memref<32x256xf32, #tpu.memory_space<vmem>>) attributes {dimension_semantics = [#tpu.dimension_semantics<parallel>, #tpu.dimension_semantics<parallel>], iteration_bounds = array<i64: 2, 1>, scalar_prefetch = 0 : i64, scratch_operands = 1 : i64, tpu.core_type = #tpu.core_type<tc>, window_params = [{transform_indices = @transform_0, window_bounds = array<i64: 1, 32, 256>}, {pipeline_mode = #tpu.pipeline_mode<synchronous>, transform_indices = @transform_1, window_bounds = array<i64: 32, 512>}, {pipeline_mode = #tpu.pipeline_mode<synchronous>, transform_indices = @transform_2, window_bounds = array<i64: 1, 512>}, {pipeline_mode = #tpu.pipeline_mode<synchronous>, transform_indices = @transform_3, window_bounds = array<i64: 32, 512>}, {transform_indices = @transform_4, window_bounds = array<i64: 1, 32, 256>}, {transform_indices = @transform_5, window_bounds = array<i64: 1, 256, 512>}, {transform_indices = @transform_6, window_bounds = array<i64: 1, 1, 128>}]} {
    %c0 = arith.constant 0 : index
    %c0_0 = arith.constant 0 : index
    %c0_1 = arith.constant 0 : index
    %0 = vector.load %arg2[%c0, %c0_0, %c0_1] : memref<1x32x256xf32, #tpu.memory_space<vmem>>, vector<1x8x256xf32>
    %1 = vector.shape_cast %0 : vector<1x8x256xf32> to vector<8x256xf32>
    %2 = arith.mulf %1, %1 : vector<8x256xf32>
    %cst = arith.constant dense<0.000000e+00> : vector<256xf32>
    %3 = vector.multi_reduction <add>, %2, %cst [0] : vector<8x256xf32> to vector<256xf32>
    %4 = vector.shape_cast %3 : vector<256xf32> to vector<1x256xf32>
    %cst_2 = arith.constant 1.000000e-24 : f32
    %5 = vector.broadcast %cst_2 : f32 to vector<1x256xf32>
    %6 = arith.maximumf %4, %5 : vector<1x256xf32>
    %7 = math.rsqrt %6 : vector<1x256xf32>
    %8 = vector.broadcast %7 : vector<1x256xf32> to vector<8x256xf32>
    %9 = arith.mulf %1, %8 : vector<8x256xf32>
    %c0_3 = arith.constant 0 : index
    %c0_4 = arith.constant 0 : index
    %10 = vector.load %arg9[%c0_3, %c0_4] : memref<32x256xf32, #tpu.memory_space<vmem>>, vector<8x256xf32>
    tpu.vector_store %arg9[%c0_3, %c0_4], %9 {strides = array<i32>} : memref<32x256xf32, #tpu.memory_space<vmem>>, vector<8x256xf32>,
    %c0_5 = arith.constant 0 : index
    %c8 = arith.constant 8 : index
    %c0_6 = arith.constant 0 : index
    %11 = vector.load %arg2[%c0_5, %c8, %c0_6] : memref<1x32x256xf32, #tpu.memory_space<vmem>>, vector<1x8x256xf32>
    %12 = vector.shape_cast %11 : vector<1x8x256xf32> to vector<8x256xf32>
    %13 = arith.mulf %12, %12 : vector<8x256xf32>
    %cst_7 = arith.constant dense<0.000000e+00> : vector<256xf32>
    %14 = vector.multi_reduction <add>, %13, %cst_7 [0] : vector<8x256xf32> to vector<256xf32>
    %15 = vector.shape_cast %14 : vector<256xf32> to vector<1x256xf32>
    %cst_8 = arith.constant 1.000000e-24 : f32
    %16 = vector.broadcast %cst_8 : f32 to vector<1x256xf32>
    %17 = arith.maximumf %15, %16 : vector<1x256xf32>
    %18 = math.rsqrt %17 : vector<1x256xf32>
    %19 = vector.broadcast %18 : vector<1x256xf32> to vector<8x256xf32>
    %20 = arith.mulf %12, %19 : vector<8x256xf32>
    %c8_9 = arith.constant 8 : index
    %c0_10 = arith.constant 0 : index
    %21 = vector.load %arg9[%c8_9, %c0_10] : memref<32x256xf32, #tpu.memory_space<vmem>>, vector<8x256xf32>
    tpu.vector_store %arg9[%c8_9, %c0_10], %20 {strides = array<i32>} : memref<32x256xf32, #tpu.memory_space<vmem>>, vector<8x256xf32>,
    %c0_11 = arith.constant 0 : index
    %c16 = arith.constant 16 : index
    %c0_12 = arith.constant 0 : index
    %22 = vector.load %arg2[%c0_11, %c16, %c0_12] : memref<1x32x256xf32, #tpu.memory_space<vmem>>, vector<1x8x256xf32>
    %23 = vector.shape_cast %22 : vector<1x8x256xf32> to vector<8x256xf32>
    %24 = arith.mulf %23, %23 : vector<8x256xf32>
    %cst_13 = arith.constant dense<0.000000e+00> : vector<256xf32>
    %25 = vector.multi_reduction <add>, %24, %cst_13 [0] : vector<8x256xf32> to vector<256xf32>
    %26 = vector.shape_cast %25 : vector<256xf32> to vector<1x256xf32>
    %cst_14 = arith.constant 1.000000e-24 : f32
    %27 = vector.broadcast %cst_14 : f32 to vector<1x256xf32>
    %28 = arith.maximumf %26, %27 : vector<1x256xf32>
    %29 = math.rsqrt %28 : vector<1x256xf32>
    %30 = vector.broadcast %29 : vector<1x256xf32> to vector<8x256xf32>
    %31 = arith.mulf %23, %30 : vector<8x256xf32>
    %c16_15 = arith.constant 16 : index
    %c0_16 = arith.constant 0 : index
    %32 = vector.load %arg9[%c16_15, %c0_16] : memref<32x256xf32, #tpu.memory_space<vmem>>, vector<8x256xf32>
    tpu.vector_store %arg9[%c16_15, %c0_16], %31 {strides = array<i32>} : memref<32x256xf32, #tpu.memory_space<vmem>>, vector<8x256xf32>,
    %c0_17 = arith.constant 0 : index
    %c24 = arith.constant 24 : index
    %c0_18 = arith.constant 0 : index
    %33 = vector.load %arg2[%c0_17, %c24, %c0_18] : memref<1x32x256xf32, #tpu.memory_space<vmem>>, vector<1x8x256xf32>
    %34 = vector.shape_cast %33 : vector<1x8x256xf32> to vector<8x256xf32>
    %35 = arith.mulf %34, %34 : vector<8x256xf32>
    %cst_19 = arith.constant dense<0.000000e+00> : vector<256xf32>
    %36 = vector.multi_reduction <add>, %35, %cst_19 [0] : vector<8x256xf32> to vector<256xf32>
    %37 = vector.shape_cast %36 : vector<256xf32> to vector<1x256xf32>
    %cst_20 = arith.constant 1.000000e-24 : f32
    %38 = vector.broadcast %cst_20 : f32 to vector<1x256xf32>
    %39 = arith.maximumf %37, %38 : vector<1x256xf32>
    %40 = math.rsqrt %39 : vector<1x256xf32>
    %41 = vector.broadcast %40 : vector<1x256xf32> to vector<8x256xf32>
    %42 = arith.mulf %34, %41 : vector<8x256xf32>
    %c24_21 = arith.constant 24 : index
    %c0_22 = arith.constant 0 : index
    %43 = vector.load %arg9[%c24_21, %c0_22] : memref<32x256xf32, #tpu.memory_space<vmem>>, vector<8x256xf32>
    tpu.vector_store %arg9[%c24_21, %c0_22], %42 {strides = array<i32>} : memref<32x256xf32, #tpu.memory_space<vmem>>, vector<8x256xf32>,
    %c0_23 = arith.constant 0 : index
    %c0_24 = arith.constant 0 : index
    %44 = vector.load %arg9[%c0_23, %c0_24] : memref<32x256xf32, #tpu.memory_space<vmem>>, vector<32x256xf32>
    %c0_25 = arith.constant 0 : index
    %c0_26 = arith.constant 0 : index
    %45 = vector.load %arg3[%c0_25, %c0_26] : memref<32x512xf32, #tpu.memory_space<vmem>>, vector<32x512xf32>
    %cst_27 = arith.constant dense<0.000000e+00> : vector<256x512xf32>
    %46 = tpu.matmul %44, %45, %cst_27 {dimension_numbers = #tpu.dot_dimension_numbers<[0], [0], [1], [1], [0, 1, 1, 1], [], []>} : vector<32x256xf32>, vector<32x512xf32>, vector<256x512xf32> -> vector<256x512xf32>
    %c0_28 = arith.constant 0 : index
    %c0_29 = arith.constant 0 : index
    %47 = vector.load %arg4[%c0_28, %c0_29] : memref<1x512xf32, #tpu.memory_space<vmem>>, vector<1x512xf32>
    %48 = vector.broadcast %47 : vector<1x512xf32> to vector<256x512xf32>
    %49 = arith.subf %46, %48 : vector<256x512xf32>
    %50 = tpu.iota {dimensions = array<i32: 1>} : vector<256x128xi32>
    %51 = vector.extract_strided_slice %49 {offsets = [0, 0], sizes = [256, 128], strides = [1, 1]} : vector<256x512xf32> to vector<256x128xf32>
    %cst_30 = arith.constant dense<0xFF800000> : vector<256xf32>
    %52 = vector.multi_reduction <maximumf>, %51, %cst_30 [1] : vector<256x128xf32> to vector<256xf32>
    %53 = vector.shape_cast %52 : vector<256xf32> to vector<256x1xf32>
    %54 = vector.broadcast %53 : vector<256x1xf32> to vector<256x128xf32>
    %55 = arith.subf %51, %54 : vector<256x128xf32>
    %56 = math.exp %55 : vector<256x128xf32>
    %cst_31 = arith.constant dense<0.000000e+00> : vector<256xf32>
    %57 = vector.multi_reduction <add>, %56, %cst_31 [1] : vector<256x128xf32> to vector<256xf32>
    %58 = vector.shape_cast %57 : vector<256xf32> to vector<256x1xf32>
    %59 = tpu.reciprocal %58 {approx = true} : vector<256x1xf32> -> vector<256x1xf32>
    %60 = vector.broadcast %59 : vector<256x1xf32> to vector<256x128xf32>
    %61 = arith.mulf %56, %60 : vector<256x128xf32>
    %62 = vector.broadcast %53 : vector<256x1xf32> to vector<256x128xf32>
    %63 = arith.cmpf oeq, %51, %62 : vector<256x128xf32>
    %c128_i32 = arith.constant 128 : i32
    %64 = vector.broadcast %c128_i32 : i32 to vector<256x128xi32>
    %65 = arith.select %63, %50, %64 : vector<256x128xi1>, vector<256x128xi32>
    %cst_32 = arith.constant dense<2147483647> : vector<256xi32>
    %66 = vector.multi_reduction <minsi>, %65, %cst_32 [1] : vector<256x128xi32> to vector<256xi32>
    %67 = vector.shape_cast %66 : vector<256xi32> to vector<256x1xi32>
    %68 = vector.broadcast %67 : vector<256x1xi32> to vector<256x128xi32>
    %69 = arith.cmpi eq, %50, %68 : vector<256x128xi32>
    %70 = arith.extui %69 : vector<256x128xi1> to vector<256x128xi32>
    %71 = arith.sitofp %70 : vector<256x128xi32> to vector<256x128xf32>
    %72 = vector.extract_strided_slice %49 {offsets = [0, 128], sizes = [256, 128], strides = [1, 1]} : vector<256x512xf32> to vector<256x128xf32>
    %cst_33 = arith.constant dense<0xFF800000> : vector<256xf32>
    %73 = vector.multi_reduction <maximumf>, %72, %cst_33 [1] : vector<256x128xf32> to vector<256xf32>
    %74 = vector.shape_cast %73 : vector<256xf32> to vector<256x1xf32>
    %75 = vector.broadcast %74 : vector<256x1xf32> to vector<256x128xf32>
    %76 = arith.subf %72, %75 : vector<256x128xf32>
    %77 = math.exp %76 : vector<256x128xf32>
    %cst_34 = arith.constant dense<0.000000e+00> : vector<256xf32>
    %78 = vector.multi_reduction <add>, %77, %cst_34 [1] : vector<256x128xf32> to vector<256xf32>
    %79 = vector.shape_cast %78 : vector<256xf32> to vector<256x1xf32>
    %80 = tpu.reciprocal %79 {approx = true} : vector<256x1xf32> -> vector<256x1xf32>
    %81 = vector.broadcast %80 : vector<256x1xf32> to vector<256x128xf32>
    %82 = arith.mulf %77, %81 : vector<256x128xf32>
    %83 = vector.broadcast %74 : vector<256x1xf32> to vector<256x128xf32>
    %84 = arith.cmpf oeq, %72, %83 : vector<256x128xf32>
    %c128_i32_35 = arith.constant 128 : i32
    %85 = vector.broadcast %c128_i32_35 : i32 to vector<256x128xi32>
    %86 = arith.select %84, %50, %85 : vector<256x128xi1>, vector<256x128xi32>
    %cst_36 = arith.constant dense<2147483647> : vector<256xi32>
    %87 = vector.multi_reduction <minsi>, %86, %cst_36 [1] : vector<256x128xi32> to vector<256xi32>
    %88 = vector.shape_cast %87 : vector<256xi32> to vector<256x1xi32>
    %89 = vector.broadcast %88 : vector<256x1xi32> to vector<256x128xi32>
    %90 = arith.cmpi eq, %50, %89 : vector<256x128xi32>
    %91 = arith.extui %90 : vector<256x128xi1> to vector<256x128xi32>
    %92 = arith.sitofp %91 : vector<256x128xi32> to vector<256x128xf32>
    %93 = vector.extract_strided_slice %49 {offsets = [0, 256], sizes = [256, 128], strides = [1, 1]} : vector<256x512xf32> to vector<256x128xf32>
    %cst_37 = arith.constant dense<0xFF800000> : vector<256xf32>
    %94 = vector.multi_reduction <maximumf>, %93, %cst_37 [1] : vector<256x128xf32> to vector<256xf32>
    %95 = vector.shape_cast %94 : vector<256xf32> to vector<256x1xf32>
    %96 = vector.broadcast %95 : vector<256x1xf32> to vector<256x128xf32>
    %97 = arith.subf %93, %96 : vector<256x128xf32>
    %98 = math.exp %97 : vector<256x128xf32>
    %cst_38 = arith.constant dense<0.000000e+00> : vector<256xf32>
    %99 = vector.multi_reduction <add>, %98, %cst_38 [1] : vector<256x128xf32> to vector<256xf32>
    %100 = vector.shape_cast %99 : vector<256xf32> to vector<256x1xf32>
    %101 = tpu.reciprocal %100 {approx = true} : vector<256x1xf32> -> vector<256x1xf32>
    %102 = vector.broadcast %101 : vector<256x1xf32> to vector<256x128xf32>
    %103 = arith.mulf %98, %102 : vector<256x128xf32>
    %104 = vector.broadcast %95 : vector<256x1xf32> to vector<256x128xf32>
    %105 = arith.cmpf oeq, %93, %104 : vector<256x128xf32>
    %c128_i32_39 = arith.constant 128 : i32
    %106 = vector.broadcast %c128_i32_39 : i32 to vector<256x128xi32>
    %107 = arith.select %105, %50, %106 : vector<256x128xi1>, vector<256x128xi32>
    %cst_40 = arith.constant dense<2147483647> : vector<256xi32>
    %108 = vector.multi_reduction <minsi>, %107, %cst_40 [1] : vector<256x128xi32> to vector<256xi32>
    %109 = vector.shape_cast %108 : vector<256xi32> to vector<256x1xi32>
    %110 = vector.broadcast %109 : vector<256x1xi32> to vector<256x128xi32>
    %111 = arith.cmpi eq, %50, %110 : vector<256x128xi32>
    %112 = arith.extui %111 : vector<256x128xi1> to vector<256x128xi32>
    %113 = arith.sitofp %112 : vector<256x128xi32> to vector<256x128xf32>
    %114 = vector.extract_strided_slice %49 {offsets = [0, 384], sizes = [256, 128], strides = [1, 1]} : vector<256x512xf32> to vector<256x128xf32>
    %cst_41 = arith.constant dense<0xFF800000> : vector<256xf32>
    %115 = vector.multi_reduction <maximumf>, %114, %cst_41 [1] : vector<256x128xf32> to vector<256xf32>
    %116 = vector.shape_cast %115 : vector<256xf32> to vector<256x1xf32>
    %117 = vector.broadcast %116 : vector<256x1xf32> to vector<256x128xf32>
    %118 = arith.subf %114, %117 : vector<256x128xf32>
    %119 = math.exp %118 : vector<256x128xf32>
    %cst_42 = arith.constant dense<0.000000e+00> : vector<256xf32>
    %120 = vector.multi_reduction <add>, %119, %cst_42 [1] : vector<256x128xf32> to vector<256xf32>
    %121 = vector.shape_cast %120 : vector<256xf32> to vector<256x1xf32>
    %122 = tpu.reciprocal %121 {approx = true} : vector<256x1xf32> -> vector<256x1xf32>
    %123 = vector.broadcast %122 : vector<256x1xf32> to vector<256x128xf32>
    %124 = arith.mulf %119, %123 : vector<256x128xf32>
    %125 = vector.broadcast %116 : vector<256x1xf32> to vector<256x128xf32>
    %126 = arith.cmpf oeq, %114, %125 : vector<256x128xf32>
    %c128_i32_43 = arith.constant 128 : i32
    %127 = vector.broadcast %c128_i32_43 : i32 to vector<256x128xi32>
    %128 = arith.select %126, %50, %127 : vector<256x128xi1>, vector<256x128xi32>
    %cst_44 = arith.constant dense<2147483647> : vector<256xi32>
    %129 = vector.multi_reduction <minsi>, %128, %cst_44 [1] : vector<256x128xi32> to vector<256xi32>
    %130 = vector.shape_cast %129 : vector<256xi32> to vector<256x1xi32>
    %131 = vector.broadcast %130 : vector<256x1xi32> to vector<256x128xi32>
    %132 = arith.cmpi eq, %50, %131 : vector<256x128xi32>
    %133 = arith.extui %132 : vector<256x128xi1> to vector<256x128xi32>
    %134 = arith.sitofp %133 : vector<256x128xi32> to vector<256x128xf32>
    %135 = tpu.concatenate %61, %82, %103, %124 in 1 : vector<256x128xf32>, vector<256x128xf32>, vector<256x128xf32>, vector<256x128xf32> -> vector<256x512xf32>
    %c0_45 = arith.constant 0 : index
    %c0_46 = arith.constant 0 : index
    %c0_47 = arith.constant 0 : index
    %136 = vector.load %arg7[%c0_45, %c0_46, %c0_47] : memref<1x256x512xf32, #tpu.memory_space<vmem>>, vector<1x256x512xf32>
    %137 = vector.shape_cast %136 : vector<1x256x512xf32> to vector<256x512xf32>
    %138 = vector.shape_cast %135 : vector<256x512xf32> to vector<1x256x512xf32>
    tpu.vector_store %arg7[%c0_45, %c0_46, %c0_47], %138 {strides = array<i32>} : memref<1x256x512xf32, #tpu.memory_space<vmem>>, vector<1x256x512xf32>,
    %139 = tpu.concatenate %71, %92, %113, %134 in 1 : vector<256x128xf32>, vector<256x128xf32>, vector<256x128xf32>, vector<256x128xf32> -> vector<256x512xf32>
    %c0_48 = arith.constant 0 : index
    %c0_49 = arith.constant 0 : index
    %140 = vector.load %arg5[%c0_48, %c0_49] : memref<32x512xf32, #tpu.memory_space<vmem>>, vector<32x512xf32>
    %cst_50 = arith.constant dense<0.000000e+00> : vector<32x256xf32>
    %141 = tpu.matmul %140, %139, %cst_50 {dimension_numbers = #tpu.dot_dimension_numbers<[1], [1], [0], [0], [0, 0, 1, 0], [], []>} : vector<32x512xf32>, vector<256x512xf32>, vector<32x256xf32> -> vector<32x256xf32>
    %c0_51 = arith.constant 0 : index
    %c0_52 = arith.constant 0 : index
    %c0_53 = arith.constant 0 : index
    %142 = vector.load %arg6[%c0_51, %c0_52, %c0_53] : memref<1x32x256xf32, #tpu.memory_space<vmem>>, vector<1x32x256xf32>
    %143 = vector.shape_cast %142 : vector<1x32x256xf32> to vector<32x256xf32>
    %144 = vector.shape_cast %141 : vector<32x256xf32> to vector<1x32x256xf32>
    tpu.vector_store %arg6[%c0_51, %c0_52, %c0_53], %144 {strides = array<i32>} : memref<1x32x256xf32, #tpu.memory_space<vmem>>, vector<1x32x256xf32>,
    %145 = arith.subf %141, %44 : vector<32x256xf32>
    %146 = arith.mulf %145, %145 : vector<32x256xf32>
    %147 = vector.shape_cast %146 : vector<32x256xf32> to vector<1x32x256xf32>
    %cst_54 = arith.constant dense<0.000000e+00> : vector<1xf32>
    %148 = vector.multi_reduction <add>, %147, %cst_54 [1, 2] : vector<1x32x256xf32> to vector<1xf32>
    %149 = vector.shape_cast %148 : vector<1xf32> to vector<1x1x1xf32>
    %150 = vector.extract %149[0, 0, 0] : f32 from vector<1x1x1xf32>
    %cst_55 = arith.constant 0.000000e+00 : f32
    %151 = vector.broadcast %cst_55 : f32 to vector<1x1x128xf32>
    %152 = vector.broadcast %150 : f32 to vector<1x1x128xf32>
    %153 = arith.addf %152, %151 : vector<1x1x128xf32>
    %c0_56 = arith.constant 0 : index
    %c0_57 = arith.constant 0 : index
    %c0_58 = arith.constant 0 : index
    %154 = vector.load %arg8[%c0_56, %c0_57, %c0_58] : memref<1x1x128xf32, #tpu.memory_space<vmem>>, vector<1x1x128xf32>
    tpu.vector_store %arg8[%c0_56, %c0_57, %c0_58], %153 {strides = array<i32>} : memref<1x1x128xf32, #tpu.memory_space<vmem>>, vector<1x1x128xf32>,
    return
  }
  func.func @transform_0(%arg0: i32, %arg1: i32) -> (i32, i32, i32) {
    %c0_i32 = arith.constant 0 : i32
    %c0_i32_0 = arith.constant 0 : i32
    return %arg0, %c0_i32, %arg1 : i32, i32, i32
  }
  func.func @transform_1(%arg0: i32, %arg1: i32) -> (i32, i32) {
    %c0_i32 = arith.constant 0 : i32
    %c0_i32_0 = arith.constant 0 : i32
    %c0_i32_1 = arith.constant 0 : i32
    return %c0_i32, %c0_i32_0 : i32, i32
  }
  func.func @transform_2(%arg0: i32, %arg1: i32) -> (i32, i32) {
    %c0_i32 = arith.constant 0 : i32
    %c0_i32_0 = arith.constant 0 : i32
    %c0_i32_1 = arith.constant 0 : i32
    return %c0_i32, %c0_i32_0 : i32, i32
  }
  func.func @transform_3(%arg0: i32, %arg1: i32) -> (i32, i32) {
    %c0_i32 = arith.constant 0 : i32
    %c0_i32_0 = arith.constant 0 : i32
    %c0_i32_1 = arith.constant 0 : i32
    return %c0_i32, %c0_i32_0 : i32, i32
  }
  func.func @transform_4(%arg0: i32, %arg1: i32) -> (i32, i32, i32) {
    %c0_i32 = arith.constant 0 : i32
    %c0_i32_0 = arith.constant 0 : i32
    return %arg0, %c0_i32, %arg1 : i32, i32, i32
  }
  func.func @transform_5(%arg0: i32, %arg1: i32) -> (i32, i32, i32) {
    %c0_i32 = arith.constant 0 : i32
    %c0_i32_0 = arith.constant 0 : i32
    return %arg0, %arg1, %c0_i32 : i32, i32, i32
  }
  func.func @transform_6(%arg0: i32, %arg1: i32) -> (i32, i32, i32) {
    %c1_i32 = arith.constant 1 : i32
    %0 = arith.muli %arg0, %c1_i32 : i32
    %1 = arith.addi %0, %arg1 : i32
    %c0_i32 = arith.constant 0 : i32
    %c0_i32_0 = arith.constant 0 : i32
    %c0_i32_1 = arith.constant 0 : i32
    return %1, %c0_i32, %c0_i32_0 : i32, i32, i32
  }
}

</mosaic_0001>

<llo_original>
// kernel: tpu_custom_call.1
$region0: #{tpu_custom_call.1}
  #allocation0 [shape = 'u32[]', space=smem, size = 0x4, offset = 0x4, fixed_abs, tag = 'smem constant byte address 0x4 - core index']
  #allocation1 [shape = 'u32[72,128]{1,0:T(1,128)}', space=vmem, size = 0x9000, scoped, tag = 'internal scratch']
  #allocation2 [shape = 'f32[32,256]{1,0:T(8,128)}', space=vmem, size = 0x8000, scoped, tag = 'scratch operand']
  %s0 = inlined_call_operand.hbm [shape: f32[2,32,256], index: 0, kind: input, shape index: {}]
  %s1 = inlined_call_operand.hbm [shape: f32[32,512], index: 1, kind: input, shape index: {}]
  %s2 = inlined_call_operand.hbm [shape: f32[1,512], index: 2, kind: input, shape index: {}]
  %s3 = inlined_call_operand.hbm [shape: f32[32,512], index: 3, kind: input, shape index: {}]
  %s4 = inlined_call_operand.hbm [shape: f32[2,32,256], index: 4, kind: output, shape index: {0}]
  %s5 = inlined_call_operand.hbm [shape: f32[2,256,512], index: 5, kind: output, shape index: {1}]
  %s6 = inlined_call_operand.hbm [shape: f32[2,1,128], index: 6, kind: output, shape index: {2}]
  %7 = xla_tuple %s4, %s5, %s6
  %s8 = sld [smem:[#allocation0]]
  $region81: #{tpu_custom_call.1} parent=0
    _
  %s10 = ssub.s32 1, %s8
  %s11 = scalar_select 0, %s10, %s8
  $region1: #{tpu_custom_call.1} parent=0
    #allocation3 [shape = 'u8[65536]{0}', space=vmem, size = 0x10000, scoped, tag = 'input window, operand 0']
    #allocation4 [shape = 's32[2]{0}', space=sflag, size = 0x8, scoped, tag = 'scoped memory for tpu_custom_call.1']
    #allocation5 [shape = 's32[2]{0}', space=sflag, size = 0x8, scoped, tag = 'scoped memory for tpu_custom_call.1']
    #allocation6 [shape = 'u8[65536]{0}', space=vmem, size = 0x10000, scoped, tag = 'input window, operand 1, single buffered']
    #allocation7 [shape = 's32[1]{0}', space=sflag, size = 0x4, scoped, tag = 'scoped memory for tpu_custom_call.1']
    #allocation8 [shape = 'u8[2048]{0}', space=vmem, size = 0x800, scoped, tag = 'input window, operand 2, single buffered']
    #allocation9 [shape = 'u8[65536]{0}', space=vmem, size = 0x10000, scoped, tag = 'input window, operand 3, single buffered']
    #allocation10 [shape = 's32[1]{0}', space=sflag, size = 0x4, scoped, tag = 'scoped memory for tpu_custom_call.1']
    #allocation11 [shape = 'u8[65536]{0}', space=vmem, size = 0x10000, scoped, tag = 'output window, operand 0']
    #allocation12 [shape = 'u8[1048576]{0}', space=vmem, size = 0x100000, scoped, tag = 'output window, operand 1']
    #allocation13 [shape = 's32[2]{0}', space=sflag, size = 0x8, scoped, tag = 'scoped memory for tpu_custom_call.1']
    #allocation14 [shape = 'u8[1024]{0}', space=vmem, size = 0x400, scoped, tag = 'output window, operand 2']
    %12 = vsyncpa [#allocation4], 0
    %s13 = scalar_lea.sflag [#allocation4], 1
    %14 = vsyncpa %s13, 0
    %15 = vsyncpa [#allocation7], 0
    %16 = vsyncpa [#allocation10], 0
    %17 = vsyncpa [#allocation5], 0
    %s18 = scalar_lea.sflag [#allocation5], 1
    %19 = vsyncpa %s18, 0
    %20 = vsyncpa [#allocation13], 0
    %s21 = scalar_lea.sflag [#allocation13], 1
    %22 = vsyncpa %s21, 0
    loop: start=0, step=1, limit=4
    $region2: #{tpu_custom_call.1} parent=1 // loop_pre_header
      _
    $region3: #{tpu_custom_call.1} parent=1 // loop_header
      %s24 = sphi 0, %s28
      %p25 = scmp.ge.s32.totalorder %s24, 4
      %s31 = sphi 0, %s43
      %s32 = sphi 0, %s39
      %s33 = sphi 0, %s31
      %s34 = sphi 0, %s32
      %s35 = sphi 0, %s33
      %s36 = sphi 0, %s34
      %s48 = sphi 0, %s50
      %s51 = sphi 0, %s48
      %s52 = sphi 0, %s51
      %s68 = sphi 0, %s52
      %s72 = sphi 0, %s72
      %s74 = sphi 0, %s72
      %s75 = sphi 0, %s74
      %s89 = sphi 0, %s75
      %s93 = sphi 0, %s93
      %s95 = sphi 0, %s93
      %s96 = sphi 0, %s95
      %s110 = sphi 0, %s96
      %s114 = sphi 0, %s114
      %s116 = sphi 0, %s114
      %s117 = sphi 0, %s116
      %s131 = sphi 0, %s117
      %s139 = sphi 0, %s141
      %s142 = sphi 0, %s139
      %s143 = sphi 0, %s142
      %s159 = sphi 0, %s143
      %s167 = sphi 0, %s169
      %s170 = sphi 0, %s167
      %s171 = sphi 0, %s170
      %s187 = sphi 0, %s171
      %s195 = sphi 0, %s197
      %s198 = sphi 0, %s195
      %s199 = sphi 0, %s198
      %s215 = sphi 0, %s199
    $region4: #{tpu_custom_call.1} parent=1 // loop_header_branch
      %27 = sbr.rel (%p25) target = $region8
    $region5: #{tpu_custom_call.1} parent=1 // loop_body
      %s29 = ssub.s32 %s24, 1
      %s30 = ssub.s32 %s24, 2
      %s37 = sadd.s32 1, %s32
      %p38 = scmp.ge.s32.totalorder %s37, 1
      %s39 = scalar_select %p38, 0, %s37
      %s40 = sadd.s32 1, %s31
      %s41 = scalar_select %p38, %s40, %s31
      %p42 = scmp.ge.s32.totalorder %s41, 2
      %s43 = scalar_select %p42, 0, %s41
      %s44 = ssub.s32 %s31, %s43
      %s45 = ssub.s32 %s32, %s39
      %s46 = sor.u32 %s44, %s45
      %p47 = scmp.eq.s32.totalorder %s46, 0
      %s49 = sadd.s32 %s48, 1
      %s50 = scalar_select %p47, %s48, %s49
      %p53 = pneg %p47
      %p54 = scmp.eq.s32.totalorder %s24, 1
      %p55 = por %p53, %p54
      %p56 = scmp.ne.s32.totalorder %s48, %s51
      %p57 = scmp.eq.s32.totalorder %s24, 0
      %p58 = por %p56, %p57
      %p59 = scmp.ne.s32.totalorder %s48, %s51
      %p60 = scmp.eq.s32.totalorder %s29, 1
      %p61 = por %p59, %p60
      %p62 = scmp.ne.s32.totalorder %s51, %s52
      %p63 = scmp.eq.s32.totalorder %s29, 0
      %p64 = por %p62, %p63
      %p65 = scmp.ne.s32.totalorder %s51, %s52
      %p66 = scmp.eq.s32.totalorder %s30, 1
      %p67 = por %p65, %p66
      %p69 = scmp.ne.s32.totalorder %s52, %s68
      %p70 = scmp.eq.s32.totalorder %s30, 0
      %p71 = por %p69, %p70
      %s73 = sadd.s32 %s72, 1
      %p76 = scmp.eq.s32.totalorder %s24, 1
      %p77 = scmp.ne.s32.totalorder %s72, %s74
      %p78 = scmp.eq.s32.totalorder %s24, 0
      %p79 = por %p77, %p78
      %p80 = scmp.ne.s32.totalorder %s72, %s74
      %p81 = scmp.eq.s32.totalorder %s29, 1
      %p82 = por %p80, %p81
      %p83 = scmp.ne.s32.totalorder %s74, %s75
      %p84 = scmp.eq.s32.totalorder %s29, 0
      %p85 = por %p83, %p84
      %p86 = scmp.ne.s32.totalorder %s74, %s75
      %p87 = scmp.eq.s32.totalorder %s30, 1
      %p88 = por %p86, %p87
      %p90 = scmp.ne.s32.totalorder %s75, %s89
      %p91 = scmp.eq.s32.totalorder %s30, 0
      %p92 = por %p90, %p91
      %s94 = sadd.s32 %s93, 1
      %p97 = scmp.eq.s32.totalorder %s24, 1
      %p98 = scmp.ne.s32.totalorder %s93, %s95
      %p99 = scmp.eq.s32.totalorder %s24, 0
      %p100 = por %p98, %p99
      %p101 = scmp.ne.s32.totalorder %s93, %s95
      %p102 = scmp.eq.s32.totalorder %s29, 1
      %p103 = por %p101, %p102
      %p104 = scmp.ne.s32.totalorder %s95, %s96
      %p105 = scmp.eq.s32.totalorder %s29, 0
      %p106 = por %p104, %p105
      %p107 = scmp.ne.s32.totalorder %s95, %s96
      %p108 = scmp.eq.s32.totalorder %s30, 1
      %p109 = por %p107, %p108
      %p111 = scmp.ne.s32.totalorder %s96, %s110
      %p112 = scmp.eq.s32.totalorder %s30, 0
      %p113 = por %p111, %p112
      %s115 = sadd.s32 %s114, 1
      %p118 = scmp.eq.s32.totalorder %s24, 1
      %p119 = scmp.ne.s32.totalorder %s114, %s116
      %p120 = scmp.eq.s32.totalorder %s24, 0
      %p121 = por %p119, %p120
      %p122 = scmp.ne.s32.totalorder %s114, %s116
      %p123 = scmp.eq.s32.totalorder %s29, 1
      %p124 = por %p122, %p123
      %p125 = scmp.ne.s32.totalorder %s116, %s117
      %p126 = scmp.eq.s32.totalorder %s29, 0
      %p127 = por %p125, %p126
      %p128 = scmp.ne.s32.totalorder %s116, %s117
      %p129 = scmp.eq.s32.totalorder %s30, 1
      %p130 = por %p128, %p129
      %p132 = scmp.ne.s32.totalorder %s117, %s131
      %p133 = scmp.eq.s32.totalorder %s30, 0
      %p134 = por %p132, %p133
      %s135 = ssub.s32 %s31, %s43
      %s136 = ssub.s32 %s32, %s39
      %s137 = sor.u32 %s135, %s136
      %p138 = scmp.eq.s32.totalorder %s137, 0
      %s140 = sadd.s32 %s139, 1
      %s141 = scalar_select %p138, %s139, %s140
      %p144 = pneg %p138
      %p145 = scmp.eq.s32.totalorder %s24, 1
      %p146 = por %p144, %p145
      %p147 = scmp.ne.s32.totalorder %s139, %s142
      %p148 = scmp.eq.s32.totalorder %s24, 0
      %p149 = por %p147, %p148
      %p150 = scmp.ne.s32.totalorder %s139, %s142
      %p151 = scmp.eq.s32.totalorder %s29, 1
      %p152 = por %p150, %p151
      %p153 = scmp.ne.s32.totalorder %s142, %s143
      %p154 = scmp.eq.s32.totalorder %s29, 0
      %p155 = por %p153, %p154
      %p156 = scmp.ne.s32.totalorder %s142, %s143
      %p157 = scmp.eq.s32.totalorder %s30, 1
      %p158 = por %p156, %p157
      %p160 = scmp.ne.s32.totalorder %s143, %s159
      %p161 = scmp.eq.s32.totalorder %s30, 0
      %p162 = por %p160, %p161
      %s163 = ssub.s32 %s31, %s43
      %s164 = ssub.s32 %s32, %s39
      %s165 = sor.u32 %s163, %s164
      %p166 = scmp.eq.s32.totalorder %s165, 0
      %s168 = sadd.s32 %s167, 1
      %s169 = scalar_select %p166, %s167, %s168
      %p172 = pneg %p166
      %p173 = scmp.eq.s32.totalorder %s24, 1
      %p174 = por %p172, %p173
      %p175 = scmp.ne.s32.totalorder %s167, %s170
      %p176 = scmp.eq.s32.totalorder %s24, 0
      %p177 = por %p175, %p176
      %p178 = scmp.ne.s32.totalorder %s167, %s170
      %p179 = scmp.eq.s32.totalorder %s29, 1
      %p180 = por %p178, %p179
      %p181 = scmp.ne.s32.totalorder %s170, %s171
      %p182 = scmp.eq.s32.totalorder %s29, 0
      %p183 = por %p181, %p182
      %p184 = scmp.ne.s32.totalorder %s170, %s171
      %p185 = scmp.eq.s32.totalorder %s30, 1
      %p186 = por %p184, %p185
      %p188 = scmp.ne.s32.totalorder %s171, %s187
      %p189 = scmp.eq.s32.totalorder %s30, 0
      %p190 = por %p188, %p189
      %s191 = sadd.s32 %s31, %s32
      %s192 = sadd.s32 %s43, %s39
      %s193 = ssub.s32 %s191, %s192
      %p194 = scmp.eq.s32.totalorder %s193, 0
      %s196 = sadd.s32 %s195, 1
      %s197 = scalar_select %p194, %s195, %s196
      %p200 = pneg %p194
      %p201 = scmp.eq.s32.totalorder %s24, 1
      %p202 = por %p200, %p201
      %p203 = scmp.ne.s32.totalorder %s195, %s198
      %p204 = scmp.eq.s32.totalorder %s24, 0
      %p205 = por %p203, %p204
      %p206 = scmp.ne.s32.totalorder %s195, %s198
      %p207 = scmp.eq.s32.totalorder %s29, 1
      %p208 = por %p206, %p207
      %p209 = scmp.ne.s32.totalorder %s198, %s199
      %p210 = scmp.eq.s32.totalorder %s29, 0
      %p211 = por %p209, %p210
      %p212 = scmp.ne.s32.totalorder %s198, %s199
      %p213 = scmp.eq.s32.totalorder %s30, 1
      %p214 = por %p212, %p213
      %p216 = scmp.ne.s32.totalorder %s199, %s215
      %p217 = scmp.eq.s32.totalorder %s30, 0
      %p218 = por %p216, %p217
      %p219 = scmp.le.s32.totalorder 1, %s24
      %p220 = scmp.lt.s32.totalorder %s24, 3
      %p221 = pnand %p219, %p220
      %p222 = pneg %p221
      // Predicated region
      $region9: #{tpu_custom_call.1} parent=5 // pred_check
        _
      $region10: #{tpu_custom_call.1} parent=5 // pred_check_branch
        %224 = sbr.rel (%p221) target = $region12
      $region11: #{tpu_custom_call.1} parent=5 // pred_region
        %s225 = ssub.s32 %s24, 1
        // Predicated region
        $region13: #{tpu_custom_call.1} parent=11 // pred_check
          %p226 = pneg %p85
        $region14: #{tpu_custom_call.1} parent=11 // pred_check_branch
          %228 = sbr.rel (%p226) target = $region16
        $region15: #{tpu_custom_call.1} parent=11 // pred_region
          %230 = vsyncadd [#allocation7], 0
          %s231 = sshll.u32 %s1, 4
          %s232 = int_to_ptr.hbm [resolvable:$true] %s231
          %s233 = sshll.u32 [#allocation6], 4
          %s234 = int_to_ptr.vmem [resolvable:$true] %s233
          %239 = dma.hbm_to_vmem [thread:$0]  %s232, 2048, %s234, [#allocation7], 512, 512, 32
        $region16: #{tpu_custom_call.1} parent=11 // pred_fallthru
          _
        // Predicated region
        $region17: #{tpu_custom_call.1} parent=11 // pred_check
          %p240 = pneg %p106
        $region18: #{tpu_custom_call.1} parent=11 // pred_check_branch
          %242 = sbr.rel (%p240) target = $region20
        $region19: #{tpu_custom_call.1} parent=11 // pred_region
          %244 = vsyncadd [#allocation7], 0
          %s246 = sshll.u32 %s2, 4
          %s247 = int_to_ptr.hbm [resolvable:$true] %s246
          %s248 = sshll.u32 [#allocation8], 4
          %s249 = int_to_ptr.vmem [resolvable:$true] %s248
          %251 = dma.hbm_to_vmem [thread:$0]  %s247, 64, %s249, [#allocation7]
        $region20: #{tpu_custom_call.1} parent=11 // pred_fallthru
          _
        // Predicated region
        $region21: #{tpu_custom_call.1} parent=11 // pred_check
          %p252 = pneg %p127
        $region22: #{tpu_custom_call.1} parent=11 // pred_check_branch
          %254 = sbr.rel (%p252) target = $region24
        $region23: #{tpu_custom_call.1} parent=11 // pred_region
          %256 = vsyncadd [#allocation10], 0
          %s257 = sshll.u32 %s3, 4
          %s258 = int_to_ptr.hbm [resolvable:$true] %s257
          %s259 = sshll.u32 [#allocation9], 4
          %s260 = int_to_ptr.vmem [resolvable:$true] %s259
          %265 = dma.hbm_to_vmem [thread:$0]  %s258, 2048, %s260, [#allocation10], 512, 512, 32
        $region24: #{tpu_custom_call.1} parent=11 // pred_fallthru
          _
      $region12: #{tpu_custom_call.1} parent=5 // pred_fallthru
        _
      %p266 = scmp.lt.s32.totalorder %s24, 2
      // Predicated region
      $region25: #{tpu_custom_call.1} parent=5 // pred_check
        %p267 = pneg %p266
      $region26: #{tpu_custom_call.1} parent=5 // pred_check_branch
        %269 = sbr.rel (%p267) target = $region28
      $region27: #{tpu_custom_call.1} parent=5 // pred_region
        // Predicated region
        $region29: #{tpu_custom_call.1} parent=27 // pred_check
          %p270 = pneg %p58
        $region30: #{tpu_custom_call.1} parent=27 // pred_check_branch
          %272 = sbr.rel (%p270) target = $region32
        $region31: #{tpu_custom_call.1} parent=27 // pred_region
          %s273 = sand.u32 %s48, 1
          %s274 = scalar_lea.sflag [#allocation4], %s273
          %s275 = sand.u32 %s48, 1
          %s276 = smul.addr %s275, 64
          %s277 = scalar_lea.vmem [#allocation3], %s276
          %s278 = smul.u32 2, %s32
          %280 = vsyncadd %s274, 0
          %s281 = smul.addr %s31, 8
          %s282 = sadd.s32 %s278, %s281
          %s283 = smul.addr %s282, 8
          %s284 = scalar_lea.hbm %s0, %s283
          %s285 = sshll.u32 %s284, 4
          %s286 = int_to_ptr.hbm [resolvable:$true] %s285
          %s287 = sshll.u32 %s277, 4
          %s288 = int_to_ptr.vmem [resolvable:$true] %s287
          %293 = dma.hbm_to_vmem [thread:$0]  %s286, 1024, %s288, %s274, 256, 256, 16
        $region32: #{tpu_custom_call.1} parent=27 // pred_fallthru
          _
      $region28: #{tpu_custom_call.1} parent=5 // pred_fallthru
        _
      %p294 = scmp.le.s32.totalorder 1, %s24
      %p295 = scmp.lt.s32.totalorder %s24, 3
      %p296 = pnand %p294, %p295
      %p297 = pneg %p296
      // Predicated region
      $region33: #{tpu_custom_call.1} parent=5 // pred_check
        _
      $region34: #{tpu_custom_call.1} parent=5 // pred_check_branch
        %299 = sbr.rel (%p296) target = $region36
      $region35: #{tpu_custom_call.1} parent=5 // pred_region
        %s300 = ssub.s32 %s24, 1
        %s301 = sand.u32 %s51, 1
        %s302 = scalar_lea.sflag [#allocation4], %s301
        %s303 = sand.u32 %s51, 1
        %s304 = smul.addr %s303, 64
        %s305 = scalar_lea.vmem [#allocation3], %s304
        // Predicated region
        $region37: #{tpu_custom_call.1} parent=35 // pred_check
          %p306 = pneg %p64
        $region38: #{tpu_custom_call.1} parent=35 // pred_check_branch
          %308 = sbr.rel (%p306) target = $region40
        $region39: #{tpu_custom_call.1} parent=35 // pred_region
          %310 = dma.done %s302, 1024
        $region40: #{tpu_custom_call.1} parent=35 // pred_fallthru
          _
        // Predicated region
        $region41: #{tpu_custom_call.1} parent=35 // pred_check
          %p311 = pneg %p85
        $region42: #{tpu_custom_call.1} parent=35 // pred_check_branch
          %313 = sbr.rel (%p311) target = $region44
        $region43: #{tpu_custom_call.1} parent=35 // pred_region
          %315 = dma.done [#allocation7], 2048
        $region44: #{tpu_custom_call.1} parent=35 // pred_fallthru
          _
        // Predicated region
        $region45: #{tpu_custom_call.1} parent=35 // pred_check
          %p316 = pneg %p106
        $region46: #{tpu_custom_call.1} parent=35 // pred_check_branch
          %318 = sbr.rel (%p316) target = $region48
        $region47: #{tpu_custom_call.1} parent=35 // pred_region
          %320 = dma.done [#allocation7], 64
        $region48: #{tpu_custom_call.1} parent=35 // pred_fallthru
          _
        // Predicated region
        $region49: #{tpu_custom_call.1} parent=35 // pred_check
          %p321 = pneg %p127
        $region50: #{tpu_custom_call.1} parent=35 // pred_check_branch
          %323 = sbr.rel (%p321) target = $region52
        $region51: #{tpu_custom_call.1} parent=35 // pred_region
          %325 = dma.done [#allocation10], 2048
        $region52: #{tpu_custom_call.1} parent=35 // pred_fallthru
          _
        %s326 = sand.u32 %s51, 1
        %s327 = scalar_lea.sflag [#allocation4], %s326
        %s328 = sand.u32 %s51, 1
        %s329 = smul.addr %s328, 64
        %s330 = scalar_lea.vmem [#allocation3], %s329
        %p331 = pneg %p64
        %p332 = pneg %p61
        %p333 = pneg %p85
        %p334 = pneg %p82
        %p335 = pneg %p106
        %p336 = pneg %p103
        %p337 = pneg %p127
        %p338 = pneg %p124
        %p339 = pneg %p155
        %p340 = pneg %p152
        %s341 = sand.u32 %s142, 1
        %s342 = scalar_lea.sflag [#allocation5], %s341
        %s343 = sand.u32 %s142, 1
        %s344 = smul.addr %s343, 64
        %s345 = scalar_lea.vmem [#allocation11], %s344
        %p346 = pneg %p183
        %p347 = pneg %p180
        %s348 = sand.u32 %s29, 1
        %s349 = scalar_lea.sflag [#allocation13], %s348
        %s350 = sand.u32 %s170, 1
        %s351 = smul.addr %s350, 1024
        %s352 = scalar_lea.vmem [#allocation12], %s351
        %p353 = pneg %p211
        %p354 = pneg %p208
        %s355 = sand.u32 %s29, 1
        %s356 = scalar_lea.sflag [#allocation13], %s355
        %s357 = sand.u32 %s198, 1
        %s358 = scalar_lea.vmem [#allocation14], %s357
        %s359 = smul.u32 2, %s34
        %s360 = smul.u32 2, %s34
        %s361 = smul.u32 32, %s34
        %s362 = sadd.s32 %s33, %s34
        %v363 = vld [vmem:[%s305] sm:$0xff]
        %v364 = vld [vmem:[%s305 + $0x8] sm:$0xff]
        %v365 = vmul.f32 %v363, %v363
        %v366 = vmul.f32 %v364, %v364
        %v367 = vrot.slane %v365, 4
        %v368 = vadd.f32 %v365, %v367
        %v369 = vrot.slane %v368, 2
        %v370 = vadd.f32 %v368, %v369
        %v371 = vrot.slane %v370, 1
        %v372 = vadd.f32 %v370, %v371
        %v373 = vrot.slane %v366, 4
        %v374 = vadd.f32 %v366, %v373
        %v375 = vrot.slane %v374, 2
        %v376 = vadd.f32 %v374, %v375
        %v377 = vrot.slane %v376, 1
        %v378 = vadd.f32 %v376, %v377
        %v379 = vmax.f32 %v372, 1e-24
        %v380 = vmax.f32 %v378, 1e-24
        %v381 = vrsqrt.pop %v379
        %v382 = vmul.f32 %v381, %v379
        %v383 = vmul.f32 %v382, %v381
        %v384 = vmul.f32 0.5, %v383
        %v385 = vsub.f32 1.5, %v384
        %v386 = vmul.f32 %v381, %v385
        %vm387 = vweird.f32 %v379
        %vm388 = vweird.f32 %v381
        %vm389 = vmor %vm387, %vm388
        %v390 = vsel %vm389, %v381, %v386
        %v391 = vrsqrt.pop %v380
        %v392 = vmul.f32 %v391, %v380
        %v393 = vmul.f32 %v392, %v391
        %v394 = vmul.f32 0.5, %v393
        %v395 = vsub.f32 1.5, %v394
        %v396 = vmul.f32 %v391, %v395
        %vm397 = vweird.f32 %v380
        %vm398 = vweird.f32 %v391
        %vm399 = vmor %vm397, %vm398
        %v400 = vsel %vm399, %v391, %v396
        %v401 = vmul.f32 %v363, %v390
        %v402 = vmul.f32 %v364, %v400
        %403 = vst [vmem:[#allocation2] sm:$0xff] %v401
        %404 = vst [vmem:[#allocation2 + $0x8] sm:$0xff] %v402
        %v405 = vld [vmem:[%s305 + $0x10] sm:$0xff]
        %v406 = vld [vmem:[%s305 + $0x18] sm:$0xff]
        %v407 = vmul.f32 %v405, %v405
        %v408 = vmul.f32 %v406, %v406
        %v409 = vrot.slane %v407, 4
        %v410 = vadd.f32 %v407, %v409
        %v411 = vrot.slane %v410, 2
        %v412 = vadd.f32 %v410, %v411
        %v413 = vrot.slane %v412, 1
        %v414 = vadd.f32 %v412, %v413
        %v415 = vrot.slane %v408, 4
        %v416 = vadd.f32 %v408, %v415
        %v417 = vrot.slane %v416, 2
        %v418 = vadd.f32 %v416, %v417
        %v419 = vrot.slane %v418, 1
        %v420 = vadd.f32 %v418, %v419
        %v421 = vmax.f32 %v414, 1e-24
        %v422 = vmax.f32 %v420, 1e-24
        %v423 = vrsqrt.pop %v421
        %v424 = vmul.f32 %v423, %v421
        %v425 = vmul.f32 %v424, %v423
        %v426 = vmul.f32 0.5, %v425
        %v427 = vsub.f32 1.5, %v426
        %v428 = vmul.f32 %v423, %v427
        %vm429 = vweird.f32 %v421
        %vm430 = vweird.f32 %v423
        %vm431 = vmor %vm429, %vm430
        %v432 = vsel %vm431, %v423, %v428
        %v433 = vrsqrt.pop %v422
        %v434 = vmul.f32 %v433, %v422
        %v435 = vmul.f32 %v434, %v433
        %v436 = vmul.f32 0.5, %v435
        %v437 = vsub.f32 1.5, %v436
        %v438 = vmul.f32 %v433, %v437
        %vm439 = vweird.f32 %v422
        %vm440 = vweird.f32 %v433
        %vm441 = vmor %vm439, %vm440
        %v442 = vsel %vm441, %v433, %v438
        %v443 = vmul.f32 %v405, %v432
        %v444 = vmul.f32 %v406, %v442
        %445 = vst [vmem:[#allocation2 + $0x10] sm:$0xff] %v443
        %446 = vst [vmem:[#allocation2 + $0x18] sm:$0xff] %v444
        %v447 = vld [vmem:[%s305 + $0x20] sm:$0xff]
        %v448 = vld [vmem:[%s305 + $0x28] sm:$0xff]
        %v449 = vmul.f32 %v447, %v447
        %v450 = vmul.f32 %v448, %v448
        %v451 = vrot.slane %v449, 4
        %v452 = vadd.f32 %v449, %v451
        %v453 = vrot.slane %v452, 2
        %v454 = vadd.f32 %v452, %v453
        %v455 = vrot.slane %v454, 1
        %v456 = vadd.f32 %v454, %v455
        %v457 = vrot.slane %v450, 4
        %v458 = vadd.f32 %v450, %v457
        %v459 = vrot.slane %v458, 2
        %v460 = vadd.f32 %v458, %v459
        %v461 = vrot.slane %v460, 1
        %v462 = vadd.f32 %v460, %v461
        %v463 = vmax.f32 %v456, 1e-24
        %v464 = vmax.f32 %v462, 1e-24
        %v465 = vrsqrt.pop %v463
        %v466 = vmul.f32 %v465, %v463
        %v467 = vmul.f32 %v466, %v465
        %v468 = vmul.f32 0.5, %v467
        %v469 = vsub.f32 1.5, %v468
        %v470 = vmul.f32 %v465, %v469
        %vm471 = vweird.f32 %v463
        %vm472 = vweird.f32 %v465
        %vm473 = vmor %vm471, %vm472
        %v474 = vsel %vm473, %v465, %v470
        %v475 = vrsqrt.pop %v464
        %v476 = vmul.f32 %v475, %v464
        %v477 = vmul.f32 %v476, %v475
        %v478 = vmul.f32 0.5, %v477
        %v479 = vsub.f32 1.5, %v478
        %v480 = vmul.f32 %v475, %v479
        %vm481 = vweird.f32 %v464
        %vm482 = vweird.f32 %v475
        %vm483 = vmor %vm481, %vm482
        %v484 = vsel %vm483, %v475, %v480
        %v485 = vmul.f32 %v447, %v474
        %v486 = vmul.f32 %v448, %v484
        %487 = vst [vmem:[#allocation2 + $0x20] sm:$0xff] %v485
        %488 = vst [vmem:[#allocation2 + $0x28] sm:$0xff] %v486
        %v489 = vld [vmem:[%s305 + $0x30] sm:$0xff]
        %v490 = vld [vmem:[%s305 + $0x38] sm:$0xff]
        %v491 = vmul.f32 %v489, %v489
        %v492 = vmul.f32 %v490, %v490
        %v493 = vrot.slane %v491, 4
        %v494 = vadd.f32 %v491, %v493
        %v495 = vrot.slane %v494, 2
        %v496 = vadd.f32 %v494, %v495
        %v497 = vrot.slane %v496, 1
        %v498 = vadd.f32 %v496, %v497
        %v499 = vrot.slane %v492, 4
        %v500 = vadd.f32 %v492, %v499
        %v501 = vrot.slane %v500, 2
        %v502 = vadd.f32 %v500, %v501
        %v503 = vrot.slane %v502, 1
        %v504 = vadd.f32 %v502, %v503
        %v505 = vmax.f32 %v498, 1e-24
        %v506 = vmax.f32 %v504, 1e-24
        %v507 = vrsqrt.pop %v505
        %v508 = vmul.f32 %v507, %v505
        %v509 = vmul.f32 %v508, %v507
        %v510 = vmul.f32 0.5, %v509
        %v511 = vsub.f32 1.5, %v510
        %v512 = vmul.f32 %v507, %v511
        %vm513 = vweird.f32 %v505
        %vm514 = vweird.f32 %v507
        %vm515 = vmor %vm513, %vm514
        %v516 = vsel %vm515, %v507, %v512
        %v517 = vrsqrt.pop %v506
        %v518 = vmul.f32 %v517, %v506
        %v519 = vmul.f32 %v518, %v517
        %v520 = vmul.f32 0.5, %v519
        %v521 = vsub.f32 1.5, %v520
        %v522 = vmul.f32 %v517, %v521
        %vm523 = vweird.f32 %v506
        %vm524 = vweird.f32 %v517
        %vm525 = vmor %vm523, %vm524
        %v526 = vsel %vm525, %v517, %v522
        %v527 = vmul.f32 %v489, %v516
        %v528 = vmul.f32 %v490, %v526
        %529 = vst [vmem:[#allocation2 + $0x30] sm:$0xff] %v527
        %530 = vst [vmem:[#allocation2 + $0x38] sm:$0xff] %v528
        %v531 = vld [vmem:[#allocation2] sm:$0xff]
        %v532 = vld [vmem:[#allocation2 + $0x8] sm:$0xff]
        %v533 = vld [vmem:[#allocation2 + $0x10] sm:$0xff]
        %v534 = vld [vmem:[#allocation2 + $0x18] sm:$0xff]
        %v535 = vld [vmem:[#allocation2 + $0x20] sm:$0xff]
        %v536 = vld [vmem:[#allocation2 + $0x28] sm:$0xff]
        %v537 = vld [vmem:[#allocation2 + $0x30] sm:$0xff]
        %v538 = vld [vmem:[#allocation2 + $0x38] sm:$0xff]
        %v539 = vld [vmem:[#allocation6] sm:$0xff]
        %v540 = vld [vmem:[#allocation6 + $0x8] sm:$0xff]
        %v541 = vld [vmem:[#allocation6 + $0x10] sm:$0xff]
        %v542 = vld [vmem:[#allocation6 + $0x18] sm:$0xff]
        %v543 = vld [vmem:[#allocation6 + $0x20] sm:$0xff]
        %v544 = vld [vmem:[#allocation6 + $0x28] sm:$0xff]
        %v545 = vld [vmem:[#allocation6 + $0x30] sm:$0xff]
        %v546 = vld [vmem:[#allocation6 + $0x38] sm:$0xff]
        %v547 = vld [vmem:[#allocation6 + $0x40] sm:$0xff]
        %v548 = vld [vmem:[#allocation6 + $0x48] sm:$0xff]
        %v549 = vld [vmem:[#allocation6 + $0x50] sm:$0xff]
        %v550 = vld [vmem:[#allocation6 + $0x58] sm:$0xff]
        %v551 = vld [vmem:[#allocation6 + $0x60] sm:$0xff]
        %v552 = vld [vmem:[#allocation6 + $0x68] sm:$0xff]
        %v553 = vld [vmem:[#allocation6 + $0x70] sm:$0xff]
        %v554 = vld [vmem:[#allocation6 + $0x78] sm:$0xff]
        %555 = vxpose.xlu0.b32.start [1/16] %v531, 128
        %556 = vxpose.xlu0.b32.cont [2/16] %v533, 128
        %557 = vxpose.xlu0.b32.cont [3/16] %v535, 128
        %558 = vxpose.xlu0.b32.cont [4/16] %v537, 128
        %559 = vxpose.xlu0.b32.cont [5/16] 0.0, 128
        %560 = vxpose.xlu0.b32.cont [6/16] 0.0, 128
        %561 = vxpose.xlu0.b32.cont [7/16] 0.0, 128
        %562 = vxpose.xlu0.b32.cont [8/16] 0.0, 128
        %563 = vxpose.xlu0.b32.cont [9/16] 0.0, 128
        %564 = vxpose.xlu0.b32.cont [10/16] 0.0, 128
        %565 = vxpose.xlu0.b32.cont [11/16] 0.0, 128
        %566 = vxpose.xlu0.b32.cont [12/16] 0.0, 128
        %567 = vxpose.xlu0.b32.cont [13/16] 0.0, 128
        %568 = vxpose.xlu0.b32.cont [14/16] 0.0, 128
        %569 = vxpose.xlu0.b32.cont [15/16] 0.0, 128
        %570 = vxpose.xlu0.b32.end [16/16] 0.0, 128
        %v571 = vpop.trf.xlu0
        %v572 = vpop.trf.xlu0
        %v573 = vpop.trf.xlu0
        %v574 = vpop.trf.xlu0
        %v575 = vpop.trf.xlu0
        %v576 = vpop.trf.xlu0
        %v577 = vpop.trf.xlu0
        %v578 = vpop.trf.xlu0
        %v579 = vpop.trf.xlu0
        %v580 = vpop.trf.xlu0
        %v581 = vpop.trf.xlu0
        %v582 = vpop.trf.xlu0
        %v583 = vpop.trf.xlu0
        %v584 = vpop.trf.xlu0
        %v585 = vpop.trf.xlu0
        %v586 = vpop.trf.xlu0
        %587 = vxpose.xlu0.b32.start [1/16] %v532, 128
        %588 = vxpose.xlu0.b32.cont [2/16] %v534, 128
        %589 = vxpose.xlu0.b32.cont [3/16] %v536, 128
        %590 = vxpose.xlu0.b32.cont [4/16] %v538, 128
        %591 = vxpose.xlu0.b32.cont [5/16] 0.0, 128
        %592 = vxpose.xlu0.b32.cont [6/16] 0.0, 128
        %593 = vxpose.xlu0.b32.cont [7/16] 0.0, 128
        %594 = vxpose.xlu0.b32.cont [8/16] 0.0, 128
        %595 = vxpose.xlu0.b32.cont [9/16] 0.0, 128
        %596 = vxpose.xlu0.b32.cont [10/16] 0.0, 128
        %597 = vxpose.xlu0.b32.cont [11/16] 0.0, 128
        %598 = vxpose.xlu0.b32.cont [12/16] 0.0, 128
        %599 = vxpose.xlu0.b32.cont [13/16] 0.0, 128
        %600 = vxpose.xlu0.b32.cont [14/16] 0.0, 128
        %601 = vxpose.xlu0.b32.cont [15/16] 0.0, 128
        %602 = vxpose.xlu0.b32.end [16/16] 0.0, 128
        %v603 = vpop.trf.xlu0
        %v604 = vpop.trf.xlu0
        %v605 = vpop.trf.xlu0
        %v606 = vpop.trf.xlu0
        %v607 = vpop.trf.xlu0
        %v608 = vpop.trf.xlu0
        %v609 = vpop.trf.xlu0
        %v610 = vpop.trf.xlu0
        %v611 = vpop.trf.xlu0
        %v612 = vpop.trf.xlu0
        %v613 = vpop.trf.xlu0
        %v614 = vpop.trf.xlu0
        %v615 = vpop.trf.xlu0
        %v616 = vpop.trf.xlu0
        %v617 = vpop.trf.xlu0
        %v618 = vpop.trf.xlu0
        %vm619 = vcmask 261120
        %v621 = vsel %vm619, %v571, 0
        %v624 = vsel %vm619, %v572, 0
        %v627 = vsel %vm619, %v573, 0
        %v630 = vsel %vm619, %v574, 0
        %v633 = vsel %vm619, %v575, 0
        %v636 = vsel %vm619, %v576, 0
        %v639 = vsel %vm619, %v577, 0
        %v642 = vsel %vm619, %v578, 0
        %v645 = vsel %vm619, %v579, 0
        %v648 = vsel %vm619, %v580, 0
        %v651 = vsel %vm619, %v581, 0
        %v654 = vsel %vm619, %v582, 0
        %v657 = vsel %vm619, %v583, 0
        %v660 = vsel %vm619, %v584, 0
        %v663 = vsel %vm619, %v585, 0
        %v666 = vsel %vm619, %v586, 0
        %v669 = vsel %vm619, %v603, 0
        %v672 = vsel %vm619, %v604, 0
        %v675 = vsel %vm619, %v605, 0
        %v678 = vsel %vm619, %v606, 0
        %v681 = vsel %vm619, %v607, 0
        %v684 = vsel %vm619, %v608, 0
        %v687 = vsel %vm619, %v609, 0
        %v690 = vsel %vm619, %v610, 0
        %v693 = vsel %vm619, %v611, 0
        %v696 = vsel %vm619, %v612, 0
        %v699 = vsel %vm619, %v613, 0
        %v702 = vsel %vm619, %v614, 0
        %v705 = vsel %vm619, %v615, 0
        %v708 = vsel %vm619, %v616, 0
        %v711 = vsel %vm619, %v617, 0
        %v714 = vsel %vm619, %v618, 0
        %716 = vmatpush.msra.mxu0 0.0
        %717 = vmatpush.msra.mxu0 0.0
        %718 = vmatpush.msra.mxu0 0.0
        %719 = vmatpush.msra.mxu0 0.0
        %720 = vmatpush.msra.mxu0 0.0
        %721 = vmatpush.msra.mxu0 0.0
        %722 = vmatpush.msra.mxu0 0.0
        %723 = vmatpush.msra.mxu0 0.0
        %724 = vmatpush.msra.mxu0 0.0
        %725 = vmatpush.msra.mxu0 0.0
        %726 = vmatpush.msra.mxu0 0.0
        %727 = vmatpush.msra.mxu0 0.0
        %728 = vmatpush.msra.mxu0 %v551
        %729 = vmatpush.msra.mxu0 %v547
        %730 = vmatpush.msra.mxu0 %v543
        %731 = vmatpush.msra.mxu0 %v539
        %732 = vmatmul.f32.gmra.mxu0 %v621
        %v733 = vpop.f32.mrf.mxu0
        %v734 = vadd.f32 0.0, %v733
        %735 = vmatmul.f32.gmra.mxu0 %v624
        %v736 = vpop.f32.mrf.mxu0
        %v737 = vadd.f32 0.0, %v736
        %738 = vmatmul.f32.gmra.mxu0 %v627
        %v739 = vpop.f32.mrf.mxu0
        %v740 = vadd.f32 0.0, %v739
        %741 = vmatmul.f32.gmra.mxu0 %v630
        %v742 = vpop.f32.mrf.mxu0
        %v743 = vadd.f32 0.0, %v742
        %744 = vmatmul.f32.gmra.mxu0 %v633
        %v745 = vpop.f32.mrf.mxu0
        %v746 = vadd.f32 0.0, %v745
        %747 = vmatmul.f32.gmra.mxu0 %v636
        %v748 = vpop.f32.mrf.mxu0
        %v749 = vadd.f32 0.0, %v748
        %750 = vmatmul.f32.gmra.mxu0 %v639
        %v751 = vpop.f32.mrf.mxu0
        %v752 = vadd.f32 0.0, %v751
        %753 = vmatmul.f32.gmra.mxu0 %v642
        %v754 = vpop.f32.mrf.mxu0
        %v755 = vadd.f32 0.0, %v754
        %756 = vmatmul.f32.gmra.mxu0 %v645
        %v757 = vpop.f32.mrf.mxu0
        %v758 = vadd.f32 0.0, %v757
        %759 = vmatmul.f32.gmra.mxu0 %v648
        %v760 = vpop.f32.mrf.mxu0
        %v761 = vadd.f32 0.0, %v760
        %762 = vmatmul.f32.gmra.mxu0 %v651
        %v763 = vpop.f32.mrf.mxu0
        %v764 = vadd.f32 0.0, %v763
        %765 = vmatmul.f32.gmra.mxu0 %v654
        %v766 = vpop.f32.mrf.mxu0
        %v767 = vadd.f32 0.0, %v766
        %768 = vmatmul.f32.gmra.mxu0 %v657
        %v769 = vpop.f32.mrf.mxu0
        %v770 = vadd.f32 0.0, %v769
        %771 = vmatmul.f32.gmra.mxu0 %v660
        %v772 = vpop.f32.mrf.mxu0
        %v773 = vadd.f32 0.0, %v772
        %774 = vmatmul.f32.gmra.mxu0 %v663
        %v775 = vpop.f32.mrf.mxu0
        %v776 = vadd.f32 0.0, %v775
        %777 = vmatmul.f32.gmra.mxu0 %v666
        %v778 = vpop.f32.mrf.mxu0
        %v779 = vadd.f32 0.0, %v778
        %780 = vmatmul.f32.gmra.mxu0 %v669
        %v781 = vpop.f32.mrf.mxu0
        %v782 = vadd.f32 0.0, %v781
        %783 = vmatmul.f32.gmra.mxu0 %v672
        %v784 = vpop.f32.mrf.mxu0
        %v785 = vadd.f32 0.0, %v784
        %786 = vmatmul.f32.gmra.mxu0 %v675
        %v787 = vpop.f32.mrf.mxu0
        %v788 = vadd.f32 0.0, %v787
        %789 = vmatmul.f32.gmra.mxu0 %v678
        %v790 = vpop.f32.mrf.mxu0
        %v791 = vadd.f32 0.0, %v790
        %792 = vmatmul.f32.gmra.mxu0 %v681
        %v793 = vpop.f32.mrf.mxu0
        %v794 = vadd.f32 0.0, %v793
        %795 = vmatmul.f32.gmra.mxu0 %v684
        %v796 = vpop.f32.mrf.mxu0
        %v797 = vadd.f32 0.0, %v796
        %798 = vmatmul.f32.gmra.mxu0 %v687
        %v799 = vpop.f32.mrf.mxu0
        %v800 = vadd.f32 0.0, %v799
        %801 = vmatmul.f32.gmra.mxu0 %v690
        %v802 = vpop.f32.mrf.mxu0
        %v803 = vadd.f32 0.0, %v802
        %804 = vmatmul.f32.gmra.mxu0 %v693
        %v805 = vpop.f32.mrf.mxu0
        %v806 = vadd.f32 0.0, %v805
        %807 = vmatmul.f32.gmra.mxu0 %v696
        %v808 = vpop.f32.mrf.mxu0
        %v809 = vadd.f32 0.0, %v808
        %810 = vmatmul.f32.gmra.mxu0 %v699
        %v811 = vpop.f32.mrf.mxu0
        %v812 = vadd.f32 0.0, %v811
        %813 = vmatmul.f32.gmra.mxu0 %v702
        %v814 = vpop.f32.mrf.mxu0
        %v815 = vadd.f32 0.0, %v814
        %816 = vmatmul.f32.gmra.mxu0 %v705
        %v817 = vpop.f32.mrf.mxu0
        %v818 = vadd.f32 0.0, %v817
        %819 = vmatmul.f32.gmra.mxu0 %v708
        %v820 = vpop.f32.mrf.mxu0
        %v821 = vadd.f32 0.0, %v820
        %822 = vmatmul.f32.gmra.mxu0 %v711
        %v823 = vpop.f32.mrf.mxu0
        %v824 = vadd.f32 0.0, %v823
        %825 = vmatmul.f32.gmra.mxu0 %v714
        %v826 = vpop.f32.mrf.mxu0
        %v827 = vadd.f32 0.0, %v826
        %828 = vdwg.mxu0
        %829 = vmatpush.msra.mxu0 0.0
        %830 = vmatpush.msra.mxu0 0.0
        %831 = vmatpush.msra.mxu0 0.0
        %832 = vmatpush.msra.mxu0 0.0
        %833 = vmatpush.msra.mxu0 0.0
        %834 = vmatpush.msra.mxu0 0.0
        %835 = vmatpush.msra.mxu0 0.0
        %836 = vmatpush.msra.mxu0 0.0
        %837 = vmatpush.msra.mxu0 0.0
        %838 = vmatpush.msra.mxu0 0.0
        %839 = vmatpush.msra.mxu0 0.0
        %840 = vmatpush.msra.mxu0 0.0
        %841 = vmatpush.msra.mxu0 %v552
        %842 = vmatpush.msra.mxu0 %v548
        %843 = vmatpush.msra.mxu0 %v544
        %844 = vmatpush.msra.mxu0 %v540
        %845 = vmatmul.f32.gmra.mxu0 %v621
        %v846 = vpop.f32.mrf.mxu0
        %v847 = vadd.f32 0.0, %v846
        %848 = vmatmul.f32.gmra.mxu0 %v624
        %v849 = vpop.f32.mrf.mxu0
        %v850 = vadd.f32 0.0, %v849
        %851 = vmatmul.f32.gmra.mxu0 %v627
        %v852 = vpop.f32.mrf.mxu0
        %v853 = vadd.f32 0.0, %v852
        %854 = vmatmul.f32.gmra.mxu0 %v630
        %v855 = vpop.f32.mrf.mxu0
        %v856 = vadd.f32 0.0, %v855
        %857 = vmatmul.f32.gmra.mxu0 %v633
        %v858 = vpop.f32.mrf.mxu0
        %v859 = vadd.f32 0.0, %v858
        %860 = vmatmul.f32.gmra.mxu0 %v636
        %v861 = vpop.f32.mrf.mxu0
        %v862 = vadd.f32 0.0, %v861
        %863 = vmatmul.f32.gmra.mxu0 %v639
        %v864 = vpop.f32.mrf.mxu0
        %v865 = vadd.f32 0.0, %v864
        %866 = vmatmul.f32.gmra.mxu0 %v642
        %v867 = vpop.f32.mrf.mxu0
        %v868 = vadd.f32 0.0, %v867
        %869 = vmatmul.f32.gmra.mxu0 %v645
        %v870 = vpop.f32.mrf.mxu0
        %v871 = vadd.f32 0.0, %v870
        %872 = vmatmul.f32.gmra.mxu0 %v648
        %v873 = vpop.f32.mrf.mxu0
        %v874 = vadd.f32 0.0, %v873
        %875 = vmatmul.f32.gmra.mxu0 %v651
        %v876 = vpop.f32.mrf.mxu0
        %v877 = vadd.f32 0.0, %v876
        %878 = vmatmul.f32.gmra.mxu0 %v654
        %v879 = vpop.f32.mrf.mxu0
        %v880 = vadd.f32 0.0, %v879
        %881 = vmatmul.f32.gmra.mxu0 %v657
        %v882 = vpop.f32.mrf.mxu0
        %v883 = vadd.f32 0.0, %v882
        %884 = vmatmul.f32.gmra.mxu0 %v660
        %v885 = vpop.f32.mrf.mxu0
        %v886 = vadd.f32 0.0, %v885
        %887 = vmatmul.f32.gmra.mxu0 %v663
        %v888 = vpop.f32.mrf.mxu0
        %v889 = vadd.f32 0.0, %v888
        %890 = vmatmul.f32.gmra.mxu0 %v666
        %v891 = vpop.f32.mrf.mxu0
        %v892 = vadd.f32 0.0, %v891
        %893 = vmatmul.f32.gmra.mxu0 %v669
        %v894 = vpop.f32.mrf.mxu0
        %v895 = vadd.f32 0.0, %v894
        %896 = vmatmul.f32.gmra.mxu0 %v672
        %v897 = vpop.f32.mrf.mxu0
        %v898 = vadd.f32 0.0, %v897
        %899 = vmatmul.f32.gmra.mxu0 %v675
        %v900 = vpop.f32.mrf.mxu0
        %v901 = vadd.f32 0.0, %v900
        %902 = vmatmul.f32.gmra.mxu0 %v678
        %v903 = vpop.f32.mrf.mxu0
        %v904 = vadd.f32 0.0, %v903
        %905 = vmatmul.f32.gmra.mxu0 %v681
        %v906 = vpop.f32.mrf.mxu0
        %v907 = vadd.f32 0.0, %v906
        %908 = vmatmul.f32.gmra.mxu0 %v684
        %v909 = vpop.f32.mrf.mxu0
        %v910 = vadd.f32 0.0, %v909
        %911 = vmatmul.f32.gmra.mxu0 %v687
        %v912 = vpop.f32.mrf.mxu0
        %v913 = vadd.f32 0.0, %v912
        %914 = vmatmul.f32.gmra.mxu0 %v690
        %v915 = vpop.f32.mrf.mxu0
        %v916 = vadd.f32 0.0, %v915
        %917 = vmatmul.f32.gmra.mxu0 %v693
        %v918 = vpop.f32.mrf.mxu0
        %v919 = vadd.f32 0.0, %v918
        %920 = vmatmul.f32.gmra.mxu0 %v696
        %v921 = vpop.f32.mrf.mxu0
        %v922 = vadd.f32 0.0, %v921
        %923 = vmatmul.f32.gmra.mxu0 %v699
        %v924 = vpop.f32.mrf.mxu0
        %v925 = vadd.f32 0.0, %v924
        %926 = vmatmul.f32.gmra.mxu0 %v702
        %v927 = vpop.f32.mrf.mxu0
        %v928 = vadd.f32 0.0, %v927
        %929 = vmatmul.f32.gmra.mxu0 %v705
        %v930 = vpop.f32.mrf.mxu0
        %v931 = vadd.f32 0.0, %v930
        %932 = vmatmul.f32.gmra.mxu0 %v708
        %v933 = vpop.f32.mrf.mxu0
        %v934 = vadd.f32 0.0, %v933
        %935 = vmatmul.f32.gmra.mxu0 %v711
        %v936 = vpop.f32.mrf.mxu0
        %v937 = vadd.f32 0.0, %v936
        %938 = vmatmul.f32.gmra.mxu0 %v714
        %v939 = vpop.f32.mrf.mxu0
        %v940 = vadd.f32 0.0, %v939
        %941 = vdwg.mxu0
        %942 = vmatpush.msra.mxu0 0.0
        %943 = vmatpush.msra.mxu0 0.0
        %944 = vmatpush.msra.mxu0 0.0
        %945 = vmatpush.msra.mxu0 0.0
        %946 = vmatpush.msra.mxu0 0.0
        %947 = vmatpush.msra.mxu0 0.0
        %948 = vmatpush.msra.mxu0 0.0
        %949 = vmatpush.msra.mxu0 0.0
        %950 = vmatpush.msra.mxu0 0.0
        %951 = vmatpush.msra.mxu0 0.0
        %952 = vmatpush.msra.mxu0 0.0
        %953 = vmatpush.msra.mxu0 0.0
        %954 = vmatpush.msra.mxu0 %v553
        %955 = vmatpush.msra.mxu0 %v549
        %956 = vmatpush.msra.mxu0 %v545
        %957 = vmatpush.msra.mxu0 %v541
        %958 = vmatmul.f32.gmra.mxu0 %v621
        %v959 = vpop.f32.mrf.mxu0
        %v960 = vadd.f32 0.0, %v959
        %961 = vmatmul.f32.gmra.mxu0 %v624
        %v962 = vpop.f32.mrf.mxu0
        %v963 = vadd.f32 0.0, %v962
        %964 = vmatmul.f32.gmra.mxu0 %v627
        %v965 = vpop.f32.mrf.mxu0
        %v966 = vadd.f32 0.0, %v965
        %967 = vmatmul.f32.gmra.mxu0 %v630
        %v968 = vpop.f32.mrf.mxu0
        %v969 = vadd.f32 0.0, %v968
        %970 = vmatmul.f32.gmra.mxu0 %v633
        %v971 = vpop.f32.mrf.mxu0
        %v972 = vadd.f32 0.0, %v971
        %973 = vmatmul.f32.gmra.mxu0 %v636
        %v974 = vpop.f32.mrf.mxu0
        %v975 = vadd.f32 0.0, %v974
        %976 = vmatmul.f32.gmra.mxu0 %v639
        %v977 = vpop.f32.mrf.mxu0
        %v978 = vadd.f32 0.0, %v977
        %979 = vmatmul.f32.gmra.mxu0 %v642
        %v980 = vpop.f32.mrf.mxu0
        %v981 = vadd.f32 0.0, %v980
        %982 = vmatmul.f32.gmra.mxu0 %v645
        %v983 = vpop.f32.mrf.mxu0
        %v984 = vadd.f32 0.0, %v983
        %985 = vmatmul.f32.gmra.mxu0 %v648
        %v986 = vpop.f32.mrf.mxu0
        %v987 = vadd.f32 0.0, %v986
        %988 = vmatmul.f32.gmra.mxu0 %v651
        %v989 = vpop.f32.mrf.mxu0
        %v990 = vadd.f32 0.0, %v989
        %991 = vmatmul.f32.gmra.mxu0 %v654
        %v992 = vpop.f32.mrf.mxu0
        %v993 = vadd.f32 0.0, %v992
        %994 = vmatmul.f32.gmra.mxu0 %v657
        %v995 = vpop.f32.mrf.mxu0
        %v996 = vadd.f32 0.0, %v995
        %997 = vmatmul.f32.gmra.mxu0 %v660
        %v998 = vpop.f32.mrf.mxu0
        %v999 = vadd.f32 0.0, %v998
        %1000 = vmatmul.f32.gmra.mxu0 %v663
        %v1001 = vpop.f32.mrf.mxu0
        %v1002 = vadd.f32 0.0, %v1001
        %1003 = vmatmul.f32.gmra.mxu0 %v666
        %v1004 = vpop.f32.mrf.mxu0
        %v1005 = vadd.f32 0.0, %v1004
        %1006 = vmatmul.f32.gmra.mxu0 %v669
        %v1007 = vpop.f32.mrf.mxu0
        %v1008 = vadd.f32 0.0, %v1007
        %1009 = vmatmul.f32.gmra.mxu0 %v672
        %v1010 = vpop.f32.mrf.mxu0
        %v1011 = vadd.f32 0.0, %v1010
        %1012 = vmatmul.f32.gmra.mxu0 %v675
        %v1013 = vpop.f32.mrf.mxu0
        %v1014 = vadd.f32 0.0, %v1013
        %1015 = vmatmul.f32.gmra.mxu0 %v678
        %v1016 = vpop.f32.mrf.mxu0
        %v1017 = vadd.f32 0.0, %v1016
        %1018 = vmatmul.f32.gmra.mxu0 %v681
        %v1019 = vpop.f32.mrf.mxu0
        %v1020 = vadd.f32 0.0, %v1019
        %1021 = vmatmul.f32.gmra.mxu0 %v684
        %v1022 = vpop.f32.mrf.mxu0
        %v1023 = vadd.f32 0.0, %v1022
        %1024 = vmatmul.f32.gmra.mxu0 %v687
        %v1025 = vpop.f32.mrf.mxu0
        %v1026 = vadd.f32 0.0, %v1025
        %1027 = vmatmul.f32.gmra.mxu0 %v690
        %v1028 = vpop.f32.mrf.mxu0
        %v1029 = vadd.f32 0.0, %v1028
        %1030 = vmatmul.f32.gmra.mxu0 %v693
        %v1031 = vpop.f32.mrf.mxu0
        %v1032 = vadd.f32 0.0, %v1031
        %1033 = vmatmul.f32.gmra.mxu0 %v696
        %v1034 = vpop.f32.mrf.mxu0
        %v1035 = vadd.f32 0.0, %v1034
        %1036 = vmatmul.f32.gmra.mxu0 %v699
        %v1037 = vpop.f32.mrf.mxu0
        %v1038 = vadd.f32 0.0, %v1037
        %1039 = vmatmul.f32.gmra.mxu0 %v702
        %v1040 = vpop.f32.mrf.mxu0
        %v1041 = vadd.f32 0.0, %v1040
        %1042 = vmatmul.f32.gmra.mxu0 %v705
        %v1043 = vpop.f32.mrf.mxu0
        %v1044 = vadd.f32 0.0, %v1043
        %1045 = vmatmul.f32.gmra.mxu0 %v708
        %v1046 = vpop.f32.mrf.mxu0
        %v1047 = vadd.f32 0.0, %v1046
        %1048 = vmatmul.f32.gmra.mxu0 %v711
        %v1049 = vpop.f32.mrf.mxu0
        %v1050 = vadd.f32 0.0, %v1049
        %1051 = vmatmul.f32.gmra.mxu0 %v714
        %v1052 = vpop.f32.mrf.mxu0
        %v1053 = vadd.f32 0.0, %v1052
        %1054 = vdwg.mxu0
        %1055 = vmatpush.msra.mxu0 0.0
        %1056 = vmatpush.msra.mxu0 0.0
        %1057 = vmatpush.msra.mxu0 0.0
        %1058 = vmatpush.msra.mxu0 0.0
        %1059 = vmatpush.msra.mxu0 0.0
        %1060 = vmatpush.msra.mxu0 0.0
        %1061 = vmatpush.msra.mxu0 0.0
        %1062 = vmatpush.msra.mxu0 0.0
        %1063 = vmatpush.msra.mxu0 0.0
        %1064 = vmatpush.msra.mxu0 0.0
        %1065 = vmatpush.msra.mxu0 0.0
        %1066 = vmatpush.msra.mxu0 0.0
        %1067 = vmatpush.msra.mxu0 %v554
        %1068 = vmatpush.msra.mxu0 %v550
        %1069 = vmatpush.msra.mxu0 %v546
        %1070 = vmatpush.msra.mxu0 %v542
        %1071 = vmatmul.f32.gmra.mxu0 %v621
        %v1072 = vpop.f32.mrf.mxu0
        %v1073 = vadd.f32 0.0, %v1072
        %1074 = vmatmul.f32.gmra.mxu0 %v624
        %v1075 = vpop.f32.mrf.mxu0
        %v1076 = vadd.f32 0.0, %v1075
        %1077 = vmatmul.f32.gmra.mxu0 %v627
        %v1078 = vpop.f32.mrf.mxu0
        %v1079 = vadd.f32 0.0, %v1078
        %1080 = vmatmul.f32.gmra.mxu0 %v630
        %v1081 = vpop.f32.mrf.mxu0
        %v1082 = vadd.f32 0.0, %v1081
        %1083 = vmatmul.f32.gmra.mxu0 %v633
        %v1084 = vpop.f32.mrf.mxu0
        %v1085 = vadd.f32 0.0, %v1084
        %1086 = vmatmul.f32.gmra.mxu0 %v636
        %v1087 = vpop.f32.mrf.mxu0
        %v1088 = vadd.f32 0.0, %v1087
        %1089 = vmatmul.f32.gmra.mxu0 %v639
        %v1090 = vpop.f32.mrf.mxu0
        %v1091 = vadd.f32 0.0, %v1090
        %1092 = vmatmul.f32.gmra.mxu0 %v642
        %v1093 = vpop.f32.mrf.mxu0
        %v1094 = vadd.f32 0.0, %v1093
        %1095 = vmatmul.f32.gmra.mxu0 %v645
        %v1096 = vpop.f32.mrf.mxu0
        %v1097 = vadd.f32 0.0, %v1096
        %1098 = vmatmul.f32.gmra.mxu0 %v648
        %v1099 = vpop.f32.mrf.mxu0
        %v1100 = vadd.f32 0.0, %v1099
        %1101 = vmatmul.f32.gmra.mxu0 %v651
        %v1102 = vpop.f32.mrf.mxu0
        %v1103 = vadd.f32 0.0, %v1102
        %1104 = vmatmul.f32.gmra.mxu0 %v654
        %v1105 = vpop.f32.mrf.mxu0
        %v1106 = vadd.f32 0.0, %v1105
        %1107 = vmatmul.f32.gmra.mxu0 %v657
        %v1108 = vpop.f32.mrf.mxu0
        %v1109 = vadd.f32 0.0, %v1108
        %1110 = vmatmul.f32.gmra.mxu0 %v660
        %v1111 = vpop.f32.mrf.mxu0
        %v1112 = vadd.f32 0.0, %v1111
        %1113 = vmatmul.f32.gmra.mxu0 %v663
        %v1114 = vpop.f32.mrf.mxu0
        %v1115 = vadd.f32 0.0, %v1114
        %1116 = vmatmul.f32.gmra.mxu0 %v666
        %v1117 = vpop.f32.mrf.mxu0
        %v1118 = vadd.f32 0.0, %v1117
        %1119 = vmatmul.f32.gmra.mxu0 %v669
        %v1120 = vpop.f32.mrf.mxu0
        %v1121 = vadd.f32 0.0, %v1120
        %1122 = vmatmul.f32.gmra.mxu0 %v672
        %v1123 = vpop.f32.mrf.mxu0
        %v1124 = vadd.f32 0.0, %v1123
        %1125 = vmatmul.f32.gmra.mxu0 %v675
        %v1126 = vpop.f32.mrf.mxu0
        %v1127 = vadd.f32 0.0, %v1126
        %1128 = vmatmul.f32.gmra.mxu0 %v678
        %v1129 = vpop.f32.mrf.mxu0
        %v1130 = vadd.f32 0.0, %v1129
        %1131 = vmatmul.f32.gmra.mxu0 %v681
        %v1132 = vpop.f32.mrf.mxu0
        %v1133 = vadd.f32 0.0, %v1132
        %1134 = vmatmul.f32.gmra.mxu0 %v684
        %v1135 = vpop.f32.mrf.mxu0
        %v1136 = vadd.f32 0.0, %v1135
        %1137 = vmatmul.f32.gmra.mxu0 %v687
        %v1138 = vpop.f32.mrf.mxu0
        %v1139 = vadd.f32 0.0, %v1138
        %1140 = vmatmul.f32.gmra.mxu0 %v690
        %v1141 = vpop.f32.mrf.mxu0
        %v1142 = vadd.f32 0.0, %v1141
        %1143 = vmatmul.f32.gmra.mxu0 %v693
        %v1144 = vpop.f32.mrf.mxu0
        %v1145 = vadd.f32 0.0, %v1144
        %1146 = vmatmul.f32.gmra.mxu0 %v696
        %v1147 = vpop.f32.mrf.mxu0
        %v1148 = vadd.f32 0.0, %v1147
        %1149 = vmatmul.f32.gmra.mxu0 %v699
        %v1150 = vpop.f32.mrf.mxu0
        %v1151 = vadd.f32 0.0, %v1150
        %1152 = vmatmul.f32.gmra.mxu0 %v702
        %v1153 = vpop.f32.mrf.mxu0
        %v1154 = vadd.f32 0.0, %v1153
        %1155 = vmatmul.f32.gmra.mxu0 %v705
        %v1156 = vpop.f32.mrf.mxu0
        %v1157 = vadd.f32 0.0, %v1156
        %1158 = vmatmul.f32.gmra.mxu0 %v708
        %v1159 = vpop.f32.mrf.mxu0
        %v1160 = vadd.f32 0.0, %v1159
        %1161 = vmatmul.f32.gmra.mxu0 %v711
        %v1162 = vpop.f32.mrf.mxu0
        %v1163 = vadd.f32 0.0, %v1162
        %1164 = vmatmul.f32.gmra.mxu0 %v714
        %v1165 = vpop.f32.mrf.mxu0
        %v1166 = vadd.f32 0.0, %v1165
        %1167 = vdwg.mxu0
        %v1168 = vld [vmem:[#allocation8] sm:$0xf]
        %v1170 = vperm.slane %v1168, 0
        %v1171 = vperm.slane %v1168, 1
        %v1172 = vperm.slane %v1168, 2
        %v1173 = vperm.slane %v1168, 3
        %v1178 = vsub.f32 %v734, %v1170
        %v1179 = vsub.f32 %v847, %v1171
        %v1180 = vsub.f32 %v960, %v1172
        %v1181 = vsub.f32 %v1073, %v1173
        %v1182 = vsub.f32 %v737, %v1170
        %v1183 = vsub.f32 %v850, %v1171
        %v1184 = vsub.f32 %v963, %v1172
        %v1185 = vsub.f32 %v1076, %v1173
        %v1186 = vsub.f32 %v740, %v1170
        %v1187 = vsub.f32 %v853, %v1171
        %v1188 = vsub.f32 %v966, %v1172
        %v1189 = vsub.f32 %v1079, %v1173
        %v1190 = vsub.f32 %v743, %v1170
        %v1191 = vsub.f32 %v856, %v1171
        %v1192 = vsub.f32 %v969, %v1172
        %v1193 = vsub.f32 %v1082, %v1173
        %v1194 = vsub.f32 %v746, %v1170
        %v1195 = vsub.f32 %v859, %v1171
        %v1196 = vsub.f32 %v972, %v1172
        %v1197 = vsub.f32 %v1085, %v1173
        %v1198 = vsub.f32 %v749, %v1170
        %v1199 = vsub.f32 %v862, %v1171
        %v1200 = vsub.f32 %v975, %v1172
        %v1201 = vsub.f32 %v1088, %v1173
        %v1202 = vsub.f32 %v752, %v1170
        %v1203 = vsub.f32 %v865, %v1171
        %v1204 = vsub.f32 %v978, %v1172
        %v1205 = vsub.f32 %v1091, %v1173
        %v1206 = vsub.f32 %v755, %v1170
        %v1207 = vsub.f32 %v868, %v1171
        %v1208 = vsub.f32 %v981, %v1172
        %v1209 = vsub.f32 %v1094, %v1173
        %v1210 = vsub.f32 %v758, %v1170
        %v1211 = vsub.f32 %v871, %v1171
        %v1212 = vsub.f32 %v984, %v1172
        %v1213 = vsub.f32 %v1097, %v1173
        %v1214 = vsub.f32 %v761, %v1170
        %v1215 = vsub.f32 %v874, %v1171
        %v1216 = vsub.f32 %v987, %v1172
        %v1217 = vsub.f32 %v1100, %v1173
        %v1218 = vsub.f32 %v764, %v1170
        %v1219 = vsub.f32 %v877, %v1171
        %v1220 = vsub.f32 %v990, %v1172
        %v1221 = vsub.f32 %v1103, %v1173
        %v1222 = vsub.f32 %v767, %v1170
        %v1223 = vsub.f32 %v880, %v1171
        %v1224 = vsub.f32 %v993, %v1172
        %v1225 = vsub.f32 %v1106, %v1173
        %v1226 = vsub.f32 %v770, %v1170
        %v1227 = vsub.f32 %v883, %v1171
        %v1228 = vsub.f32 %v996, %v1172
        %v1229 = vsub.f32 %v1109, %v1173
        %v1230 = vsub.f32 %v773, %v1170
        %v1231 = vsub.f32 %v886, %v1171
        %v1232 = vsub.f32 %v999, %v1172
        %v1233 = vsub.f32 %v1112, %v1173
        %v1234 = vsub.f32 %v776, %v1170
        %v1235 = vsub.f32 %v889, %v1171
        %v1236 = vsub.f32 %v1002, %v1172
        %v1237 = vsub.f32 %v1115, %v1173
        %v1238 = vsub.f32 %v779, %v1170
        %v1239 = vsub.f32 %v892, %v1171
        %v1240 = vsub.f32 %v1005, %v1172
        %v1241 = vsub.f32 %v1118, %v1173
        %v1242 = vsub.f32 %v782, %v1170
        %v1243 = vsub.f32 %v895, %v1171
        %v1244 = vsub.f32 %v1008, %v1172
        %v1245 = vsub.f32 %v1121, %v1173
        %v1246 = vsub.f32 %v785, %v1170
        %v1247 = vsub.f32 %v898, %v1171
        %v1248 = vsub.f32 %v1011, %v1172
        %v1249 = vsub.f32 %v1124, %v1173
        %v1250 = vsub.f32 %v788, %v1170
        %v1251 = vsub.f32 %v901, %v1171
        %v1252 = vsub.f32 %v1014, %v1172
        %v1253 = vsub.f32 %v1127, %v1173
        %v1254 = vsub.f32 %v791, %v1170
        %v1255 = vsub.f32 %v904, %v1171
        %v1256 = vsub.f32 %v1017, %v1172
        %v1257 = vsub.f32 %v1130, %v1173
        %v1258 = vsub.f32 %v794, %v1170
        %v1259 = vsub.f32 %v907, %v1171
        %v1260 = vsub.f32 %v1020, %v1172
        %v1261 = vsub.f32 %v1133, %v1173
        %v1262 = vsub.f32 %v797, %v1170
        %v1263 = vsub.f32 %v910, %v1171
        %v1264 = vsub.f32 %v1023, %v1172
        %v1265 = vsub.f32 %v1136, %v1173
        %v1266 = vsub.f32 %v800, %v1170
        %v1267 = vsub.f32 %v913, %v1171
        %v1268 = vsub.f32 %v1026, %v1172
        %v1269 = vsub.f32 %v1139, %v1173
        %v1270 = vsub.f32 %v803, %v1170
        %v1271 = vsub.f32 %v916, %v1171
        %v1272 = vsub.f32 %v1029, %v1172
        %v1273 = vsub.f32 %v1142, %v1173
        %v1274 = vsub.f32 %v806, %v1170
        %v1275 = vsub.f32 %v919, %v1171
        %v1276 = vsub.f32 %v1032, %v1172
        %v1277 = vsub.f32 %v1145, %v1173
        %v1278 = vsub.f32 %v809, %v1170
        %v1279 = vsub.f32 %v922, %v1171
        %v1280 = vsub.f32 %v1035, %v1172
        %v1281 = vsub.f32 %v1148, %v1173
        %v1282 = vsub.f32 %v812, %v1170
        %v1283 = vsub.f32 %v925, %v1171
        %v1284 = vsub.f32 %v1038, %v1172
        %v1285 = vsub.f32 %v1151, %v1173
        %v1286 = vsub.f32 %v815, %v1170
        %v1287 = vsub.f32 %v928, %v1171
        %v1288 = vsub.f32 %v1041, %v1172
        %v1289 = vsub.f32 %v1154, %v1173
        %v1290 = vsub.f32 %v818, %v1170
        %v1291 = vsub.f32 %v931, %v1171
        %v1292 = vsub.f32 %v1044, %v1172
        %v1293 = vsub.f32 %v1157, %v1173
        %v1294 = vsub.f32 %v821, %v1170
        %v1295 = vsub.f32 %v934, %v1171
        %v1296 = vsub.f32 %v1047, %v1172
        %v1297 = vsub.f32 %v1160, %v1173
        %v1298 = vsub.f32 %v824, %v1170
        %v1299 = vsub.f32 %v937, %v1171
        %v1300 = vsub.f32 %v1050, %v1172
        %v1301 = vsub.f32 %v1163, %v1173
        %v1302 = vsub.f32 %v827, %v1170
        %v1303 = vsub.f32 %v940, %v1171
        %v1304 = vsub.f32 %v1053, %v1172
        %v1305 = vsub.f32 %v1166, %v1173
        %v1306 = vlaneseq
        %v1307 = vand.u32 %v1306, 127
        %1308 = vmax.xlane.f32.xlu0 %v1178
        %v1309 = vpop.xlane.xlu0 %1308
        %1310 = vmax.xlane.f32.xlu0 %v1182
        %v1311 = vpop.xlane.xlu0 %1310
        %1312 = vmax.xlane.f32.xlu0 %v1186
        %v1313 = vpop.xlane.xlu0 %1312
        %1314 = vmax.xlane.f32.xlu0 %v1190
        %v1315 = vpop.xlane.xlu0 %1314
        %1316 = vmax.xlane.f32.xlu0 %v1194
        %v1317 = vpop.xlane.xlu0 %1316
        %1318 = vmax.xlane.f32.xlu0 %v1198
        %v1319 = vpop.xlane.xlu0 %1318
        %1320 = vmax.xlane.f32.xlu0 %v1202
        %v1321 = vpop.xlane.xlu0 %1320
        %1322 = vmax.xlane.f32.xlu0 %v1206
        %v1323 = vpop.xlane.xlu0 %1322
        %1324 = vmax.xlane.f32.xlu0 %v1210
        %v1325 = vpop.xlane.xlu0 %1324
        %1326 = vmax.xlane.f32.xlu0 %v1214
        %v1327 = vpop.xlane.xlu0 %1326
        %1328 = vmax.xlane.f32.xlu0 %v1218
        %v1329 = vpop.xlane.xlu0 %1328
        %1330 = vmax.xlane.f32.xlu0 %v1222
        %v1331 = vpop.xlane.xlu0 %1330
        %1332 = vmax.xlane.f32.xlu0 %v1226
        %v1333 = vpop.xlane.xlu0 %1332
        %1334 = vmax.xlane.f32.xlu0 %v1230
        %v1335 = vpop.xlane.xlu0 %1334
        %1336 = vmax.xlane.f32.xlu0 %v1234
        %v1337 = vpop.xlane.xlu0 %1336
        %1338 = vmax.xlane.f32.xlu0 %v1238
        %v1339 = vpop.xlane.xlu0 %1338
        %1340 = vmax.xlane.f32.xlu0 %v1242
        %v1341 = vpop.xlane.xlu0 %1340
        %1342 = vmax.xlane.f32.xlu0 %v1246
        %v1343 = vpop.xlane.xlu0 %1342
        %1344 = vmax.xlane.f32.xlu0 %v1250
        %v1345 = vpop.xlane.xlu0 %1344
        %1346 = vmax.xlane.f32.xlu0 %v1254
        %v1347 = vpop.xlane.xlu0 %1346
        %1348 = vmax.xlane.f32.xlu0 %v1258
        %v1349 = vpop.xlane.xlu0 %1348
        %1350 = vmax.xlane.f32.xlu0 %v1262
        %v1351 = vpop.xlane.xlu0 %1350
        %1352 = vmax.xlane.f32.xlu0 %v1266
        %v1353 = vpop.xlane.xlu0 %1352
        %1354 = vmax.xlane.f32.xlu0 %v1270
        %v1355 = vpop.xlane.xlu0 %1354
        %1356 = vmax.xlane.f32.xlu0 %v1274
        %v1357 = vpop.xlane.xlu0 %1356
        %1358 = vmax.xlane.f32.xlu0 %v1278
        %v1359 = vpop.xlane.xlu0 %1358
        %1360 = vmax.xlane.f32.xlu0 %v1282
        %v1361 = vpop.xlane.xlu0 %1360
        %1362 = vmax.xlane.f32.xlu0 %v1286
        %v1363 = vpop.xlane.xlu0 %1362
        %1364 = vmax.xlane.f32.xlu0 %v1290
        %v1365 = vpop.xlane.xlu0 %1364
        %1366 = vmax.xlane.f32.xlu0 %v1294
        %v1367 = vpop.xlane.xlu0 %1366
        %1368 = vmax.xlane.f32.xlu0 %v1298
        %v1369 = vpop.xlane.xlu0 %1368
        %1370 = vmax.xlane.f32.xlu0 %v1302
        %v1371 = vpop.xlane.xlu0 %1370
        %v1372 = vsub.f32 %v1178, %v1309
        %v1373 = vsub.f32 %v1182, %v1311
        %v1374 = vsub.f32 %v1186, %v1313
        %v1375 = vsub.f32 %v1190, %v1315
        %v1376 = vsub.f32 %v1194, %v1317
        %v1377 = vsub.f32 %v1198, %v1319
        %v1378 = vsub.f32 %v1202, %v1321
        %v1379 = vsub.f32 %v1206, %v1323
        %v1380 = vsub.f32 %v1210, %v1325
        %v1381 = vsub.f32 %v1214, %v1327
        %v1382 = vsub.f32 %v1218, %v1329
        %v1383 = vsub.f32 %v1222, %v1331
        %v1384 = vsub.f32 %v1226, %v1333
        %v1385 = vsub.f32 %v1230, %v1335
        %v1386 = vsub.f32 %v1234, %v1337
        %v1387 = vsub.f32 %v1238, %v1339
        %v1388 = vsub.f32 %v1242, %v1341
        %v1389 = vsub.f32 %v1246, %v1343
        %v1390 = vsub.f32 %v1250, %v1345
        %v1391 = vsub.f32 %v1254, %v1347
        %v1392 = vsub.f32 %v1258, %v1349
        %v1393 = vsub.f32 %v1262, %v1351
        %v1394 = vsub.f32 %v1266, %v1353
        %v1395 = vsub.f32 %v1270, %v1355
        %v1396 = vsub.f32 %v1274, %v1357
        %v1397 = vsub.f32 %v1278, %v1359
        %v1398 = vsub.f32 %v1282, %v1361
        %v1399 = vsub.f32 %v1286, %v1363
        %v1400 = vsub.f32 %v1290, %v1365
        %v1401 = vsub.f32 %v1294, %v1367
        %v1402 = vsub.f32 %v1298, %v1369
        %v1403 = vsub.f32 %v1302, %v1371
        %v1404 = vmul.f32 %v1372, 1.442695
        %v1405 = vpow.pop %v1404
        %v1406 = vmul.f32 %v1373, 1.442695
        %v1407 = vpow.pop %v1406
        %v1408 = vmul.f32 %v1374, 1.442695
        %v1409 = vpow.pop %v1408
        %v1410 = vmul.f32 %v1375, 1.442695
        %v1411 = vpow.pop %v1410
        %v1412 = vmul.f32 %v1376, 1.442695
        %v1413 = vpow.pop %v1412
        %v1414 = vmul.f32 %v1377, 1.442695
        %v1415 = vpow.pop %v1414
        %v1416 = vmul.f32 %v1378, 1.442695
        %v1417 = vpow.pop %v1416
        %v1418 = vmul.f32 %v1379, 1.442695
        %v1419 = vpow.pop %v1418
        %v1420 = vmul.f32 %v1380, 1.442695
        %v1421 = vpow.pop %v1420
        %v1422 = vmul.f32 %v1381, 1.442695
        %v1423 = vpow.pop %v1422
        %v1424 = vmul.f32 %v1382, 1.442695
        %v1425 = vpow.pop %v1424
        %v1426 = vmul.f32 %v1383, 1.442695
        %v1427 = vpow.pop %v1426
        %v1428 = vmul.f32 %v1384, 1.442695
        %v1429 = vpow.pop %v1428
        %v1430 = vmul.f32 %v1385, 1.442695
        %v1431 = vpow.pop %v1430
        %v1432 = vmul.f32 %v1386, 1.442695
        %v1433 = vpow.pop %v1432
        %v1434 = vmul.f32 %v1387, 1.442695
        %v1435 = vpow.pop %v1434
        %v1436 = vmul.f32 %v1388, 1.442695
        %v1437 = vpow.pop %v1436
        %v1438 = vmul.f32 %v1389, 1.442695
        %v1439 = vpow.pop %v1438
        %v1440 = vmul.f32 %v1390, 1.442695
        %v1441 = vpow.pop %v1440
        %v1442 = vmul.f32 %v1391, 1.442695
        %v1443 = vpow.pop %v1442
        %v1444 = vmul.f32 %v1392, 1.442695
        %v1445 = vpow.pop %v1444
        %v1446 = vmul.f32 %v1393, 1.442695
        %v1447 = vpow.pop %v1446
        %v1448 = vmul.f32 %v1394, 1.442695
        %v1449 = vpow.pop %v1448
        %v1450 = vmul.f32 %v1395, 1.442695
        %v1451 = vpow.pop %v1450
        %v1452 = vmul.f32 %v1396, 1.442695
        %v1453 = vpow.pop %v1452
        %v1454 = vmul.f32 %v1397, 1.442695
        %v1455 = vpow.pop %v1454
        %v1456 = vmul.f32 %v1398, 1.442695
        %v1457 = vpow.pop %v1456
        %v1458 = vmul.f32 %v1399, 1.442695
        %v1459 = vpow.pop %v1458
        %v1460 = vmul.f32 %v1400, 1.442695
        %v1461 = vpow.pop %v1460
        %v1462 = vmul.f32 %v1401, 1.442695
        %v1463 = vpow.pop %v1462
        %v1464 = vmul.f32 %v1402, 1.442695
        %v1465 = vpow.pop %v1464
        %v1466 = vmul.f32 %v1403, 1.442695
        %v1467 = vpow.pop %v1466
        %1468 = vadd.xlane.f32.xlu0 %v1405
        %v1469 = vpop.xlane.xlu0 %1468
        %1470 = vadd.xlane.f32.xlu0 %v1407
        %v1471 = vpop.xlane.xlu0 %1470
        %1472 = vadd.xlane.f32.xlu0 %v1409
        %v1473 = vpop.xlane.xlu0 %1472
        %1474 = vadd.xlane.f32.xlu0 %v1411
        %v1475 = vpop.xlane.xlu0 %1474
        %1476 = vadd.xlane.f32.xlu0 %v1413
        %v1477 = vpop.xlane.xlu0 %1476
        %1478 = vadd.xlane.f32.xlu0 %v1415
        %v1479 = vpop.xlane.xlu0 %1478
        %1480 = vadd.xlane.f32.xlu0 %v1417
        %v1481 = vpop.xlane.xlu0 %1480
        %1482 = vadd.xlane.f32.xlu0 %v1419
        %v1483 = vpop.xlane.xlu0 %1482
        %1484 = vadd.xlane.f32.xlu0 %v1421
        %v1485 = vpop.xlane.xlu0 %1484
        %1486 = vadd.xlane.f32.xlu0 %v1423
        %v1487 = vpop.xlane.xlu0 %1486
        %1488 = vadd.xlane.f32.xlu0 %v1425
        %v1489 = vpop.xlane.xlu0 %1488
        %1490 = vadd.xlane.f32.xlu0 %v1427
        %v1491 = vpop.xlane.xlu0 %1490
        %1492 = vadd.xlane.f32.xlu0 %v1429
        %v1493 = vpop.xlane.xlu0 %1492
        %1494 = vadd.xlane.f32.xlu0 %v1431
        %v1495 = vpop.xlane.xlu0 %1494
        %1496 = vadd.xlane.f32.xlu0 %v1433
        %v1497 = vpop.xlane.xlu0 %1496
        %1498 = vadd.xlane.f32.xlu0 %v1435
        %v1499 = vpop.xlane.xlu0 %1498
        %1500 = vadd.xlane.f32.xlu0 %v1437
        %v1501 = vpop.xlane.xlu0 %1500
        %1502 = vadd.xlane.f32.xlu0 %v1439
        %v1503 = vpop.xlane.xlu0 %1502
        %1504 = vadd.xlane.f32.xlu0 %v1441
        %v1505 = vpop.xlane.xlu0 %1504
        %1506 = vadd.xlane.f32.xlu0 %v1443
        %v1507 = vpop.xlane.xlu0 %1506
        %1508 = vadd.xlane.f32.xlu0 %v1445
        %v1509 = vpop.xlane.xlu0 %1508
        %1510 = vadd.xlane.f32.xlu0 %v1447
        %v1511 = vpop.xlane.xlu0 %1510
        %1512 = vadd.xlane.f32.xlu0 %v1449
        %v1513 = vpop.xlane.xlu0 %1512
        %1514 = vadd.xlane.f32.xlu0 %v1451
        %v1515 = vpop.xlane.xlu0 %1514
        %1516 = vadd.xlane.f32.xlu0 %v1453
        %v1517 = vpop.xlane.xlu0 %1516
        %1518 = vadd.xlane.f32.xlu0 %v1455
        %v1519 = vpop.xlane.xlu0 %1518
        %1520 = vadd.xlane.f32.xlu0 %v1457
        %v1521 = vpop.xlane.xlu0 %1520
        %1522 = vadd.xlane.f32.xlu0 %v1459
        %v1523 = vpop.xlane.xlu0 %1522
        %1524 = vadd.xlane.f32.xlu0 %v1461
        %v1525 = vpop.xlane.xlu0 %1524
        %1526 = vadd.xlane.f32.xlu0 %v1463
        %v1527 = vpop.xlane.xlu0 %1526
        %1528 = vadd.xlane.f32.xlu0 %v1465
        %v1529 = vpop.xlane.xlu0 %1528
        %1530 = vadd.xlane.f32.xlu0 %v1467
        %v1531 = vpop.xlane.xlu0 %1530
        %v1532 = vrcp.pop %v1469
        %v1533 = vrcp.pop %v1471
        %v1534 = vrcp.pop %v1473
        %v1535 = vrcp.pop %v1475
        %v1536 = vrcp.pop %v1477
        %v1537 = vrcp.pop %v1479
        %v1538 = vrcp.pop %v1481
        %v1539 = vrcp.pop %v1483
        %v1540 = vrcp.pop %v1485
        %v1541 = vrcp.pop %v1487
        %v1542 = vrcp.pop %v1489
        %v1543 = vrcp.pop %v1491
        %v1544 = vrcp.pop %v1493
        %v1545 = vrcp.pop %v1495
        %v1546 = vrcp.pop %v1497
        %v1547 = vrcp.pop %v1499
        %v1548 = vrcp.pop %v1501
        %v1549 = vrcp.pop %v1503
        %v1550 = vrcp.pop %v1505
        %v1551 = vrcp.pop %v1507
        %v1552 = vrcp.pop %v1509
        %v1553 = vrcp.pop %v1511
        %v1554 = vrcp.pop %v1513
        %v1555 = vrcp.pop %v1515
        %v1556 = vrcp.pop %v1517
        %v1557 = vrcp.pop %v1519
        %v1558 = vrcp.pop %v1521
        %v1559 = vrcp.pop %v1523
        %v1560 = vrcp.pop %v1525
        %v1561 = vrcp.pop %v1527
        %v1562 = vrcp.pop %v1529
        %v1563 = vrcp.pop %v1531
        %v1564 = vmul.f32 %v1405, %v1532
        %v1565 = vmul.f32 %v1407, %v1533
        %v1566 = vmul.f32 %v1409, %v1534
        %v1567 = vmul.f32 %v1411, %v1535
        %v1568 = vmul.f32 %v1413, %v1536
        %v1569 = vmul.f32 %v1415, %v1537
        %v1570 = vmul.f32 %v1417, %v1538
        %v1571 = vmul.f32 %v1419, %v1539
        %v1572 = vmul.f32 %v1421, %v1540
        %v1573 = vmul.f32 %v1423, %v1541
        %v1574 = vmul.f32 %v1425, %v1542
        %v1575 = vmul.f32 %v1427, %v1543
        %v1576 = vmul.f32 %v1429, %v1544
        %v1577 = vmul.f32 %v1431, %v1545
        %v1578 = vmul.f32 %v1433, %v1546
        %v1579 = vmul.f32 %v1435, %v1547
        %v1580 = vmul.f32 %v1437, %v1548
        %v1581 = vmul.f32 %v1439, %v1549
        %v1582 = vmul.f32 %v1441, %v1550
        %v1583 = vmul.f32 %v1443, %v1551
        %v1584 = vmul.f32 %v1445, %v1552
        %v1585 = vmul.f32 %v1447, %v1553
        %v1586 = vmul.f32 %v1449, %v1554
        %v1587 = vmul.f32 %v1451, %v1555
        %v1588 = vmul.f32 %v1453, %v1556
        %v1589 = vmul.f32 %v1455, %v1557
        %v1590 = vmul.f32 %v1457, %v1558
        %v1591 = vmul.f32 %v1459, %v1559
        %v1592 = vmul.f32 %v1461, %v1560
        %v1593 = vmul.f32 %v1463, %v1561
        %v1594 = vmul.f32 %v1465, %v1562
        %v1595 = vmul.f32 %v1467, %v1563
        %vm1596 = vcmp.eq.f32.partialorder %v1178, %v1309
        %vm1597 = vcmp.eq.f32.partialorder %v1182, %v1311
        %vm1598 = vcmp.eq.f32.partialorder %v1186, %v1313
        %vm1599 = vcmp.eq.f32.partialorder %v1190, %v1315
        %vm1600 = vcmp.eq.f32.partialorder %v1194, %v1317
        %vm1601 = vcmp.eq.f32.partialorder %v1198, %v1319
        %vm1602 = vcmp.eq.f32.partialorder %v1202, %v1321
        %vm1603 = vcmp.eq.f32.partialorder %v1206, %v1323
        %vm1604 = vcmp.eq.f32.partialorder %v1210, %v1325
        %vm1605 = vcmp.eq.f32.partialorder %v1214, %v1327
        %vm1606 = vcmp.eq.f32.partialorder %v1218, %v1329
        %vm1607 = vcmp.eq.f32.partialorder %v1222, %v1331
        %vm1608 = vcmp.eq.f32.partialorder %v1226, %v1333
        %vm1609 = vcmp.eq.f32.partialorder %v1230, %v1335
        %vm1610 = vcmp.eq.f32.partialorder %v1234, %v1337
        %vm1611 = vcmp.eq.f32.partialorder %v1238, %v1339
        %vm1612 = vcmp.eq.f32.partialorder %v1242, %v1341
        %vm1613 = vcmp.eq.f32.partialorder %v1246, %v1343
        %vm1614 = vcmp.eq.f32.partialorder %v1250, %v1345
        %vm1615 = vcmp.eq.f32.partialorder %v1254, %v1347
        %vm1616 = vcmp.eq.f32.partialorder %v1258, %v1349
        %vm1617 = vcmp.eq.f32.partialorder %v1262, %v1351
        %vm1618 = vcmp.eq.f32.partialorder %v1266, %v1353
        %vm1619 = vcmp.eq.f32.partialorder %v1270, %v1355
        %vm1620 = vcmp.eq.f32.partialorder %v1274, %v1357
        %vm1621 = vcmp.eq.f32.partialorder %v1278, %v1359
        %vm1622 = vcmp.eq.f32.partialorder %v1282, %v1361
        %vm1623 = vcmp.eq.f32.partialorder %v1286, %v1363
        %vm1624 = vcmp.eq.f32.partialorder %v1290, %v1365
        %vm1625 = vcmp.eq.f32.partialorder %v1294, %v1367
        %vm1626 = vcmp.eq.f32.partialorder %v1298, %v1369
        %vm1627 = vcmp.eq.f32.partialorder %v1302, %v1371
        %v1628 = vsel %vm1596, %v1307, 128
        %v1629 = vsel %vm1597, %v1307, 128
        %v1630 = vsel %vm1598, %v1307, 128
        %v1631 = vsel %vm1599, %v1307, 128
        %v1632 = vsel %vm1600, %v1307, 128
        %v1633 = vsel %vm1601, %v1307, 128
        %v1634 = vsel %vm1602, %v1307, 128
        %v1635 = vsel %vm1603, %v1307, 128
        %v1636 = vsel %vm1604, %v1307, 128
        %v1637 = vsel %vm1605, %v1307, 128
        %v1638 = vsel %vm1606, %v1307, 128
        %v1639 = vsel %vm1607, %v1307, 128
        %v1640 = vsel %vm1608, %v1307, 128
        %v1641 = vsel %vm1609, %v1307, 128
        %v1642 = vsel %vm1610, %v1307, 128
        %v1643 = vsel %vm1611, %v1307, 128
        %v1644 = vsel %vm1612, %v1307, 128
        %v1645 = vsel %vm1613, %v1307, 128
        %v1646 = vsel %vm1614, %v1307, 128
        %v1647 = vsel %vm1615, %v1307, 128
        %v1648 = vsel %vm1616, %v1307, 128
        %v1649 = vsel %vm1617, %v1307, 128
        %v1650 = vsel %vm1618, %v1307, 128
        %v1651 = vsel %vm1619, %v1307, 128
        %v1652 = vsel %vm1620, %v1307, 128
        %v1653 = vsel %vm1621, %v1307, 128
        %v1654 = vsel %vm1622, %v1307, 128
        %v1655 = vsel %vm1623, %v1307, 128
        %v1656 = vsel %vm1624, %v1307, 128
        %v1657 = vsel %vm1625, %v1307, 128
        %v1658 = vsel %vm1626, %v1307, 128
        %v1659 = vsel %vm1627, %v1307, 128
        %v1660 = vand.u32 %v1628, 65535
        %v1661 = vshra.s32 %v1628, 16
        %v1662 = vcvt.s32.f32 %v1660
        %v1663 = vcvt.s32.f32 %v1661
        %1664 = vmin.xlane.f32.xlu0 %v1663
        %v1665 = vpop.xlane.xlu0 %1664
        %vm1666 = vcmp.eq.f32.partialorder %v1663, %v1665
        %v1667 = vsel %vm1666, %v1662, inf
        %1668 = vmin.xlane.f32.xlu0 %v1667
        %v1669 = vpop.xlane.xlu0 %1668
        %v1670 = vcvt.f32.s32 %v1669
        %v1671 = vcvt.f32.s32 %v1665
        %v1672 = vshll.u32 %v1671, 16
        %v1673 = vadd.s32 %v1672, %v1670
        %v1674 = vand.u32 %v1629, 65535
        %v1675 = vshra.s32 %v1629, 16
        %v1676 = vcvt.s32.f32 %v1674
        %v1677 = vcvt.s32.f32 %v1675
        %1678 = vmin.xlane.f32.xlu0 %v1677
        %v1679 = vpop.xlane.xlu0 %1678
        %vm1680 = vcmp.eq.f32.partialorder %v1677, %v1679
        %v1681 = vsel %vm1680, %v1676, inf
        %1682 = vmin.xlane.f32.xlu0 %v1681
        %v1683 = vpop.xlane.xlu0 %1682
        %v1684 = vcvt.f32.s32 %v1683
        %v1685 = vcvt.f32.s32 %v1679
        %v1686 = vshll.u32 %v1685, 16
        %v1687 = vadd.s32 %v1686, %v1684
        %v1688 = vand.u32 %v1630, 65535
        %v1689 = vshra.s32 %v1630, 16
        %v1690 = vcvt.s32.f32 %v1688
        %v1691 = vcvt.s32.f32 %v1689
        %1692 = vmin.xlane.f32.xlu0 %v1691
        %v1693 = vpop.xlane.xlu0 %1692
        %vm1694 = vcmp.eq.f32.partialorder %v1691, %v1693
        %v1695 = vsel %vm1694, %v1690, inf
        %1696 = vmin.xlane.f32.xlu0 %v1695
        %v1697 = vpop.xlane.xlu0 %1696
        %v1698 = vcvt.f32.s32 %v1697
        %v1699 = vcvt.f32.s32 %v1693
        %v1700 = vshll.u32 %v1699, 16
        %v1701 = vadd.s32 %v1700, %v1698
        %v1702 = vand.u32 %v1631, 65535
        %v1703 = vshra.s32 %v1631, 16
        %v1704 = vcvt.s32.f32 %v1702
        %v1705 = vcvt.s32.f32 %v1703
        %1706 = vmin.xlane.f32.xlu0 %v1705
        %v1707 = vpop.xlane.xlu0 %1706
        %vm1708 = vcmp.eq.f32.partialorder %v1705, %v1707
        %v1709 = vsel %vm1708, %v1704, inf
        %1710 = vmin.xlane.f32.xlu0 %v1709
        %v1711 = vpop.xlane.xlu0 %1710
        %v1712 = vcvt.f32.s32 %v1711
        %v1713 = vcvt.f32.s32 %v1707
        %v1714 = vshll.u32 %v1713, 16
        %v1715 = vadd.s32 %v1714, %v1712
        %v1716 = vand.u32 %v1632, 65535
        %v1717 = vshra.s32 %v1632, 16
        %v1718 = vcvt.s32.f32 %v1716
        %v1719 = vcvt.s32.f32 %v1717
        %1720 = vmin.xlane.f32.xlu0 %v1719
        %v1721 = vpop.xlane.xlu0 %1720
        %vm1722 = vcmp.eq.f32.partialorder %v1719, %v1721
        %v1723 = vsel %vm1722, %v1718, inf
        %1724 = vmin.xlane.f32.xlu0 %v1723
        %v1725 = vpop.xlane.xlu0 %1724
        %v1726 = vcvt.f32.s32 %v1725
        %v1727 = vcvt.f32.s32 %v1721
        %v1728 = vshll.u32 %v1727, 16
        %v1729 = vadd.s32 %v1728, %v1726
        %v1730 = vand.u32 %v1633, 65535
        %v1731 = vshra.s32 %v1633, 16
        %v1732 = vcvt.s32.f32 %v1730
        %v1733 = vcvt.s32.f32 %v1731
        %1734 = vmin.xlane.f32.xlu0 %v1733
        %v1735 = vpop.xlane.xlu0 %1734
        %vm1736 = vcmp.eq.f32.partialorder %v1733, %v1735
        %v1737 = vsel %vm1736, %v1732, inf
        %1738 = vmin.xlane.f32.xlu0 %v1737
        %v1739 = vpop.xlane.xlu0 %1738
        %v1740 = vcvt.f32.s32 %v1739
        %v1741 = vcvt.f32.s32 %v1735
        %v1742 = vshll.u32 %v1741, 16
        %v1743 = vadd.s32 %v1742, %v1740
        %v1744 = vand.u32 %v1634, 65535
        %v1745 = vshra.s32 %v1634, 16
        %v1746 = vcvt.s32.f32 %v1744
        %v1747 = vcvt.s32.f32 %v1745
        %1748 = vmin.xlane.f32.xlu0 %v1747
        %v1749 = vpop.xlane.xlu0 %1748
        %vm1750 = vcmp.eq.f32.partialorder %v1747, %v1749
        %v1751 = vsel %vm1750, %v1746, inf
        %1752 = vmin.xlane.f32.xlu0 %v1751
        %v1753 = vpop.xlane.xlu0 %1752
        %v1754 = vcvt.f32.s32 %v1753
        %v1755 = vcvt.f32.s32 %v1749
        %v1756 = vshll.u32 %v1755, 16
        %v1757 = vadd.s32 %v1756, %v1754
        %v1758 = vand.u32 %v1635, 65535
        %v1759 = vshra.s32 %v1635, 16
        %v1760 = vcvt.s32.f32 %v1758
        %v1761 = vcvt.s32.f32 %v1759
        %1762 = vmin.xlane.f32.xlu0 %v1761
        %v1763 = vpop.xlane.xlu0 %1762
        %vm1764 = vcmp.eq.f32.partialorder %v1761, %v1763
        %v1765 = vsel %vm1764, %v1760, inf
        %1766 = vmin.xlane.f32.xlu0 %v1765
        %v1767 = vpop.xlane.xlu0 %1766
        %v1768 = vcvt.f32.s32 %v1767
        %v1769 = vcvt.f32.s32 %v1763
        %v1770 = vshll.u32 %v1769, 16
        %v1771 = vadd.s32 %v1770, %v1768
        %v1772 = vand.u32 %v1636, 65535
        %v1773 = vshra.s32 %v1636, 16
        %v1774 = vcvt.s32.f32 %v1772
        %v1775 = vcvt.s32.f32 %v1773
        %1776 = vmin.xlane.f32.xlu0 %v1775
        %v1777 = vpop.xlane.xlu0 %1776
        %vm1778 = vcmp.eq.f32.partialorder %v1775, %v1777
        %v1779 = vsel %vm1778, %v1774, inf
        %1780 = vmin.xlane.f32.xlu0 %v1779
        %v1781 = vpop.xlane.xlu0 %1780
        %v1782 = vcvt.f32.s32 %v1781
        %v1783 = vcvt.f32.s32 %v1777
        %v1784 = vshll.u32 %v1783, 16
        %v1785 = vadd.s32 %v1784, %v1782
        %v1786 = vand.u32 %v1637, 65535
        %v1787 = vshra.s32 %v1637, 16
        %v1788 = vcvt.s32.f32 %v1786
        %v1789 = vcvt.s32.f32 %v1787
        %1790 = vmin.xlane.f32.xlu0 %v1789
        %v1791 = vpop.xlane.xlu0 %1790
        %vm1792 = vcmp.eq.f32.partialorder %v1789, %v1791
        %v1793 = vsel %vm1792, %v1788, inf
        %1794 = vmin.xlane.f32.xlu0 %v1793
        %v1795 = vpop.xlane.xlu0 %1794
        %v1796 = vcvt.f32.s32 %v1795
        %v1797 = vcvt.f32.s32 %v1791
        %v1798 = vshll.u32 %v1797, 16
        %v1799 = vadd.s32 %v1798, %v1796
        %v1800 = vand.u32 %v1638, 65535
        %v1801 = vshra.s32 %v1638, 16
        %v1802 = vcvt.s32.f32 %v1800
        %v1803 = vcvt.s32.f32 %v1801
        %1804 = vmin.xlane.f32.xlu0 %v1803
        %v1805 = vpop.xlane.xlu0 %1804
        %vm1806 = vcmp.eq.f32.partialorder %v1803, %v1805
        %v1807 = vsel %vm1806, %v1802, inf
        %1808 = vmin.xlane.f32.xlu0 %v1807
        %v1809 = vpop.xlane.xlu0 %1808
        %v1810 = vcvt.f32.s32 %v1809
        %v1811 = vcvt.f32.s32 %v1805
        %v1812 = vshll.u32 %v1811, 16
        %v1813 = vadd.s32 %v1812, %v1810
        %v1814 = vand.u32 %v1639, 65535
        %v1815 = vshra.s32 %v1639, 16
        %v1816 = vcvt.s32.f32 %v1814
        %v1817 = vcvt.s32.f32 %v1815
        %1818 = vmin.xlane.f32.xlu0 %v1817
        %v1819 = vpop.xlane.xlu0 %1818
        %vm1820 = vcmp.eq.f32.partialorder %v1817, %v1819
        %v1821 = vsel %vm1820, %v1816, inf
        %1822 = vmin.xlane.f32.xlu0 %v1821
        %v1823 = vpop.xlane.xlu0 %1822
        %v1824 = vcvt.f32.s32 %v1823
        %v1825 = vcvt.f32.s32 %v1819
        %v1826 = vshll.u32 %v1825, 16
        %v1827 = vadd.s32 %v1826, %v1824
        %v1828 = vand.u32 %v1640, 65535
        %v1829 = vshra.s32 %v1640, 16
        %v1830 = vcvt.s32.f32 %v1828
        %v1831 = vcvt.s32.f32 %v1829
        %1832 = vmin.xlane.f32.xlu0 %v1831
        %v1833 = vpop.xlane.xlu0 %1832
        %vm1834 = vcmp.eq.f32.partialorder %v1831, %v1833
        %v1835 = vsel %vm1834, %v1830, inf
        %1836 = vmin.xlane.f32.xlu0 %v1835
        %v1837 = vpop.xlane.xlu0 %1836
        %v1838 = vcvt.f32.s32 %v1837
        %v1839 = vcvt.f32.s32 %v1833
        %v1840 = vshll.u32 %v1839, 16
        %v1841 = vadd.s32 %v1840, %v1838
        %v1842 = vand.u32 %v1641, 65535
        %v1843 = vshra.s32 %v1641, 16
        %v1844 = vcvt.s32.f32 %v1842
        %v1845 = vcvt.s32.f32 %v1843
        %1846 = vmin.xlane.f32.xlu0 %v1845
        %v1847 = vpop.xlane.xlu0 %1846
        %vm1848 = vcmp.eq.f32.partialorder %v1845, %v1847
        %v1849 = vsel %vm1848, %v1844, inf
        %1850 = vmin.xlane.f32.xlu0 %v1849
        %v1851 = vpop.xlane.xlu0 %1850
        %v1852 = vcvt.f32.s32 %v1851
        %v1853 = vcvt.f32.s32 %v1847
        %v1854 = vshll.u32 %v1853, 16
        %v1855 = vadd.s32 %v1854, %v1852
        %v1856 = vand.u32 %v1642, 65535
        %v1857 = vshra.s32 %v1642, 16
        %v1858 = vcvt.s32.f32 %v1856
        %v1859 = vcvt.s32.f32 %v1857
        %1860 = vmin.xlane.f32.xlu0 %v1859
        %v1861 = vpop.xlane.xlu0 %1860
        %vm1862 = vcmp.eq.f32.partialorder %v1859, %v1861
        %v1863 = vsel %vm1862, %v1858, inf
        %1864 = vmin.xlane.f32.xlu0 %v1863
        %v1865 = vpop.xlane.xlu0 %1864
        %v1866 = vcvt.f32.s32 %v1865
        %v1867 = vcvt.f32.s32 %v1861
        %v1868 = vshll.u32 %v1867, 16
        %v1869 = vadd.s32 %v1868, %v1866
        %v1870 = vand.u32 %v1643, 65535
        %v1871 = vshra.s32 %v1643, 16
        %v1872 = vcvt.s32.f32 %v1870
        %v1873 = vcvt.s32.f32 %v1871
        %1874 = vmin.xlane.f32.xlu0 %v1873
        %v1875 = vpop.xlane.xlu0 %1874
        %vm1876 = vcmp.eq.f32.partialorder %v1873, %v1875
        %v1877 = vsel %vm1876, %v1872, inf
        %1878 = vmin.xlane.f32.xlu0 %v1877
        %v1879 = vpop.xlane.xlu0 %1878
        %v1880 = vcvt.f32.s32 %v1879
        %v1881 = vcvt.f32.s32 %v1875
        %v1882 = vshll.u32 %v1881, 16
        %v1883 = vadd.s32 %v1882, %v1880
        %v1884 = vand.u32 %v1644, 65535
        %v1885 = vshra.s32 %v1644, 16
        %v1886 = vcvt.s32.f32 %v1884
        %v1887 = vcvt.s32.f32 %v1885
        %1888 = vmin.xlane.f32.xlu0 %v1887
        %v1889 = vpop.xlane.xlu0 %1888
        %vm1890 = vcmp.eq.f32.partialorder %v1887, %v1889
        %v1891 = vsel %vm1890, %v1886, inf
        %1892 = vmin.xlane.f32.xlu0 %v1891
        %v1893 = vpop.xlane.xlu0 %1892
        %v1894 = vcvt.f32.s32 %v1893
        %v1895 = vcvt.f32.s32 %v1889
        %v1896 = vshll.u32 %v1895, 16
        %v1897 = vadd.s32 %v1896, %v1894
        %v1898 = vand.u32 %v1645, 65535
        %v1899 = vshra.s32 %v1645, 16
        %v1900 = vcvt.s32.f32 %v1898
        %v1901 = vcvt.s32.f32 %v1899
        %1902 = vmin.xlane.f32.xlu0 %v1901
        %v1903 = vpop.xlane.xlu0 %1902
        %vm1904 = vcmp.eq.f32.partialorder %v1901, %v1903
        %v1905 = vsel %vm1904, %v1900, inf
        %1906 = vmin.xlane.f32.xlu0 %v1905
        %v1907 = vpop.xlane.xlu0 %1906
        %v1908 = vcvt.f32.s32 %v1907
        %v1909 = vcvt.f32.s32 %v1903
        %v1910 = vshll.u32 %v1909, 16
        %v1911 = vadd.s32 %v1910, %v1908
        %v1912 = vand.u32 %v1646, 65535
        %v1913 = vshra.s32 %v1646, 16
        %v1914 = vcvt.s32.f32 %v1912
        %v1915 = vcvt.s32.f32 %v1913
        %1916 = vmin.xlane.f32.xlu0 %v1915
        %v1917 = vpop.xlane.xlu0 %1916
        %vm1918 = vcmp.eq.f32.partialorder %v1915, %v1917
        %v1919 = vsel %vm1918, %v1914, inf
        %1920 = vmin.xlane.f32.xlu0 %v1919
        %v1921 = vpop.xlane.xlu0 %1920
        %v1922 = vcvt.f32.s32 %v1921
        %v1923 = vcvt.f32.s32 %v1917
        %v1924 = vshll.u32 %v1923, 16
        %v1925 = vadd.s32 %v1924, %v1922
        %v1926 = vand.u32 %v1647, 65535
        %v1927 = vshra.s32 %v1647, 16
        %v1928 = vcvt.s32.f32 %v1926
        %v1929 = vcvt.s32.f32 %v1927
        %1930 = vmin.xlane.f32.xlu0 %v1929
        %v1931 = vpop.xlane.xlu0 %1930
        %vm1932 = vcmp.eq.f32.partialorder %v1929, %v1931
        %v1933 = vsel %vm1932, %v1928, inf
        %1934 = vmin.xlane.f32.xlu0 %v1933
        %v1935 = vpop.xlane.xlu0 %1934
        %v1936 = vcvt.f32.s32 %v1935
        %v1937 = vcvt.f32.s32 %v1931
        %v1938 = vshll.u32 %v1937, 16
        %v1939 = vadd.s32 %v1938, %v1936
        %v1940 = vand.u32 %v1648, 65535
        %v1941 = vshra.s32 %v1648, 16
        %v1942 = vcvt.s32.f32 %v1940
        %v1943 = vcvt.s32.f32 %v1941
        %1944 = vmin.xlane.f32.xlu0 %v1943
        %v1945 = vpop.xlane.xlu0 %1944
        %vm1946 = vcmp.eq.f32.partialorder %v1943, %v1945
        %v1947 = vsel %vm1946, %v1942, inf
        %1948 = vmin.xlane.f32.xlu0 %v1947
        %v1949 = vpop.xlane.xlu0 %1948
        %v1950 = vcvt.f32.s32 %v1949
        %v1951 = vcvt.f32.s32 %v1945
        %v1952 = vshll.u32 %v1951, 16
        %v1953 = vadd.s32 %v1952, %v1950
        %v1954 = vand.u32 %v1649, 65535
        %v1955 = vshra.s32 %v1649, 16
        %v1956 = vcvt.s32.f32 %v1954
        %v1957 = vcvt.s32.f32 %v1955
        %1958 = vmin.xlane.f32.xlu0 %v1957
        %v1959 = vpop.xlane.xlu0 %1958
        %vm1960 = vcmp.eq.f32.partialorder %v1957, %v1959
        %v1961 = vsel %vm1960, %v1956, inf
        %1962 = vmin.xlane.f32.xlu0 %v1961
        %v1963 = vpop.xlane.xlu0 %1962
        %v1964 = vcvt.f32.s32 %v1963
        %v1965 = vcvt.f32.s32 %v1959
        %v1966 = vshll.u32 %v1965, 16
        %v1967 = vadd.s32 %v1966, %v1964
        %v1968 = vand.u32 %v1650, 65535
        %v1969 = vshra.s32 %v1650, 16
        %v1970 = vcvt.s32.f32 %v1968
        %v1971 = vcvt.s32.f32 %v1969
        %1972 = vmin.xlane.f32.xlu0 %v1971
        %v1973 = vpop.xlane.xlu0 %1972
        %vm1974 = vcmp.eq.f32.partialorder %v1971, %v1973
        %v1975 = vsel %vm1974, %v1970, inf
        %1976 = vmin.xlane.f32.xlu0 %v1975
        %v1977 = vpop.xlane.xlu0 %1976
        %v1978 = vcvt.f32.s32 %v1977
        %v1979 = vcvt.f32.s32 %v1973
        %v1980 = vshll.u32 %v1979, 16
        %v1981 = vadd.s32 %v1980, %v1978
        %v1982 = vand.u32 %v1651, 65535
        %v1983 = vshra.s32 %v1651, 16
        %v1984 = vcvt.s32.f32 %v1982
        %v1985 = vcvt.s32.f32 %v1983
        %1986 = vmin.xlane.f32.xlu0 %v1985
        %v1987 = vpop.xlane.xlu0 %1986
        %vm1988 = vcmp.eq.f32.partialorder %v1985, %v1987
        %v1989 = vsel %vm1988, %v1984, inf
        %1990 = vmin.xlane.f32.xlu0 %v1989
        %v1991 = vpop.xlane.xlu0 %1990
        %v1992 = vcvt.f32.s32 %v1991
        %v1993 = vcvt.f32.s32 %v1987
        %v1994 = vshll.u32 %v1993, 16
        %v1995 = vadd.s32 %v1994, %v1992
        %v1996 = vand.u32 %v1652, 65535
        %v1997 = vshra.s32 %v1652, 16
        %v1998 = vcvt.s32.f32 %v1996
        %v1999 = vcvt.s32.f32 %v1997
        %2000 = vmin.xlane.f32.xlu0 %v1999
        %v2001 = vpop.xlane.xlu0 %2000
        %vm2002 = vcmp.eq.f32.partialorder %v1999, %v2001
        %v2003 = vsel %vm2002, %v1998, inf
        %2004 = vmin.xlane.f32.xlu0 %v2003
        %v2005 = vpop.xlane.xlu0 %2004
        %v2006 = vcvt.f32.s32 %v2005
        %v2007 = vcvt.f32.s32 %v2001
        %v2008 = vshll.u32 %v2007, 16
        %v2009 = vadd.s32 %v2008, %v2006
        %v2010 = vand.u32 %v1653, 65535
        %v2011 = vshra.s32 %v1653, 16
        %v2012 = vcvt.s32.f32 %v2010
        %v2013 = vcvt.s32.f32 %v2011
        %2014 = vmin.xlane.f32.xlu0 %v2013
        %v2015 = vpop.xlane.xlu0 %2014
        %vm2016 = vcmp.eq.f32.partialorder %v2013, %v2015
        %v2017 = vsel %vm2016, %v2012, inf
        %2018 = vmin.xlane.f32.xlu0 %v2017
        %v2019 = vpop.xlane.xlu0 %2018
        %v2020 = vcvt.f32.s32 %v2019
        %v2021 = vcvt.f32.s32 %v2015
        %v2022 = vshll.u32 %v2021, 16
        %v2023 = vadd.s32 %v2022, %v2020
        %v2024 = vand.u32 %v1654, 65535
        %v2025 = vshra.s32 %v1654, 16
        %v2026 = vcvt.s32.f32 %v2024
        %v2027 = vcvt.s32.f32 %v2025
        %2028 = vmin.xlane.f32.xlu0 %v2027
        %v2029 = vpop.xlane.xlu0 %2028
        %vm2030 = vcmp.eq.f32.partialorder %v2027, %v2029
        %v2031 = vsel %vm2030, %v2026, inf
        %2032 = vmin.xlane.f32.xlu0 %v2031
        %v2033 = vpop.xlane.xlu0 %2032
        %v2034 = vcvt.f32.s32 %v2033
        %v2035 = vcvt.f32.s32 %v2029
        %v2036 = vshll.u32 %v2035, 16
        %v2037 = vadd.s32 %v2036, %v2034
        %v2038 = vand.u32 %v1655, 65535
        %v2039 = vshra.s32 %v1655, 16
        %v2040 = vcvt.s32.f32 %v2038
        %v2041 = vcvt.s32.f32 %v2039
        %2042 = vmin.xlane.f32.xlu0 %v2041
        %v2043 = vpop.xlane.xlu0 %2042
        %vm2044 = vcmp.eq.f32.partialorder %v2041, %v2043
        %v2045 = vsel %vm2044, %v2040, inf
        %2046 = vmin.xlane.f32.xlu0 %v2045
        %v2047 = vpop.xlane.xlu0 %2046
        %v2048 = vcvt.f32.s32 %v2047
        %v2049 = vcvt.f32.s32 %v2043
        %v2050 = vshll.u32 %v2049, 16
        %v2051 = vadd.s32 %v2050, %v2048
        %v2052 = vand.u32 %v1656, 65535
        %v2053 = vshra.s32 %v1656, 16
        %v2054 = vcvt.s32.f32 %v2052
        %v2055 = vcvt.s32.f32 %v2053
        %2056 = vmin.xlane.f32.xlu0 %v2055
        %v2057 = vpop.xlane.xlu0 %2056
        %vm2058 = vcmp.eq.f32.partialorder %v2055, %v2057
        %v2059 = vsel %vm2058, %v2054, inf
        %2060 = vmin.xlane.f32.xlu0 %v2059
        %v2061 = vpop.xlane.xlu0 %2060
        %v2062 = vcvt.f32.s32 %v2061
        %v2063 = vcvt.f32.s32 %v2057
        %v2064 = vshll.u32 %v2063, 16
        %v2065 = vadd.s32 %v2064, %v2062
        %v2066 = vand.u32 %v1657, 65535
        %v2067 = vshra.s32 %v1657, 16
        %v2068 = vcvt.s32.f32 %v2066
        %v2069 = vcvt.s32.f32 %v2067
        %2070 = vmin.xlane.f32.xlu0 %v2069
        %v2071 = vpop.xlane.xlu0 %2070
        %vm2072 = vcmp.eq.f32.partialorder %v2069, %v2071
        %v2073 = vsel %vm2072, %v2068, inf
        %2074 = vmin.xlane.f32.xlu0 %v2073
        %v2075 = vpop.xlane.xlu0 %2074
        %v2076 = vcvt.f32.s32 %v2075
        %v2077 = vcvt.f32.s32 %v2071
        %v2078 = vshll.u32 %v2077, 16
        %v2079 = vadd.s32 %v2078, %v2076
        %v2080 = vand.u32 %v1658, 65535
        %v2081 = vshra.s32 %v1658, 16
        %v2082 = vcvt.s32.f32 %v2080
        %v2083 = vcvt.s32.f32 %v2081
        %2084 = vmin.xlane.f32.xlu0 %v2083
        %v2085 = vpop.xlane.xlu0 %2084
        %vm2086 = vcmp.eq.f32.partialorder %v2083, %v2085
        %v2087 = vsel %vm2086, %v2082, inf
        %2088 = vmin.xlane.f32.xlu0 %v2087
        %v2089 = vpop.xlane.xlu0 %2088
        %v2090 = vcvt.f32.s32 %v2089
        %v2091 = vcvt.f32.s32 %v2085
        %v2092 = vshll.u32 %v2091, 16
        %v2093 = vadd.s32 %v2092, %v2090
        %v2094 = vand.u32 %v1659, 65535
        %v2095 = vshra.s32 %v1659, 16
        %v2096 = vcvt.s32.f32 %v2094
        %v2097 = vcvt.s32.f32 %v2095
        %2098 = vmin.xlane.f32.xlu0 %v2097
        %v2099 = vpop.xlane.xlu0 %2098
        %vm2100 = vcmp.eq.f32.partialorder %v2097, %v2099
        %v2101 = vsel %vm2100, %v2096, inf
        %2102 = vmin.xlane.f32.xlu0 %v2101
        %v2103 = vpop.xlane.xlu0 %2102
        %v2104 = vcvt.f32.s32 %v2103
        %v2105 = vcvt.f32.s32 %v2099
        %v2106 = vshll.u32 %v2105, 16
        %v2107 = vadd.s32 %v2106, %v2104
        %vm2108 = vcmp.eq.s32.totalorder %v1307, %v1673
        %vm2109 = vcmp.eq.s32.totalorder %v1307, %v1687
        %vm2110 = vcmp.eq.s32.totalorder %v1307, %v1701
        %vm2111 = vcmp.eq.s32.totalorder %v1307, %v1715
        %vm2112 = vcmp.eq.s32.totalorder %v1307, %v1729
        %vm2113 = vcmp.eq.s32.totalorder %v1307, %v1743
        %vm2114 = vcmp.eq.s32.totalorder %v1307, %v1757
        %vm2115 = vcmp.eq.s32.totalorder %v1307, %v1771
        %vm2116 = vcmp.eq.s32.totalorder %v1307, %v1785
        %vm2117 = vcmp.eq.s32.totalorder %v1307, %v1799
        %vm2118 = vcmp.eq.s32.totalorder %v1307, %v1813
        %vm2119 = vcmp.eq.s32.totalorder %v1307, %v1827
        %vm2120 = vcmp.eq.s32.totalorder %v1307, %v1841
        %vm2121 = vcmp.eq.s32.totalorder %v1307, %v1855
        %vm2122 = vcmp.eq.s32.totalorder %v1307, %v1869
        %vm2123 = vcmp.eq.s32.totalorder %v1307, %v1883
        %vm2124 = vcmp.eq.s32.totalorder %v1307, %v1897
        %vm2125 = vcmp.eq.s32.totalorder %v1307, %v1911
        %vm2126 = vcmp.eq.s32.totalorder %v1307, %v1925
        %vm2127 = vcmp.eq.s32.totalorder %v1307, %v1939
        %vm2128 = vcmp.eq.s32.totalorder %v1307, %v1953
        %vm2129 = vcmp.eq.s32.totalorder %v1307, %v1967
        %vm2130 = vcmp.eq.s32.totalorder %v1307, %v1981
        %vm2131 = vcmp.eq.s32.totalorder %v1307, %v1995
        %vm2132 = vcmp.eq.s32.totalorder %v1307, %v2009
        %vm2133 = vcmp.eq.s32.totalorder %v1307, %v2023
        %vm2134 = vcmp.eq.s32.totalorder %v1307, %v2037
        %vm2135 = vcmp.eq.s32.totalorder %v1307, %v2051
        %vm2136 = vcmp.eq.s32.totalorder %v1307, %v2065
        %vm2137 = vcmp.eq.s32.totalorder %v1307, %v2079
        %vm2138 = vcmp.eq.s32.totalorder %v1307, %v2093
        %vm2139 = vcmp.eq.s32.totalorder %v1307, %v2107
        %v2140 = vsel %vm2108, 1, 0
        %v2141 = vsel %vm2109, 1, 0
        %v2142 = vsel %vm2110, 1, 0
        %v2143 = vsel %vm2111, 1, 0
        %v2144 = vsel %vm2112, 1, 0
        %v2145 = vsel %vm2113, 1, 0
        %v2146 = vsel %vm2114, 1, 0
        %v2147 = vsel %vm2115, 1, 0
        %v2148 = vsel %vm2116, 1, 0
        %v2149 = vsel %vm2117, 1, 0
        %v2150 = vsel %vm2118, 1, 0
        %v2151 = vsel %vm2119, 1, 0
        %v2152 = vsel %vm2120, 1, 0
        %v2153 = vsel %vm2121, 1, 0
        %v2154 = vsel %vm2122, 1, 0
        %v2155 = vsel %vm2123, 1, 0
        %v2156 = vsel %vm2124, 1, 0
        %v2157 = vsel %vm2125, 1, 0
        %v2158 = vsel %vm2126, 1, 0
        %v2159 = vsel %vm2127, 1, 0
        %v2160 = vsel %vm2128, 1, 0
        %v2161 = vsel %vm2129, 1, 0
        %v2162 = vsel %vm2130, 1, 0
        %v2163 = vsel %vm2131, 1, 0
        %v2164 = vsel %vm2132, 1, 0
        %v2165 = vsel %vm2133, 1, 0
        %v2166 = vsel %vm2134, 1, 0
        %v2167 = vsel %vm2135, 1, 0
        %v2168 = vsel %vm2136, 1, 0
        %v2169 = vsel %vm2137, 1, 0
        %v2170 = vsel %vm2138, 1, 0
        %v2171 = vsel %vm2139, 1, 0
        %v2172 = vcvt.s32.f32 %v2140
        %v2173 = vcvt.s32.f32 %v2141
        %v2174 = vcvt.s32.f32 %v2142
        %v2175 = vcvt.s32.f32 %v2143
        %v2176 = vcvt.s32.f32 %v2144
        %v2177 = vcvt.s32.f32 %v2145
        %v2178 = vcvt.s32.f32 %v2146
        %v2179 = vcvt.s32.f32 %v2147
        %v2180 = vcvt.s32.f32 %v2148
        %v2181 = vcvt.s32.f32 %v2149
        %v2182 = vcvt.s32.f32 %v2150
        %v2183 = vcvt.s32.f32 %v2151
        %v2184 = vcvt.s32.f32 %v2152
        %v2185 = vcvt.s32.f32 %v2153
        %v2186 = vcvt.s32.f32 %v2154
        %v2187 = vcvt.s32.f32 %v2155
        %v2188 = vcvt.s32.f32 %v2156
        %v2189 = vcvt.s32.f32 %v2157
        %v2190 = vcvt.s32.f32 %v2158
        %v2191 = vcvt.s32.f32 %v2159
        %v2192 = vcvt.s32.f32 %v2160
        %v2193 = vcvt.s32.f32 %v2161
        %v2194 = vcvt.s32.f32 %v2162
        %v2195 = vcvt.s32.f32 %v2163
        %v2196 = vcvt.s32.f32 %v2164
        %v2197 = vcvt.s32.f32 %v2165
        %v2198 = vcvt.s32.f32 %v2166
        %v2199 = vcvt.s32.f32 %v2167
        %v2200 = vcvt.s32.f32 %v2168
        %v2201 = vcvt.s32.f32 %v2169
        %v2202 = vcvt.s32.f32 %v2170
        %v2203 = vcvt.s32.f32 %v2171
        %2204 = vmax.xlane.f32.xlu0 %v1179
        %v2205 = vpop.xlane.xlu0 %2204
        %2206 = vmax.xlane.f32.xlu0 %v1183
        %v2207 = vpop.xlane.xlu0 %2206
        %2208 = vmax.xlane.f32.xlu0 %v1187
        %v2209 = vpop.xlane.xlu0 %2208
        %2210 = vmax.xlane.f32.xlu0 %v1191
        %v2211 = vpop.xlane.xlu0 %2210
        %2212 = vmax.xlane.f32.xlu0 %v1195
        %v2213 = vpop.xlane.xlu0 %2212
        %2214 = vmax.xlane.f32.xlu0 %v1199
        %v2215 = vpop.xlane.xlu0 %2214
        %2216 = vmax.xlane.f32.xlu0 %v1203
        %v2217 = vpop.xlane.xlu0 %2216
        %2218 = vmax.xlane.f32.xlu0 %v1207
        %v2219 = vpop.xlane.xlu0 %2218
        %2220 = vmax.xlane.f32.xlu0 %v1211
        %v2221 = vpop.xlane.xlu0 %2220
        %2222 = vmax.xlane.f32.xlu0 %v1215
        %v2223 = vpop.xlane.xlu0 %2222
        %2224 = vmax.xlane.f32.xlu0 %v1219
        %v2225 = vpop.xlane.xlu0 %2224
        %2226 = vmax.xlane.f32.xlu0 %v1223
        %v2227 = vpop.xlane.xlu0 %2226
        %2228 = vmax.xlane.f32.xlu0 %v1227
        %v2229 = vpop.xlane.xlu0 %2228
        %2230 = vmax.xlane.f32.xlu0 %v1231
        %v2231 = vpop.xlane.xlu0 %2230
        %2232 = vmax.xlane.f32.xlu0 %v1235
        %v2233 = vpop.xlane.xlu0 %2232
        %2234 = vmax.xlane.f32.xlu0 %v1239
        %v2235 = vpop.xlane.xlu0 %2234
        %2236 = vmax.xlane.f32.xlu0 %v1243
        %v2237 = vpop.xlane.xlu0 %2236
        %2238 = vmax.xlane.f32.xlu0 %v1247
        %v2239 = vpop.xlane.xlu0 %2238
        %2240 = vmax.xlane.f32.xlu0 %v1251
        %v2241 = vpop.xlane.xlu0 %2240
        %2242 = vmax.xlane.f32.xlu0 %v1255
        %v2243 = vpop.xlane.xlu0 %2242
        %2244 = vmax.xlane.f32.xlu0 %v1259
        %v2245 = vpop.xlane.xlu0 %2244
        %2246 = vmax.xlane.f32.xlu0 %v1263
        %v2247 = vpop.xlane.xlu0 %2246
        %2248 = vmax.xlane.f32.xlu0 %v1267
        %v2249 = vpop.xlane.xlu0 %2248
        %2250 = vmax.xlane.f32.xlu0 %v1271
        %v2251 = vpop.xlane.xlu0 %2250
        %2252 = vmax.xlane.f32.xlu0 %v1275
        %v2253 = vpop.xlane.xlu0 %2252
        %2254 = vmax.xlane.f32.xlu0 %v1279
        %v2255 = vpop.xlane.xlu0 %2254
        %2256 = vmax.xlane.f32.xlu0 %v1283
        %v2257 = vpop.xlane.xlu0 %2256
        %2258 = vmax.xlane.f32.xlu0 %v1287
        %v2259 = vpop.xlane.xlu0 %2258
        %2260 = vmax.xlane.f32.xlu0 %v1291
        %v2261 = vpop.xlane.xlu0 %2260
        %2262 = vmax.xlane.f32.xlu0 %v1295
        %v2263 = vpop.xlane.xlu0 %2262
        %2264 = vmax.xlane.f32.xlu0 %v1299
        %v2265 = vpop.xlane.xlu0 %2264
        %2266 = vmax.xlane.f32.xlu0 %v1303
        %v2267 = vpop.xlane.xlu0 %2266
        %v2268 = vsub.f32 %v1179, %v2205
        %v2269 = vsub.f32 %v1183, %v2207
        %v2270 = vsub.f32 %v1187, %v2209
        %v2271 = vsub.f32 %v1191, %v2211
        %v2272 = vsub.f32 %v1195, %v2213
        %v2273 = vsub.f32 %v1199, %v2215
        %v2274 = vsub.f32 %v1203, %v2217
        %v2275 = vsub.f32 %v1207, %v2219
        %v2276 = vsub.f32 %v1211, %v2221
        %v2277 = vsub.f32 %v1215, %v2223
        %v2278 = vsub.f32 %v1219, %v2225
        %v2279 = vsub.f32 %v1223, %v2227
        %v2280 = vsub.f32 %v1227, %v2229
        %v2281 = vsub.f32 %v1231, %v2231
        %v2282 = vsub.f32 %v1235, %v2233
        %v2283 = vsub.f32 %v1239, %v2235
        %v2284 = vsub.f32 %v1243, %v2237
        %v2285 = vsub.f32 %v1247, %v2239
        %v2286 = vsub.f32 %v1251, %v2241
        %v2287 = vsub.f32 %v1255, %v2243
        %v2288 = vsub.f32 %v1259, %v2245
        %v2289 = vsub.f32 %v1263, %v2247
        %v2290 = vsub.f32 %v1267, %v2249
        %v2291 = vsub.f32 %v1271, %v2251
        %v2292 = vsub.f32 %v1275, %v2253
        %v2293 = vsub.f32 %v1279, %v2255
        %v2294 = vsub.f32 %v1283, %v2257
        %v2295 = vsub.f32 %v1287, %v2259
        %v2296 = vsub.f32 %v1291, %v2261
        %v2297 = vsub.f32 %v1295, %v2263
        %v2298 = vsub.f32 %v1299, %v2265
        %v2299 = vsub.f32 %v1303, %v2267
        %v2300 = vmul.f32 %v2268, 1.442695
        %v2301 = vpow.pop %v2300
        %v2302 = vmul.f32 %v2269, 1.442695
        %v2303 = vpow.pop %v2302
        %v2304 = vmul.f32 %v2270, 1.442695
        %v2305 = vpow.pop %v2304
        %v2306 = vmul.f32 %v2271, 1.442695
        %v2307 = vpow.pop %v2306
        %v2308 = vmul.f32 %v2272, 1.442695
        %v2309 = vpow.pop %v2308
        %v2310 = vmul.f32 %v2273, 1.442695
        %v2311 = vpow.pop %v2310
        %v2312 = vmul.f32 %v2274, 1.442695
        %v2313 = vpow.pop %v2312
        %v2314 = vmul.f32 %v2275, 1.442695
        %v2315 = vpow.pop %v2314
        %v2316 = vmul.f32 %v2276, 1.442695
        %v2317 = vpow.pop %v2316
        %v2318 = vmul.f32 %v2277, 1.442695
        %v2319 = vpow.pop %v2318
        %v2320 = vmul.f32 %v2278, 1.442695
        %v2321 = vpow.pop %v2320
        %v2322 = vmul.f32 %v2279, 1.442695
        %v2323 = vpow.pop %v2322
        %v2324 = vmul.f32 %v2280, 1.442695
        %v2325 = vpow.pop %v2324
        %v2326 = vmul.f32 %v2281, 1.442695
        %v2327 = vpow.pop %v2326
        %v2328 = vmul.f32 %v2282, 1.442695
        %v2329 = vpow.pop %v2328
        %v2330 = vmul.f32 %v2283, 1.442695
        %v2331 = vpow.pop %v2330
        %v2332 = vmul.f32 %v2284, 1.442695
        %v2333 = vpow.pop %v2332
        %v2334 = vmul.f32 %v2285, 1.442695
        %v2335 = vpow.pop %v2334
        %v2336 = vmul.f32 %v2286, 1.442695
        %v2337 = vpow.pop %v2336
        %v2338 = vmul.f32 %v2287, 1.442695
        %v2339 = vpow.pop %v2338
        %v2340 = vmul.f32 %v2288, 1.442695
        %v2341 = vpow.pop %v2340
        %v2342 = vmul.f32 %v2289, 1.442695
        %v2343 = vpow.pop %v2342
        %v2344 = vmul.f32 %v2290, 1.442695
        %v2345 = vpow.pop %v2344
        %v2346 = vmul.f32 %v2291, 1.442695
        %v2347 = vpow.pop %v2346
        %v2348 = vmul.f32 %v2292, 1.442695
        %v2349 = vpow.pop %v2348
        %v2350 = vmul.f32 %v2293, 1.442695
        %v2351 = vpow.pop %v2350
        %v2352 = vmul.f32 %v2294, 1.442695
        %v2353 = vpow.pop %v2352
        %v2354 = vmul.f32 %v2295, 1.442695
        %v2355 = vpow.pop %v2354
        %v2356 = vmul.f32 %v2296, 1.442695
        %v2357 = vpow.pop %v2356
        %v2358 = vmul.f32 %v2297, 1.442695
        %v2359 = vpow.pop %v2358
        %v2360 = vmul.f32 %v2298, 1.442695
        %v2361 = vpow.pop %v2360
        %v2362 = vmul.f32 %v2299, 1.442695
        %v2363 = vpow.pop %v2362
        %2364 = vadd.xlane.f32.xlu0 %v2301
        %v2365 = vpop.xlane.xlu0 %2364
        %2366 = vadd.xlane.f32.xlu0 %v2303
        %v2367 = vpop.xlane.xlu0 %2366
        %2368 = vadd.xlane.f32.xlu0 %v2305
        %v2369 = vpop.xlane.xlu0 %2368
        %2370 = vadd.xlane.f32.xlu0 %v2307
        %v2371 = vpop.xlane.xlu0 %2370
        %2372 = vadd.xlane.f32.xlu0 %v2309
        %v2373 = vpop.xlane.xlu0 %2372
        %2374 = vadd.xlane.f32.xlu0 %v2311
        %v2375 = vpop.xlane.xlu0 %2374
        %2376 = vadd.xlane.f32.xlu0 %v2313
        %v2377 = vpop.xlane.xlu0 %2376
        %2378 = vadd.xlane.f32.xlu0 %v2315
        %v2379 = vpop.xlane.xlu0 %2378
        %2380 = vadd.xlane.f32.xlu0 %v2317
        %v2381 = vpop.xlane.xlu0 %2380
        %2382 = vadd.xlane.f32.xlu0 %v2319
        %v2383 = vpop.xlane.xlu0 %2382
        %2384 = vadd.xlane.f32.xlu0 %v2321
        %v2385 = vpop.xlane.xlu0 %2384
        %2386 = vadd.xlane.f32.xlu0 %v2323
        %v2387 = vpop.xlane.xlu0 %2386
        %2388 = vadd.xlane.f32.xlu0 %v2325
        %v2389 = vpop.xlane.xlu0 %2388
        %2390 = vadd.xlane.f32.xlu0 %v2327
        %v2391 = vpop.xlane.xlu0 %2390
        %2392 = vadd.xlane.f32.xlu0 %v2329
        %v2393 = vpop.xlane.xlu0 %2392
        %2394 = vadd.xlane.f32.xlu0 %v2331
        %v2395 = vpop.xlane.xlu0 %2394
        %2396 = vadd.xlane.f32.xlu0 %v2333
        %v2397 = vpop.xlane.xlu0 %2396
        %2398 = vadd.xlane.f32.xlu0 %v2335
        %v2399 = vpop.xlane.xlu0 %2398
        %2400 = vadd.xlane.f32.xlu0 %v2337
        %v2401 = vpop.xlane.xlu0 %2400
        %2402 = vadd.xlane.f32.xlu0 %v2339
        %v2403 = vpop.xlane.xlu0 %2402
        %2404 = vadd.xlane.f32.xlu0 %v2341
        %v2405 = vpop.xlane.xlu0 %2404
        %2406 = vadd.xlane.f32.xlu0 %v2343
        %v2407 = vpop.xlane.xlu0 %2406
        %2408 = vadd.xlane.f32.xlu0 %v2345
        %v2409 = vpop.xlane.xlu0 %2408
        %2410 = vadd.xlane.f32.xlu0 %v2347
        %v2411 = vpop.xlane.xlu0 %2410
        %2412 = vadd.xlane.f32.xlu0 %v2349
        %v2413 = vpop.xlane.xlu0 %2412
        %2414 = vadd.xlane.f32.xlu0 %v2351
        %v2415 = vpop.xlane.xlu0 %2414
        %2416 = vadd.xlane.f32.xlu0 %v2353
        %v2417 = vpop.xlane.xlu0 %2416
        %2418 = vadd.xlane.f32.xlu0 %v2355
        %v2419 = vpop.xlane.xlu0 %2418
        %2420 = vadd.xlane.f32.xlu0 %v2357
        %v2421 = vpop.xlane.xlu0 %2420
        %2422 = vadd.xlane.f32.xlu0 %v2359
        %v2423 = vpop.xlane.xlu0 %2422
        %2424 = vadd.xlane.f32.xlu0 %v2361
        %v2425 = vpop.xlane.xlu0 %2424
        %2426 = vadd.xlane.f32.xlu0 %v2363
        %v2427 = vpop.xlane.xlu0 %2426
        %v2428 = vrcp.pop %v2365
        %v2429 = vrcp.pop %v2367
        %v2430 = vrcp.pop %v2369
        %v2431 = vrcp.pop %v2371
        %v2432 = vrcp.pop %v2373
        %v2433 = vrcp.pop %v2375
        %v2434 = vrcp.pop %v2377
        %v2435 = vrcp.pop %v2379
        %v2436 = vrcp.pop %v2381
        %v2437 = vrcp.pop %v2383
        %v2438 = vrcp.pop %v2385
        %v2439 = vrcp.pop %v2387
        %v2440 = vrcp.pop %v2389
        %v2441 = vrcp.pop %v2391
        %v2442 = vrcp.pop %v2393
        %v2443 = vrcp.pop %v2395
        %v2444 = vrcp.pop %v2397
        %v2445 = vrcp.pop %v2399
        %v2446 = vrcp.pop %v2401
        %v2447 = vrcp.pop %v2403
        %v2448 = vrcp.pop %v2405
        %v2449 = vrcp.pop %v2407
        %v2450 = vrcp.pop %v2409
        %v2451 = vrcp.pop %v2411
        %v2452 = vrcp.pop %v2413
        %v2453 = vrcp.pop %v2415
        %v2454 = vrcp.pop %v2417
        %v2455 = vrcp.pop %v2419
        %v2456 = vrcp.pop %v2421
        %v2457 = vrcp.pop %v2423
        %v2458 = vrcp.pop %v2425
        %v2459 = vrcp.pop %v2427
        %v2460 = vmul.f32 %v2301, %v2428
        %v2461 = vmul.f32 %v2303, %v2429
        %v2462 = vmul.f32 %v2305, %v2430
        %v2463 = vmul.f32 %v2307, %v2431
        %v2464 = vmul.f32 %v2309, %v2432
        %v2465 = vmul.f32 %v2311, %v2433
        %v2466 = vmul.f32 %v2313, %v2434
        %v2467 = vmul.f32 %v2315, %v2435
        %v2468 = vmul.f32 %v2317, %v2436
        %v2469 = vmul.f32 %v2319, %v2437
        %v2470 = vmul.f32 %v2321, %v2438
        %v2471 = vmul.f32 %v2323, %v2439
        %v2472 = vmul.f32 %v2325, %v2440
        %v2473 = vmul.f32 %v2327, %v2441
        %v2474 = vmul.f32 %v2329, %v2442
        %v2475 = vmul.f32 %v2331, %v2443
        %v2476 = vmul.f32 %v2333, %v2444
        %v2477 = vmul.f32 %v2335, %v2445
        %v2478 = vmul.f32 %v2337, %v2446
        %v2479 = vmul.f32 %v2339, %v2447
        %v2480 = vmul.f32 %v2341, %v2448
        %v2481 = vmul.f32 %v2343, %v2449
        %v2482 = vmul.f32 %v2345, %v2450
        %v2483 = vmul.f32 %v2347, %v2451
        %v2484 = vmul.f32 %v2349, %v2452
        %v2485 = vmul.f32 %v2351, %v2453
        %v2486 = vmul.f32 %v2353, %v2454
        %v2487 = vmul.f32 %v2355, %v2455
        %v2488 = vmul.f32 %v2357, %v2456
        %v2489 = vmul.f32 %v2359, %v2457
        %v2490 = vmul.f32 %v2361, %v2458
        %v2491 = vmul.f32 %v2363, %v2459
        %vm2492 = vcmp.eq.f32.partialorder %v1179, %v2205
        %vm2493 = vcmp.eq.f32.partialorder %v1183, %v2207
        %vm2494 = vcmp.eq.f32.partialorder %v1187, %v2209
        %vm2495 = vcmp.eq.f32.partialorder %v1191, %v2211
        %vm2496 = vcmp.eq.f32.partialorder %v1195, %v2213
        %vm2497 = vcmp.eq.f32.partialorder %v1199, %v2215
        %vm2498 = vcmp.eq.f32.partialorder %v1203, %v2217
        %vm2499 = vcmp.eq.f32.partialorder %v1207, %v2219
        %vm2500 = vcmp.eq.f32.partialorder %v1211, %v2221
        %vm2501 = vcmp.eq.f32.partialorder %v1215, %v2223
        %vm2502 = vcmp.eq.f32.partialorder %v1219, %v2225
        %vm2503 = vcmp.eq.f32.partialorder %v1223, %v2227
        %vm2504 = vcmp.eq.f32.partialorder %v1227, %v2229
        %vm2505 = vcmp.eq.f32.partialorder %v1231, %v2231
        %vm2506 = vcmp.eq.f32.partialorder %v1235, %v2233
        %vm2507 = vcmp.eq.f32.partialorder %v1239, %v2235
        %vm2508 = vcmp.eq.f32.partialorder %v1243, %v2237
        %vm2509 = vcmp.eq.f32.partialorder %v1247, %v2239
        %vm2510 = vcmp.eq.f32.partialorder %v1251, %v2241
        %vm2511 = vcmp.eq.f32.partialorder %v1255, %v2243
        %vm2512 = vcmp.eq.f32.partialorder %v1259, %v2245
        %vm2513 = vcmp.eq.f32.partialorder %v1263, %v2247
        %vm2514 = vcmp.eq.f32.partialorder %v1267, %v2249
        %vm2515 = vcmp.eq.f32.partialorder %v1271, %v2251
        %vm2516 = vcmp.eq.f32.partialorder %v1275, %v2253
        %vm2517 = vcmp.eq.f32.partialorder %v1279, %v2255
        %vm2518 = vcmp.eq.f32.partialorder %v1283, %v2257
        %vm2519 = vcmp.eq.f32.partialorder %v1287, %v2259
        %vm2520 = vcmp.eq.f32.partialorder %v1291, %v2261
        %vm2521 = vcmp.eq.f32.partialorder %v1295, %v2263
        %vm2522 = vcmp.eq.f32.partialorder %v1299, %v2265
        %vm2523 = vcmp.eq.f32.partialorder %v1303, %v2267
        %v2524 = vsel %vm2492, %v1307, 128
        %v2525 = vsel %vm2493, %v1307, 128
        %v2526 = vsel %vm2494, %v1307, 128
        %v2527 = vsel %vm2495, %v1307, 128
        %v2528 = vsel %vm2496, %v1307, 128
        %v2529 = vsel %vm2497, %v1307, 128
        %v2530 = vsel %vm2498, %v1307, 128
        %v2531 = vsel %vm2499, %v1307, 128
        %v2532 = vsel %vm2500, %v1307, 128
        %v2533 = vsel %vm2501, %v1307, 128
        %v2534 = vsel %vm2502, %v1307, 128
        %v2535 = vsel %vm2503, %v1307, 128
        %v2536 = vsel %vm2504, %v1307, 128
        %v2537 = vsel %vm2505, %v1307, 128
        %v2538 = vsel %vm2506, %v1307, 128
        %v2539 = vsel %vm2507, %v1307, 128
        %v2540 = vsel %vm2508, %v1307, 128
        %v2541 = vsel %vm2509, %v1307, 128
        %v2542 = vsel %vm2510, %v1307, 128
        %v2543 = vsel %vm2511, %v1307, 128
        %v2544 = vsel %vm2512, %v1307, 128
        %v2545 = vsel %vm2513, %v1307, 128
        %v2546 = vsel %vm2514, %v1307, 128
        %v2547 = vsel %vm2515, %v1307, 128
        %v2548 = vsel %vm2516, %v1307, 128
        %v2549 = vsel %vm2517, %v1307, 128
        %v2550 = vsel %vm2518, %v1307, 128
        %v2551 = vsel %vm2519, %v1307, 128
        %v2552 = vsel %vm2520, %v1307, 128
        %v2553 = vsel %vm2521, %v1307, 128
        %v2554 = vsel %vm2522, %v1307, 128
        %v2555 = vsel %vm2523, %v1307, 128
        %v2556 = vand.u32 %v2524, 65535
        %v2557 = vshra.s32 %v2524, 16
        %v2558 = vcvt.s32.f32 %v2556
        %v2559 = vcvt.s32.f32 %v2557
        %2560 = vmin.xlane.f32.xlu0 %v2559
        %v2561 = vpop.xlane.xlu0 %2560
        %vm2562 = vcmp.eq.f32.partialorder %v2559, %v2561
        %v2563 = vsel %vm2562, %v2558, inf
        %2564 = vmin.xlane.f32.xlu0 %v2563
        %v2565 = vpop.xlane.xlu0 %2564
        %v2566 = vcvt.f32.s32 %v2565
        %v2567 = vcvt.f32.s32 %v2561
        %v2568 = vshll.u32 %v2567, 16
        %v2569 = vadd.s32 %v2568, %v2566
        %v2570 = vand.u32 %v2525, 65535
        %v2571 = vshra.s32 %v2525, 16
        %v2572 = vcvt.s32.f32 %v2570
        %v2573 = vcvt.s32.f32 %v2571
        %2574 = vmin.xlane.f32.xlu0 %v2573
        %v2575 = vpop.xlane.xlu0 %2574
        %vm2576 = vcmp.eq.f32.partialorder %v2573, %v2575
        %v2577 = vsel %vm2576, %v2572, inf
        %2578 = vmin.xlane.f32.xlu0 %v2577
        %v2579 = vpop.xlane.xlu0 %2578
        %v2580 = vcvt.f32.s32 %v2579
        %v2581 = vcvt.f32.s32 %v2575
        %v2582 = vshll.u32 %v2581, 16
        %v2583 = vadd.s32 %v2582, %v2580
        %v2584 = vand.u32 %v2526, 65535
        %v2585 = vshra.s32 %v2526, 16
        %v2586 = vcvt.s32.f32 %v2584
        %v2587 = vcvt.s32.f32 %v2585
        %2588 = vmin.xlane.f32.xlu0 %v2587
        %v2589 = vpop.xlane.xlu0 %2588
        %vm2590 = vcmp.eq.f32.partialorder %v2587, %v2589
        %v2591 = vsel %vm2590, %v2586, inf
        %2592 = vmin.xlane.f32.xlu0 %v2591
        %v2593 = vpop.xlane.xlu0 %2592
        %v2594 = vcvt.f32.s32 %v2593
        %v2595 = vcvt.f32.s32 %v2589
        %v2596 = vshll.u32 %v2595, 16
        %v2597 = vadd.s32 %v2596, %v2594
        %v2598 = vand.u32 %v2527, 65535
        %v2599 = vshra.s32 %v2527, 16
        %v2600 = vcvt.s32.f32 %v2598
        %v2601 = vcvt.s32.f32 %v2599
        %2602 = vmin.xlane.f32.xlu0 %v2601
        %v2603 = vpop.xlane.xlu0 %2602
        %vm2604 = vcmp.eq.f32.partialorder %v2601, %v2603
        %v2605 = vsel %vm2604, %v2600, inf
        %2606 = vmin.xlane.f32.xlu0 %v2605
        %v2607 = vpop.xlane.xlu0 %2606
        %v2608 = vcvt.f32.s32 %v2607
        %v2609 = vcvt.f32.s32 %v2603
        %v2610 = vshll.u32 %v2609, 16
        %v2611 = vadd.s32 %v2610, %v2608
        %v2612 = vand.u32 %v2528, 65535
        %v2613 = vshra.s32 %v2528, 16
        %v2614 = vcvt.s32.f32 %v2612
        %v2615 = vcvt.s32.f32 %v2613
        %2616 = vmin.xlane.f32.xlu0 %v2615
        %v2617 = vpop.xlane.xlu0 %2616
        %vm2618 = vcmp.eq.f32.partialorder %v2615, %v2617
        %v2619 = vsel %vm2618, %v2614, inf
        %2620 = vmin.xlane.f32.xlu0 %v2619
        %v2621 = vpop.xlane.xlu0 %2620
        %v2622 = vcvt.f32.s32 %v2621
        %v2623 = vcvt.f32.s32 %v2617
        %v2624 = vshll.u32 %v2623, 16
        %v2625 = vadd.s32 %v2624, %v2622
        %v2626 = vand.u32 %v2529, 65535
        %v2627 = vshra.s32 %v2529, 16
        %v2628 = vcvt.s32.f32 %v2626
        %v2629 = vcvt.s32.f32 %v2627
        %2630 = vmin.xlane.f32.xlu0 %v2629
        %v2631 = vpop.xlane.xlu0 %2630
        %vm2632 = vcmp.eq.f32.partialorder %v2629, %v2631
        %v2633 = vsel %vm2632, %v2628, inf
        %2634 = vmin.xlane.f32.xlu0 %v2633
        %v2635 = vpop.xlane.xlu0 %2634
        %v2636 = vcvt.f32.s32 %v2635
        %v2637 = vcvt.f32.s32 %v2631
        %v2638 = vshll.u32 %v2637, 16
        %v2639 = vadd.s32 %v2638, %v2636
        %v2640 = vand.u32 %v2530, 65535
        %v2641 = vshra.s32 %v2530, 16
        %v2642 = vcvt.s32.f32 %v2640
        %v2643 = vcvt.s32.f32 %v2641
        %2644 = vmin.xlane.f32.xlu0 %v2643
        %v2645 = vpop.xlane.xlu0 %2644
        %vm2646 = vcmp.eq.f32.partialorder %v2643, %v2645
        %v2647 = vsel %vm2646, %v2642, inf
        %2648 = vmin.xlane.f32.xlu0 %v2647
        %v2649 = vpop.xlane.xlu0 %2648
        %v2650 = vcvt.f32.s32 %v2649
        %v2651 = vcvt.f32.s32 %v2645
        %v2652 = vshll.u32 %v2651, 16
        %v2653 = vadd.s32 %v2652, %v2650
        %v2654 = vand.u32 %v2531, 65535
        %v2655 = vshra.s32 %v2531, 16
        %v2656 = vcvt.s32.f32 %v2654
        %v2657 = vcvt.s32.f32 %v2655
        %2658 = vmin.xlane.f32.xlu0 %v2657
        %v2659 = vpop.xlane.xlu0 %2658
        %vm2660 = vcmp.eq.f32.partialorder %v2657, %v2659
        %v2661 = vsel %vm2660, %v2656, inf
        %2662 = vmin.xlane.f32.xlu0 %v2661
        %v2663 = vpop.xlane.xlu0 %2662
        %v2664 = vcvt.f32.s32 %v2663
        %v2665 = vcvt.f32.s32 %v2659
        %v2666 = vshll.u32 %v2665, 16
        %v2667 = vadd.s32 %v2666, %v2664
        %v2668 = vand.u32 %v2532, 65535
        %v2669 = vshra.s32 %v2532, 16
        %v2670 = vcvt.s32.f32 %v2668
        %v2671 = vcvt.s32.f32 %v2669
        %2672 = vmin.xlane.f32.xlu0 %v2671
        %v2673 = vpop.xlane.xlu0 %2672
        %vm2674 = vcmp.eq.f32.partialorder %v2671, %v2673
        %v2675 = vsel %vm2674, %v2670, inf
        %2676 = vmin.xlane.f32.xlu0 %v2675
        %v2677 = vpop.xlane.xlu0 %2676
        %v2678 = vcvt.f32.s32 %v2677
        %v2679 = vcvt.f32.s32 %v2673
        %v2680 = vshll.u32 %v2679, 16
        %v2681 = vadd.s32 %v2680, %v2678
        %v2682 = vand.u32 %v2533, 65535
        %v2683 = vshra.s32 %v2533, 16
        %v2684 = vcvt.s32.f32 %v2682
        %v2685 = vcvt.s32.f32 %v2683
        %2686 = vmin.xlane.f32.xlu0 %v2685
        %v2687 = vpop.xlane.xlu0 %2686
        %vm2688 = vcmp.eq.f32.partialorder %v2685, %v2687
        %v2689 = vsel %vm2688, %v2684, inf
        %2690 = vmin.xlane.f32.xlu0 %v2689
        %v2691 = vpop.xlane.xlu0 %2690
        %v2692 = vcvt.f32.s32 %v2691
        %v2693 = vcvt.f32.s32 %v2687
        %v2694 = vshll.u32 %v2693, 16
        %v2695 = vadd.s32 %v2694, %v2692
        %v2696 = vand.u32 %v2534, 65535
        %v2697 = vshra.s32 %v2534, 16
        %v2698 = vcvt.s32.f32 %v2696
        %v2699 = vcvt.s32.f32 %v2697
        %2700 = vmin.xlane.f32.xlu0 %v2699
        %v2701 = vpop.xlane.xlu0 %2700
        %vm2702 = vcmp.eq.f32.partialorder %v2699, %v2701
        %v2703 = vsel %vm2702, %v2698, inf
        %2704 = vmin.xlane.f32.xlu0 %v2703
        %v2705 = vpop.xlane.xlu0 %2704
        %v2706 = vcvt.f32.s32 %v2705
        %v2707 = vcvt.f32.s32 %v2701
        %v2708 = vshll.u32 %v2707, 16
        %v2709 = vadd.s32 %v2708, %v2706
        %v2710 = vand.u32 %v2535, 65535
        %v2711 = vshra.s32 %v2535, 16
        %v2712 = vcvt.s32.f32 %v2710
        %v2713 = vcvt.s32.f32 %v2711
        %2714 = vmin.xlane.f32.xlu0 %v2713
        %v2715 = vpop.xlane.xlu0 %2714
        %vm2716 = vcmp.eq.f32.partialorder %v2713, %v2715
        %v2717 = vsel %vm2716, %v2712, inf
        %2718 = vmin.xlane.f32.xlu0 %v2717
        %v2719 = vpop.xlane.xlu0 %2718
        %v2720 = vcvt.f32.s32 %v2719
        %v2721 = vcvt.f32.s32 %v2715
        %v2722 = vshll.u32 %v2721, 16
        %v2723 = vadd.s32 %v2722, %v2720
        %v2724 = vand.u32 %v2536, 65535
        %v2725 = vshra.s32 %v2536, 16
        %v2726 = vcvt.s32.f32 %v2724
        %v2727 = vcvt.s32.f32 %v2725
        %2728 = vmin.xlane.f32.xlu0 %v2727
        %v2729 = vpop.xlane.xlu0 %2728
        %vm2730 = vcmp.eq.f32.partialorder %v2727, %v2729
        %v2731 = vsel %vm2730, %v2726, inf
        %2732 = vmin.xlane.f32.xlu0 %v2731
        %v2733 = vpop.xlane.xlu0 %2732
        %v2734 = vcvt.f32.s32 %v2733
        %v2735 = vcvt.f32.s32 %v2729
        %v2736 = vshll.u32 %v2735, 16
        %v2737 = vadd.s32 %v2736, %v2734
        %v2738 = vand.u32 %v2537, 65535
        %v2739 = vshra.s32 %v2537, 16
        %v2740 = vcvt.s32.f32 %v2738
        %v2741 = vcvt.s32.f32 %v2739
        %2742 = vmin.xlane.f32.xlu0 %v2741
        %v2743 = vpop.xlane.xlu0 %2742
        %vm2744 = vcmp.eq.f32.partialorder %v2741, %v2743
        %v2745 = vsel %vm2744, %v2740, inf
        %2746 = vmin.xlane.f32.xlu0 %v2745
        %v2747 = vpop.xlane.xlu0 %2746
        %v2748 = vcvt.f32.s32 %v2747
        %v2749 = vcvt.f32.s32 %v2743
        %v2750 = vshll.u32 %v2749, 16
        %v2751 = vadd.s32 %v2750, %v2748
        %v2752 = vand.u32 %v2538, 65535
        %v2753 = vshra.s32 %v2538, 16
        %v2754 = vcvt.s32.f32 %v2752
        %v2755 = vcvt.s32.f32 %v2753
        %2756 = vmin.xlane.f32.xlu0 %v2755
        %v2757 = vpop.xlane.xlu0 %2756
        %vm2758 = vcmp.eq.f32.partialorder %v2755, %v2757
        %v2759 = vsel %vm2758, %v2754, inf
        %2760 = vmin.xlane.f32.xlu0 %v2759
        %v2761 = vpop.xlane.xlu0 %2760
        %v2762 = vcvt.f32.s32 %v2761
        %v2763 = vcvt.f32.s32 %v2757
        %v2764 = vshll.u32 %v2763, 16
        %v2765 = vadd.s32 %v2764, %v2762
        %v2766 = vand.u32 %v2539, 65535
        %v2767 = vshra.s32 %v2539, 16
        %v2768 = vcvt.s32.f32 %v2766
        %v2769 = vcvt.s32.f32 %v2767
        %2770 = vmin.xlane.f32.xlu0 %v2769
        %v2771 = vpop.xlane.xlu0 %2770
        %vm2772 = vcmp.eq.f32.partialorder %v2769, %v2771
        %v2773 = vsel %vm2772, %v2768, inf
        %2774 = vmin.xlane.f32.xlu0 %v2773
        %v2775 = vpop.xlane.xlu0 %2774
        %v2776 = vcvt.f32.s32 %v2775
        %v2777 = vcvt.f32.s32 %v2771
        %v2778 = vshll.u32 %v2777, 16
        %v2779 = vadd.s32 %v2778, %v2776
        %v2780 = vand.u32 %v2540, 65535
        %v2781 = vshra.s32 %v2540, 16
        %v2782 = vcvt.s32.f32 %v2780
        %v2783 = vcvt.s32.f32 %v2781
        %2784 = vmin.xlane.f32.xlu0 %v2783
        %v2785 = vpop.xlane.xlu0 %2784
        %vm2786 = vcmp.eq.f32.partialorder %v2783, %v2785
        %v2787 = vsel %vm2786, %v2782, inf
        %2788 = vmin.xlane.f32.xlu0 %v2787
        %v2789 = vpop.xlane.xlu0 %2788
        %v2790 = vcvt.f32.s32 %v2789
        %v2791 = vcvt.f32.s32 %v2785
        %v2792 = vshll.u32 %v2791, 16
        %v2793 = vadd.s32 %v2792, %v2790
        %v2794 = vand.u32 %v2541, 65535
        %v2795 = vshra.s32 %v2541, 16
        %v2796 = vcvt.s32.f32 %v2794
        %v2797 = vcvt.s32.f32 %v2795
        %2798 = vmin.xlane.f32.xlu0 %v2797
        %v2799 = vpop.xlane.xlu0 %2798
        %vm2800 = vcmp.eq.f32.partialorder %v2797, %v2799
        %v2801 = vsel %vm2800, %v2796, inf
        %2802 = vmin.xlane.f32.xlu0 %v2801
        %v2803 = vpop.xlane.xlu0 %2802
        %v2804 = vcvt.f32.s32 %v2803
        %v2805 = vcvt.f32.s32 %v2799
        %v2806 = vshll.u32 %v2805, 16
        %v2807 = vadd.s32 %v2806, %v2804
        %v2808 = vand.u32 %v2542, 65535
        %v2809 = vshra.s32 %v2542, 16
        %v2810 = vcvt.s32.f32 %v2808
        %v2811 = vcvt.s32.f32 %v2809
        %2812 = vmin.xlane.f32.xlu0 %v2811
        %v2813 = vpop.xlane.xlu0 %2812
        %vm2814 = vcmp.eq.f32.partialorder %v2811, %v2813
        %v2815 = vsel %vm2814, %v2810, inf
        %2816 = vmin.xlane.f32.xlu0 %v2815
        %v2817 = vpop.xlane.xlu0 %2816
        %v2818 = vcvt.f32.s32 %v2817
        %v2819 = vcvt.f32.s32 %v2813
        %v2820 = vshll.u32 %v2819, 16
        %v2821 = vadd.s32 %v2820, %v2818
        %v2822 = vand.u32 %v2543, 65535
        %v2823 = vshra.s32 %v2543, 16
        %v2824 = vcvt.s32.f32 %v2822
        %v2825 = vcvt.s32.f32 %v2823
        %2826 = vmin.xlane.f32.xlu0 %v2825
        %v2827 = vpop.xlane.xlu0 %2826
        %vm2828 = vcmp.eq.f32.partialorder %v2825, %v2827
        %v2829 = vsel %vm2828, %v2824, inf
        %2830 = vmin.xlane.f32.xlu0 %v2829
        %v2831 = vpop.xlane.xlu0 %2830
        %v2832 = vcvt.f32.s32 %v2831
        %v2833 = vcvt.f32.s32 %v2827
        %v2834 = vshll.u32 %v2833, 16
        %v2835 = vadd.s32 %v2834, %v2832
        %v2836 = vand.u32 %v2544, 65535
        %v2837 = vshra.s32 %v2544, 16
        %v2838 = vcvt.s32.f32 %v2836
        %v2839 = vcvt.s32.f32 %v2837
        %2840 = vmin.xlane.f32.xlu0 %v2839
        %v2841 = vpop.xlane.xlu0 %2840
        %vm2842 = vcmp.eq.f32.partialorder %v2839, %v2841
        %v2843 = vsel %vm2842, %v2838, inf
        %2844 = vmin.xlane.f32.xlu0 %v2843
        %v2845 = vpop.xlane.xlu0 %2844
        %v2846 = vcvt.f32.s32 %v2845
        %v2847 = vcvt.f32.s32 %v2841
        %v2848 = vshll.u32 %v2847, 16
        %v2849 = vadd.s32 %v2848, %v2846
        %v2850 = vand.u32 %v2545, 65535
        %v2851 = vshra.s32 %v2545, 16
        %v2852 = vcvt.s32.f32 %v2850
        %v2853 = vcvt.s32.f32 %v2851
        %2854 = vmin.xlane.f32.xlu0 %v2853
        %v2855 = vpop.xlane.xlu0 %2854
        %vm2856 = vcmp.eq.f32.partialorder %v2853, %v2855
        %v2857 = vsel %vm2856, %v2852, inf
        %2858 = vmin.xlane.f32.xlu0 %v2857
        %v2859 = vpop.xlane.xlu0 %2858
        %v2860 = vcvt.f32.s32 %v2859
        %v2861 = vcvt.f32.s32 %v2855
        %v2862 = vshll.u32 %v2861, 16
        %v2863 = vadd.s32 %v2862, %v2860
        %v2864 = vand.u32 %v2546, 65535
        %v2865 = vshra.s32 %v2546, 16
        %v2866 = vcvt.s32.f32 %v2864
        %v2867 = vcvt.s32.f32 %v2865
        %2868 = vmin.xlane.f32.xlu0 %v2867
        %v2869 = vpop.xlane.xlu0 %2868
        %vm2870 = vcmp.eq.f32.partialorder %v2867, %v2869
        %v2871 = vsel %vm2870, %v2866, inf
        %2872 = vmin.xlane.f32.xlu0 %v2871
        %v2873 = vpop.xlane.xlu0 %2872
        %v2874 = vcvt.f32.s32 %v2873
        %v2875 = vcvt.f32.s32 %v2869
        %v2876 = vshll.u32 %v2875, 16
        %v2877 = vadd.s32 %v2876, %v2874
        %v2878 = vand.u32 %v2547, 65535
        %v2879 = vshra.s32 %v2547, 16
        %v2880 = vcvt.s32.f32 %v2878
        %v2881 = vcvt.s32.f32 %v2879
        %2882 = vmin.xlane.f32.xlu0 %v2881
        %v2883 = vpop.xlane.xlu0 %2882
        %vm2884 = vcmp.eq.f32.partialorder %v2881, %v2883
        %v2885 = vsel %vm2884, %v2880, inf
        %2886 = vmin.xlane.f32.xlu0 %v2885
        %v2887 = vpop.xlane.xlu0 %2886
        %v2888 = vcvt.f32.s32 %v2887
        %v2889 = vcvt.f32.s32 %v2883
        %v2890 = vshll.u32 %v2889, 16
        %v2891 = vadd.s32 %v2890, %v2888
        %v2892 = vand.u32 %v2548, 65535
        %v2893 = vshra.s32 %v2548, 16
        %v2894 = vcvt.s32.f32 %v2892
        %v2895 = vcvt.s32.f32 %v2893
        %2896 = vmin.xlane.f32.xlu0 %v2895
        %v2897 = vpop.xlane.xlu0 %2896
        %vm2898 = vcmp.eq.f32.partialorder %v2895, %v2897
        %v2899 = vsel %vm2898, %v2894, inf
        %2900 = vmin.xlane.f32.xlu0 %v2899
        %v2901 = vpop.xlane.xlu0 %2900
        %v2902 = vcvt.f32.s32 %v2901
        %v2903 = vcvt.f32.s32 %v2897
        %v2904 = vshll.u32 %v2903, 16
        %v2905 = vadd.s32 %v2904, %v2902
        %v2906 = vand.u32 %v2549, 65535
        %v2907 = vshra.s32 %v2549, 16
        %v2908 = vcvt.s32.f32 %v2906
        %v2909 = vcvt.s32.f32 %v2907
        %2910 = vmin.xlane.f32.xlu0 %v2909
        %v2911 = vpop.xlane.xlu0 %2910
        %vm2912 = vcmp.eq.f32.partialorder %v2909, %v2911
        %v2913 = vsel %vm2912, %v2908, inf
        %2914 = vmin.xlane.f32.xlu0 %v2913
        %v2915 = vpop.xlane.xlu0 %2914
        %v2916 = vcvt.f32.s32 %v2915
        %v2917 = vcvt.f32.s32 %v2911
        %v2918 = vshll.u32 %v2917, 16
        %v2919 = vadd.s32 %v2918, %v2916
        %v2920 = vand.u32 %v2550, 65535
        %v2921 = vshra.s32 %v2550, 16
        %v2922 = vcvt.s32.f32 %v2920
        %v2923 = vcvt.s32.f32 %v2921
        %2924 = vmin.xlane.f32.xlu0 %v2923
        %v2925 = vpop.xlane.xlu0 %2924
        %vm2926 = vcmp.eq.f32.partialorder %v2923, %v2925
        %v2927 = vsel %vm2926, %v2922, inf
        %2928 = vmin.xlane.f32.xlu0 %v2927
        %v2929 = vpop.xlane.xlu0 %2928
        %v2930 = vcvt.f32.s32 %v2929
        %v2931 = vcvt.f32.s32 %v2925
        %v2932 = vshll.u32 %v2931, 16
        %v2933 = vadd.s32 %v2932, %v2930
        %v2934 = vand.u32 %v2551, 65535
        %v2935 = vshra.s32 %v2551, 16
        %v2936 = vcvt.s32.f32 %v2934
        %v2937 = vcvt.s32.f32 %v2935
        %2938 = vmin.xlane.f32.xlu0 %v2937
        %v2939 = vpop.xlane.xlu0 %2938
        %vm2940 = vcmp.eq.f32.partialorder %v2937, %v2939
        %v2941 = vsel %vm2940, %v2936, inf
        %2942 = vmin.xlane.f32.xlu0 %v2941
        %v2943 = vpop.xlane.xlu0 %2942
        %v2944 = vcvt.f32.s32 %v2943
        %v2945 = vcvt.f32.s32 %v2939
        %v2946 = vshll.u32 %v2945, 16
        %v2947 = vadd.s32 %v2946, %v2944
        %v2948 = vand.u32 %v2552, 65535
        %v2949 = vshra.s32 %v2552, 16
        %v2950 = vcvt.s32.f32 %v2948
        %v2951 = vcvt.s32.f32 %v2949
        %2952 = vmin.xlane.f32.xlu0 %v2951
        %v2953 = vpop.xlane.xlu0 %2952
        %vm2954 = vcmp.eq.f32.partialorder %v2951, %v2953
        %v2955 = vsel %vm2954, %v2950, inf
        %2956 = vmin.xlane.f32.xlu0 %v2955
        %v2957 = vpop.xlane.xlu0 %2956
        %v2958 = vcvt.f32.s32 %v2957
        %v2959 = vcvt.f32.s32 %v2953
        %v2960 = vshll.u32 %v2959, 16
        %v2961 = vadd.s32 %v2960, %v2958
        %v2962 = vand.u32 %v2553, 65535
        %v2963 = vshra.s32 %v2553, 16
        %v2964 = vcvt.s32.f32 %v2962
        %v2965 = vcvt.s32.f32 %v2963
        %2966 = vmin.xlane.f32.xlu0 %v2965
        %v2967 = vpop.xlane.xlu0 %2966
        %vm2968 = vcmp.eq.f32.partialorder %v2965, %v2967
        %v2969 = vsel %vm2968, %v2964, inf
        %2970 = vmin.xlane.f32.xlu0 %v2969
        %v2971 = vpop.xlane.xlu0 %2970
        %v2972 = vcvt.f32.s32 %v2971
        %v2973 = vcvt.f32.s32 %v2967
        %v2974 = vshll.u32 %v2973, 16
        %v2975 = vadd.s32 %v2974, %v2972
        %v2976 = vand.u32 %v2554, 65535
        %v2977 = vshra.s32 %v2554, 16
        %v2978 = vcvt.s32.f32 %v2976
        %v2979 = vcvt.s32.f32 %v2977
        %2980 = vmin.xlane.f32.xlu0 %v2979
        %v2981 = vpop.xlane.xlu0 %2980
        %vm2982 = vcmp.eq.f32.partialorder %v2979, %v2981
        %v2983 = vsel %vm2982, %v2978, inf
        %2984 = vmin.xlane.f32.xlu0 %v2983
        %v2985 = vpop.xlane.xlu0 %2984
        %v2986 = vcvt.f32.s32 %v2985
        %v2987 = vcvt.f32.s32 %v2981
        %v2988 = vshll.u32 %v2987, 16
        %v2989 = vadd.s32 %v2988, %v2986
        %v2990 = vand.u32 %v2555, 65535
        %v2991 = vshra.s32 %v2555, 16
        %v2992 = vcvt.s32.f32 %v2990
        %v2993 = vcvt.s32.f32 %v2991
        %2994 = vmin.xlane.f32.xlu0 %v2993
        %v2995 = vpop.xlane.xlu0 %2994
        %vm2996 = vcmp.eq.f32.partialorder %v2993, %v2995
        %v2997 = vsel %vm2996, %v2992, inf
        %2998 = vmin.xlane.f32.xlu0 %v2997
        %v2999 = vpop.xlane.xlu0 %2998
        %v3000 = vcvt.f32.s32 %v2999
        %v3001 = vcvt.f32.s32 %v2995
        %v3002 = vshll.u32 %v3001, 16
        %v3003 = vadd.s32 %v3002, %v3000
        %vm3004 = vcmp.eq.s32.totalorder %v1307, %v2569
        %vm3005 = vcmp.eq.s32.totalorder %v1307, %v2583
        %vm3006 = vcmp.eq.s32.totalorder %v1307, %v2597
        %vm3007 = vcmp.eq.s32.totalorder %v1307, %v2611
        %vm3008 = vcmp.eq.s32.totalorder %v1307, %v2625
        %vm3009 = vcmp.eq.s32.totalorder %v1307, %v2639
        %vm3010 = vcmp.eq.s32.totalorder %v1307, %v2653
        %vm3011 = vcmp.eq.s32.totalorder %v1307, %v2667
        %vm3012 = vcmp.eq.s32.totalorder %v1307, %v2681
        %vm3013 = vcmp.eq.s32.totalorder %v1307, %v2695
        %vm3014 = vcmp.eq.s32.totalorder %v1307, %v2709
        %vm3015 = vcmp.eq.s32.totalorder %v1307, %v2723
        %vm3016 = vcmp.eq.s32.totalorder %v1307, %v2737
        %vm3017 = vcmp.eq.s32.totalorder %v1307, %v2751
        %vm3018 = vcmp.eq.s32.totalorder %v1307, %v2765
        %vm3019 = vcmp.eq.s32.totalorder %v1307, %v2779
        %vm3020 = vcmp.eq.s32.totalorder %v1307, %v2793
        %vm3021 = vcmp.eq.s32.totalorder %v1307, %v2807
        %vm3022 = vcmp.eq.s32.totalorder %v1307, %v2821
        %vm3023 = vcmp.eq.s32.totalorder %v1307, %v2835
        %vm3024 = vcmp.eq.s32.totalorder %v1307, %v2849
        %vm3025 = vcmp.eq.s32.totalorder %v1307, %v2863
        %vm3026 = vcmp.eq.s32.totalorder %v1307, %v2877
        %vm3027 = vcmp.eq.s32.totalorder %v1307, %v2891
        %vm3028 = vcmp.eq.s32.totalorder %v1307, %v2905
        %vm3029 = vcmp.eq.s32.totalorder %v1307, %v2919
        %vm3030 = vcmp.eq.s32.totalorder %v1307, %v2933
        %vm3031 = vcmp.eq.s32.totalorder %v1307, %v2947
        %vm3032 = vcmp.eq.s32.totalorder %v1307, %v2961
        %vm3033 = vcmp.eq.s32.totalorder %v1307, %v2975
        %vm3034 = vcmp.eq.s32.totalorder %v1307, %v2989
        %vm3035 = vcmp.eq.s32.totalorder %v1307, %v3003
        %v3036 = vsel %vm3004, 1, 0
        %v3037 = vsel %vm3005, 1, 0
        %v3038 = vsel %vm3006, 1, 0
        %v3039 = vsel %vm3007, 1, 0
        %v3040 = vsel %vm3008, 1, 0
        %v3041 = vsel %vm3009, 1, 0
        %v3042 = vsel %vm3010, 1, 0
        %v3043 = vsel %vm3011, 1, 0
        %v3044 = vsel %vm3012, 1, 0
        %v3045 = vsel %vm3013, 1, 0
        %v3046 = vsel %vm3014, 1, 0
        %v3047 = vsel %vm3015, 1, 0
        %v3048 = vsel %vm3016, 1, 0
        %v3049 = vsel %vm3017, 1, 0
        %v3050 = vsel %vm3018, 1, 0
        %v3051 = vsel %vm3019, 1, 0
        %v3052 = vsel %vm3020, 1, 0
        %v3053 = vsel %vm3021, 1, 0
        %v3054 = vsel %vm3022, 1, 0
        %v3055 = vsel %vm3023, 1, 0
        %v3056 = vsel %vm3024, 1, 0
        %v3057 = vsel %vm3025, 1, 0
        %v3058 = vsel %vm3026, 1, 0
        %v3059 = vsel %vm3027, 1, 0
        %v3060 = vsel %vm3028, 1, 0
        %v3061 = vsel %vm3029, 1, 0
        %v3062 = vsel %vm3030, 1, 0
        %v3063 = vsel %vm3031, 1, 0
        %v3064 = vsel %vm3032, 1, 0
        %v3065 = vsel %vm3033, 1, 0
        %v3066 = vsel %vm3034, 1, 0
        %v3067 = vsel %vm3035, 1, 0
        %v3068 = vcvt.s32.f32 %v3036
        %v3069 = vcvt.s32.f32 %v3037
        %v3070 = vcvt.s32.f32 %v3038
        %v3071 = vcvt.s32.f32 %v3039
        %v3072 = vcvt.s32.f32 %v3040
        %v3073 = vcvt.s32.f32 %v3041
        %v3074 = vcvt.s32.f32 %v3042
        %v3075 = vcvt.s32.f32 %v3043
        %v3076 = vcvt.s32.f32 %v3044
        %v3077 = vcvt.s32.f32 %v3045
        %v3078 = vcvt.s32.f32 %v3046
        %v3079 = vcvt.s32.f32 %v3047
        %v3080 = vcvt.s32.f32 %v3048
        %v3081 = vcvt.s32.f32 %v3049
        %v3082 = vcvt.s32.f32 %v3050
        %v3083 = vcvt.s32.f32 %v3051
        %v3084 = vcvt.s32.f32 %v3052
        %v3085 = vcvt.s32.f32 %v3053
        %v3086 = vcvt.s32.f32 %v3054
        %v3087 = vcvt.s32.f32 %v3055
        %v3088 = vcvt.s32.f32 %v3056
        %v3089 = vcvt.s32.f32 %v3057
        %v3090 = vcvt.s32.f32 %v3058
        %v3091 = vcvt.s32.f32 %v3059
        %v3092 = vcvt.s32.f32 %v3060
        %v3093 = vcvt.s32.f32 %v3061
        %v3094 = vcvt.s32.f32 %v3062
        %v3095 = vcvt.s32.f32 %v3063
        %v3096 = vcvt.s32.f32 %v3064
        %v3097 = vcvt.s32.f32 %v3065
        %v3098 = vcvt.s32.f32 %v3066
        %v3099 = vcvt.s32.f32 %v3067
        %3100 = vmax.xlane.f32.xlu0 %v1180
        %v3101 = vpop.xlane.xlu0 %3100
        %3102 = vmax.xlane.f32.xlu0 %v1184
        %v3103 = vpop.xlane.xlu0 %3102
        %3104 = vmax.xlane.f32.xlu0 %v1188
        %v3105 = vpop.xlane.xlu0 %3104
        %3106 = vmax.xlane.f32.xlu0 %v1192
        %v3107 = vpop.xlane.xlu0 %3106
        %3108 = vmax.xlane.f32.xlu0 %v1196
        %v3109 = vpop.xlane.xlu0 %3108
        %3110 = vmax.xlane.f32.xlu0 %v1200
        %v3111 = vpop.xlane.xlu0 %3110
        %3112 = vmax.xlane.f32.xlu0 %v1204
        %v3113 = vpop.xlane.xlu0 %3112
        %3114 = vmax.xlane.f32.xlu0 %v1208
        %v3115 = vpop.xlane.xlu0 %3114
        %3116 = vmax.xlane.f32.xlu0 %v1212
        %v3117 = vpop.xlane.xlu0 %3116
        %3118 = vmax.xlane.f32.xlu0 %v1216
        %v3119 = vpop.xlane.xlu0 %3118
        %3120 = vmax.xlane.f32.xlu0 %v1220
        %v3121 = vpop.xlane.xlu0 %3120
        %3122 = vmax.xlane.f32.xlu0 %v1224
        %v3123 = vpop.xlane.xlu0 %3122
        %3124 = vmax.xlane.f32.xlu0 %v1228
        %v3125 = vpop.xlane.xlu0 %3124
        %3126 = vmax.xlane.f32.xlu0 %v1232
        %v3127 = vpop.xlane.xlu0 %3126
        %3128 = vmax.xlane.f32.xlu0 %v1236
        %v3129 = vpop.xlane.xlu0 %3128
        %3130 = vmax.xlane.f32.xlu0 %v1240
        %v3131 = vpop.xlane.xlu0 %3130
        %3132 = vmax.xlane.f32.xlu0 %v1244
        %v3133 = vpop.xlane.xlu0 %3132
        %3134 = vmax.xlane.f32.xlu0 %v1248
        %v3135 = vpop.xlane.xlu0 %3134
        %3136 = vmax.xlane.f32.xlu0 %v1252
        %v3137 = vpop.xlane.xlu0 %3136
        %3138 = vmax.xlane.f32.xlu0 %v1256
        %v3139 = vpop.xlane.xlu0 %3138
        %3140 = vmax.xlane.f32.xlu0 %v1260
        %v3141 = vpop.xlane.xlu0 %3140
        %3142 = vmax.xlane.f32.xlu0 %v1264
        %v3143 = vpop.xlane.xlu0 %3142
        %3144 = vmax.xlane.f32.xlu0 %v1268
        %v3145 = vpop.xlane.xlu0 %3144
        %3146 = vmax.xlane.f32.xlu0 %v1272
        %v3147 = vpop.xlane.xlu0 %3146
        %3148 = vmax.xlane.f32.xlu0 %v1276
        %v3149 = vpop.xlane.xlu0 %3148
        %3150 = vmax.xlane.f32.xlu0 %v1280
        %v3151 = vpop.xlane.xlu0 %3150
        %3152 = vmax.xlane.f32.xlu0 %v1284
        %v3153 = vpop.xlane.xlu0 %3152
        %3154 = vmax.xlane.f32.xlu0 %v1288
        %v3155 = vpop.xlane.xlu0 %3154
        %3156 = vmax.xlane.f32.xlu0 %v1292
        %v3157 = vpop.xlane.xlu0 %3156
        %3158 = vmax.xlane.f32.xlu0 %v1296
        %v3159 = vpop.xlane.xlu0 %3158
        %3160 = vmax.xlane.f32.xlu0 %v1300
        %v3161 = vpop.xlane.xlu0 %3160
        %3162 = vmax.xlane.f32.xlu0 %v1304
        %v3163 = vpop.xlane.xlu0 %3162
        %v3164 = vsub.f32 %v1180, %v3101
        %v3165 = vsub.f32 %v1184, %v3103
        %v3166 = vsub.f32 %v1188, %v3105
        %v3167 = vsub.f32 %v1192, %v3107
        %v3168 = vsub.f32 %v1196, %v3109
        %v3169 = vsub.f32 %v1200, %v3111
        %v3170 = vsub.f32 %v1204, %v3113
        %v3171 = vsub.f32 %v1208, %v3115
        %v3172 = vsub.f32 %v1212, %v3117
        %v3173 = vsub.f32 %v1216, %v3119
        %v3174 = vsub.f32 %v1220, %v3121
        %v3175 = vsub.f32 %v1224, %v3123
        %v3176 = vsub.f32 %v1228, %v3125
        %v3177 = vsub.f32 %v1232, %v3127
        %v3178 = vsub.f32 %v1236, %v3129
        %v3179 = vsub.f32 %v1240, %v3131
        %v3180 = vsub.f32 %v1244, %v3133
        %v3181 = vsub.f32 %v1248, %v3135
        %v3182 = vsub.f32 %v1252, %v3137
        %v3183 = vsub.f32 %v1256, %v3139
        %v3184 = vsub.f32 %v1260, %v3141
        %v3185 = vsub.f32 %v1264, %v3143
        %v3186 = vsub.f32 %v1268, %v3145
        %v3187 = vsub.f32 %v1272, %v3147
        %v3188 = vsub.f32 %v1276, %v3149
        %v3189 = vsub.f32 %v1280, %v3151
        %v3190 = vsub.f32 %v1284, %v3153
        %v3191 = vsub.f32 %v1288, %v3155
        %v3192 = vsub.f32 %v1292, %v3157
        %v3193 = vsub.f32 %v1296, %v3159
        %v3194 = vsub.f32 %v1300, %v3161
        %v3195 = vsub.f32 %v1304, %v3163
        %v3196 = vmul.f32 %v3164, 1.442695
        %v3197 = vpow.pop %v3196
        %v3198 = vmul.f32 %v3165, 1.442695
        %v3199 = vpow.pop %v3198
        %v3200 = vmul.f32 %v3166, 1.442695
        %v3201 = vpow.pop %v3200
        %v3202 = vmul.f32 %v3167, 1.442695
        %v3203 = vpow.pop %v3202
        %v3204 = vmul.f32 %v3168, 1.442695
        %v3205 = vpow.pop %v3204
        %v3206 = vmul.f32 %v3169, 1.442695
        %v3207 = vpow.pop %v3206
        %v3208 = vmul.f32 %v3170, 1.442695
        %v3209 = vpow.pop %v3208
        %v3210 = vmul.f32 %v3171, 1.442695
        %v3211 = vpow.pop %v3210
        %v3212 = vmul.f32 %v3172, 1.442695
        %v3213 = vpow.pop %v3212
        %v3214 = vmul.f32 %v3173, 1.442695
        %v3215 = vpow.pop %v3214
        %v3216 = vmul.f32 %v3174, 1.442695
        %v3217 = vpow.pop %v3216
        %v3218 = vmul.f32 %v3175, 1.442695
        %v3219 = vpow.pop %v3218
        %v3220 = vmul.f32 %v3176, 1.442695
        %v3221 = vpow.pop %v3220
        %v3222 = vmul.f32 %v3177, 1.442695
        %v3223 = vpow.pop %v3222
        %v3224 = vmul.f32 %v3178, 1.442695
        %v3225 = vpow.pop %v3224
        %v3226 = vmul.f32 %v3179, 1.442695
        %v3227 = vpow.pop %v3226
        %v3228 = vmul.f32 %v3180, 1.442695
        %v3229 = vpow.pop %v3228
        %v3230 = vmul.f32 %v3181, 1.442695
        %v3231 = vpow.pop %v3230
        %v3232 = vmul.f32 %v3182, 1.442695
        %v3233 = vpow.pop %v3232
        %v3234 = vmul.f32 %v3183, 1.442695
        %v3235 = vpow.pop %v3234
        %v3236 = vmul.f32 %v3184, 1.442695
        %v3237 = vpow.pop %v3236
        %v3238 = vmul.f32 %v3185, 1.442695
        %v3239 = vpow.pop %v3238
        %v3240 = vmul.f32 %v3186, 1.442695
        %v3241 = vpow.pop %v3240
        %v3242 = vmul.f32 %v3187, 1.442695
        %v3243 = vpow.pop %v3242
        %v3244 = vmul.f32 %v3188, 1.442695
        %v3245 = vpow.pop %v3244
        %v3246 = vmul.f32 %v3189, 1.442695
        %v3247 = vpow.pop %v3246
        %v3248 = vmul.f32 %v3190, 1.442695
        %v3249 = vpow.pop %v3248
        %v3250 = vmul.f32 %v3191, 1.442695
        %v3251 = vpow.pop %v3250
        %v3252 = vmul.f32 %v3192, 1.442695
        %v3253 = vpow.pop %v3252
        %v3254 = vmul.f32 %v3193, 1.442695
        %v3255 = vpow.pop %v3254
        %v3256 = vmul.f32 %v3194, 1.442695
        %v3257 = vpow.pop %v3256
        %v3258 = vmul.f32 %v3195, 1.442695
        %v3259 = vpow.pop %v3258
        %3260 = vadd.xlane.f32.xlu0 %v3197
        %v3261 = vpop.xlane.xlu0 %3260
        %3262 = vadd.xlane.f32.xlu0 %v3199
        %v3263 = vpop.xlane.xlu0 %3262
        %3264 = vadd.xlane.f32.xlu0 %v3201
        %v3265 = vpop.xlane.xlu0 %3264
        %3266 = vadd.xlane.f32.xlu0 %v3203
        %v3267 = vpop.xlane.xlu0 %3266
        %3268 = vadd.xlane.f32.xlu0 %v3205
        %v3269 = vpop.xlane.xlu0 %3268
        %3270 = vadd.xlane.f32.xlu0 %v3207
        %v3271 = vpop.xlane.xlu0 %3270
        %3272 = vadd.xlane.f32.xlu0 %v3209
        %v3273 = vpop.xlane.xlu0 %3272
        %3274 = vadd.xlane.f32.xlu0 %v3211
        %v3275 = vpop.xlane.xlu0 %3274
        %3276 = vadd.xlane.f32.xlu0 %v3213
        %v3277 = vpop.xlane.xlu0 %3276
        %3278 = vadd.xlane.f32.xlu0 %v3215
        %v3279 = vpop.xlane.xlu0 %3278
        %3280 = vadd.xlane.f32.xlu0 %v3217
        %v3281 = vpop.xlane.xlu0 %3280
        %3282 = vadd.xlane.f32.xlu0 %v3219
        %v3283 = vpop.xlane.xlu0 %3282
        %3284 = vadd.xlane.f32.xlu0 %v3221
        %v3285 = vpop.xlane.xlu0 %3284
        %3286 = vadd.xlane.f32.xlu0 %v3223
        %v3287 = vpop.xlane.xlu0 %3286
        %3288 = vadd.xlane.f32.xlu0 %v3225
        %v3289 = vpop.xlane.xlu0 %3288
        %3290 = vadd.xlane.f32.xlu0 %v3227
        %v3291 = vpop.xlane.xlu0 %3290
        %3292 = vadd.xlane.f32.xlu0 %v3229
        %v3293 = vpop.xlane.xlu0 %3292
        %3294 = vadd.xlane.f32.xlu0 %v3231
        %v3295 = vpop.xlane.xlu0 %3294
        %3296 = vadd.xlane.f32.xlu0 %v3233
        %v3297 = vpop.xlane.xlu0 %3296
        %3298 = vadd.xlane.f32.xlu0 %v3235
        %v3299 = vpop.xlane.xlu0 %3298
        %3300 = vadd.xlane.f32.xlu0 %v3237
        %v3301 = vpop.xlane.xlu0 %3300
        %3302 = vadd.xlane.f32.xlu0 %v3239
        %v3303 = vpop.xlane.xlu0 %3302
        %3304 = vadd.xlane.f32.xlu0 %v3241
        %v3305 = vpop.xlane.xlu0 %3304
        %3306 = vadd.xlane.f32.xlu0 %v3243
        %v3307 = vpop.xlane.xlu0 %3306
        %3308 = vadd.xlane.f32.xlu0 %v3245
        %v3309 = vpop.xlane.xlu0 %3308
        %3310 = vadd.xlane.f32.xlu0 %v3247
        %v3311 = vpop.xlane.xlu0 %3310
        %3312 = vadd.xlane.f32.xlu0 %v3249
        %v3313 = vpop.xlane.xlu0 %3312
        %3314 = vadd.xlane.f32.xlu0 %v3251
        %v3315 = vpop.xlane.xlu0 %3314
        %3316 = vadd.xlane.f32.xlu0 %v3253
        %v3317 = vpop.xlane.xlu0 %3316
        %3318 = vadd.xlane.f32.xlu0 %v3255
        %v3319 = vpop.xlane.xlu0 %3318
        %3320 = vadd.xlane.f32.xlu0 %v3257
        %v3321 = vpop.xlane.xlu0 %3320
        %3322 = vadd.xlane.f32.xlu0 %v3259
        %v3323 = vpop.xlane.xlu0 %3322
        %v3324 = vrcp.pop %v3261
        %v3325 = vrcp.pop %v3263
        %v3326 = vrcp.pop %v3265
        %v3327 = vrcp.pop %v3267
        %v3328 = vrcp.pop %v3269
        %v3329 = vrcp.pop %v3271
        %v3330 = vrcp.pop %v3273
        %v3331 = vrcp.pop %v3275
        %v3332 = vrcp.pop %v3277
        %v3333 = vrcp.pop %v3279
        %v3334 = vrcp.pop %v3281
        %v3335 = vrcp.pop %v3283
        %v3336 = vrcp.pop %v3285
        %v3337 = vrcp.pop %v3287
        %v3338 = vrcp.pop %v3289
        %v3339 = vrcp.pop %v3291
        %v3340 = vrcp.pop %v3293
        %v3341 = vrcp.pop %v3295
        %v3342 = vrcp.pop %v3297
        %v3343 = vrcp.pop %v3299
        %v3344 = vrcp.pop %v3301
        %v3345 = vrcp.pop %v3303
        %v3346 = vrcp.pop %v3305
        %v3347 = vrcp.pop %v3307
        %v3348 = vrcp.pop %v3309
        %v3349 = vrcp.pop %v3311
        %v3350 = vrcp.pop %v3313
        %v3351 = vrcp.pop %v3315
        %v3352 = vrcp.pop %v3317
        %v3353 = vrcp.pop %v3319
        %v3354 = vrcp.pop %v3321
        %v3355 = vrcp.pop %v3323
        %v3356 = vmul.f32 %v3197, %v3324
        %v3357 = vmul.f32 %v3199, %v3325
        %v3358 = vmul.f32 %v3201, %v3326
        %v3359 = vmul.f32 %v3203, %v3327
        %v3360 = vmul.f32 %v3205, %v3328
        %v3361 = vmul.f32 %v3207, %v3329
        %v3362 = vmul.f32 %v3209, %v3330
        %v3363 = vmul.f32 %v3211, %v3331
        %v3364 = vmul.f32 %v3213, %v3332
        %v3365 = vmul.f32 %v3215, %v3333
        %v3366 = vmul.f32 %v3217, %v3334
        %v3367 = vmul.f32 %v3219, %v3335
        %v3368 = vmul.f32 %v3221, %v3336
        %v3369 = vmul.f32 %v3223, %v3337
        %v3370 = vmul.f32 %v3225, %v3338
        %v3371 = vmul.f32 %v3227, %v3339
        %v3372 = vmul.f32 %v3229, %v3340
        %v3373 = vmul.f32 %v3231, %v3341
        %v3374 = vmul.f32 %v3233, %v3342
        %v3375 = vmul.f32 %v3235, %v3343
        %v3376 = vmul.f32 %v3237, %v3344
        %v3377 = vmul.f32 %v3239, %v3345
        %v3378 = vmul.f32 %v3241, %v3346
        %v3379 = vmul.f32 %v3243, %v3347
        %v3380 = vmul.f32 %v3245, %v3348
        %v3381 = vmul.f32 %v3247, %v3349
        %v3382 = vmul.f32 %v3249, %v3350
        %v3383 = vmul.f32 %v3251, %v3351
        %v3384 = vmul.f32 %v3253, %v3352
        %v3385 = vmul.f32 %v3255, %v3353
        %v3386 = vmul.f32 %v3257, %v3354
        %v3387 = vmul.f32 %v3259, %v3355
        %vm3388 = vcmp.eq.f32.partialorder %v1180, %v3101
        %vm3389 = vcmp.eq.f32.partialorder %v1184, %v3103
        %vm3390 = vcmp.eq.f32.partialorder %v1188, %v3105
        %vm3391 = vcmp.eq.f32.partialorder %v1192, %v3107
        %vm3392 = vcmp.eq.f32.partialorder %v1196, %v3109
        %vm3393 = vcmp.eq.f32.partialorder %v1200, %v3111
        %vm3394 = vcmp.eq.f32.partialorder %v1204, %v3113
        %vm3395 = vcmp.eq.f32.partialorder %v1208, %v3115
        %vm3396 = vcmp.eq.f32.partialorder %v1212, %v3117
        %vm3397 = vcmp.eq.f32.partialorder %v1216, %v3119
        %vm3398 = vcmp.eq.f32.partialorder %v1220, %v3121
        %vm3399 = vcmp.eq.f32.partialorder %v1224, %v3123
        %vm3400 = vcmp.eq.f32.partialorder %v1228, %v3125
        %vm3401 = vcmp.eq.f32.partialorder %v1232, %v3127
        %vm3402 = vcmp.eq.f32.partialorder %v1236, %v3129
        %vm3403 = vcmp.eq.f32.partialorder %v1240, %v3131
        %vm3404 = vcmp.eq.f32.partialorder %v1244, %v3133
        %vm3405 = vcmp.eq.f32.partialorder %v1248, %v3135
        %vm3406 = vcmp.eq.f32.partialorder %v1252, %v3137
        %vm3407 = vcmp.eq.f32.partialorder %v1256, %v3139
        %vm3408 = vcmp.eq.f32.partialorder %v1260, %v3141
        %vm3409 = vcmp.eq.f32.partialorder %v1264, %v3143
        %vm3410 = vcmp.eq.f32.partialorder %v1268, %v3145
        %vm3411 = vcmp.eq.f32.partialorder %v1272, %v3147
        %vm3412 = vcmp.eq.f32.partialorder %v1276, %v3149
        %vm3413 = vcmp.eq.f32.partialorder %v1280, %v3151
        %vm3414 = vcmp.eq.f32.partialorder %v1284, %v3153
        %vm3415 = vcmp.eq.f32.partialorder %v1288, %v3155
        %vm3416 = vcmp.eq.f32.partialorder %v1292, %v3157
        %vm3417 = vcmp.eq.f32.partialorder %v1296, %v3159
        %vm3418 = vcmp.eq.f32.partialorder %v1300, %v3161
        %vm3419 = vcmp.eq.f32.partialorder %v1304, %v3163
        %v3420 = vsel %vm3388, %v1307, 128
        %v3421 = vsel %vm3389, %v1307, 128
        %v3422 = vsel %vm3390, %v1307, 128
        %v3423 = vsel %vm3391, %v1307, 128
        %v3424 = vsel %vm3392, %v1307, 128
        %v3425 = vsel %vm3393, %v1307, 128
        %v3426 = vsel %vm3394, %v1307, 128
        %v3427 = vsel %vm3395, %v1307, 128
        %v3428 = vsel %vm3396, %v1307, 128
        %v3429 = vsel %vm3397, %v1307, 128
        %v3430 = vsel %vm3398, %v1307, 128
        %v3431 = vsel %vm3399, %v1307, 128
        %v3432 = vsel %vm3400, %v1307, 128
        %v3433 = vsel %vm3401, %v1307, 128
        %v3434 = vsel %vm3402, %v1307, 128
        %v3435 = vsel %vm3403, %v1307, 128
        %v3436 = vsel %vm3404, %v1307, 128
        %v3437 = vsel %vm3405, %v1307, 128
        %v3438 = vsel %vm3406, %v1307, 128
        %v3439 = vsel %vm3407, %v1307, 128
        %v3440 = vsel %vm3408, %v1307, 128
        %v3441 = vsel %vm3409, %v1307, 128
        %v3442 = vsel %vm3410, %v1307, 128
        %v3443 = vsel %vm3411, %v1307, 128
        %v3444 = vsel %vm3412, %v1307, 128
        %v3445 = vsel %vm3413, %v1307, 128
        %v3446 = vsel %vm3414, %v1307, 128
        %v3447 = vsel %vm3415, %v1307, 128
        %v3448 = vsel %vm3416, %v1307, 128
        %v3449 = vsel %vm3417, %v1307, 128
        %v3450 = vsel %vm3418, %v1307, 128
        %v3451 = vsel %vm3419, %v1307, 128
        %v3452 = vand.u32 %v3420, 65535
        %v3453 = vshra.s32 %v3420, 16
        %v3454 = vcvt.s32.f32 %v3452
        %v3455 = vcvt.s32.f32 %v3453
        %3456 = vmin.xlane.f32.xlu0 %v3455
        %v3457 = vpop.xlane.xlu0 %3456
        %vm3458 = vcmp.eq.f32.partialorder %v3455, %v3457
        %v3459 = vsel %vm3458, %v3454, inf
        %3460 = vmin.xlane.f32.xlu0 %v3459
        %v3461 = vpop.xlane.xlu0 %3460
        %v3462 = vcvt.f32.s32 %v3461
        %v3463 = vcvt.f32.s32 %v3457
        %v3464 = vshll.u32 %v3463, 16
        %v3465 = vadd.s32 %v3464, %v3462
        %v3466 = vand.u32 %v3421, 65535
        %v3467 = vshra.s32 %v3421, 16
        %v3468 = vcvt.s32.f32 %v3466
        %v3469 = vcvt.s32.f32 %v3467
        %3470 = vmin.xlane.f32.xlu0 %v3469
        %v3471 = vpop.xlane.xlu0 %3470
        %vm3472 = vcmp.eq.f32.partialorder %v3469, %v3471
        %v3473 = vsel %vm3472, %v3468, inf
        %3474 = vmin.xlane.f32.xlu0 %v3473
        %v3475 = vpop.xlane.xlu0 %3474
        %v3476 = vcvt.f32.s32 %v3475
        %v3477 = vcvt.f32.s32 %v3471
        %v3478 = vshll.u32 %v3477, 16
        %v3479 = vadd.s32 %v3478, %v3476
        %v3480 = vand.u32 %v3422, 65535
        %v3481 = vshra.s32 %v3422, 16
        %v3482 = vcvt.s32.f32 %v3480
        %v3483 = vcvt.s32.f32 %v3481
        %3484 = vmin.xlane.f32.xlu0 %v3483
        %v3485 = vpop.xlane.xlu0 %3484
        %vm3486 = vcmp.eq.f32.partialorder %v3483, %v3485
        %v3487 = vsel %vm3486, %v3482, inf
        %3488 = vmin.xlane.f32.xlu0 %v3487
        %v3489 = vpop.xlane.xlu0 %3488
        %v3490 = vcvt.f32.s32 %v3489
        %v3491 = vcvt.f32.s32 %v3485
        %v3492 = vshll.u32 %v3491, 16
        %v3493 = vadd.s32 %v3492, %v3490
        %v3494 = vand.u32 %v3423, 65535
        %v3495 = vshra.s32 %v3423, 16
        %v3496 = vcvt.s32.f32 %v3494
        %v3497 = vcvt.s32.f32 %v3495
        %3498 = vmin.xlane.f32.xlu0 %v3497
        %v3499 = vpop.xlane.xlu0 %3498
        %vm3500 = vcmp.eq.f32.partialorder %v3497, %v3499
        %v3501 = vsel %vm3500, %v3496, inf
        %3502 = vmin.xlane.f32.xlu0 %v3501
        %v3503 = vpop.xlane.xlu0 %3502
        %v3504 = vcvt.f32.s32 %v3503
        %v3505 = vcvt.f32.s32 %v3499
        %v3506 = vshll.u32 %v3505, 16
        %v3507 = vadd.s32 %v3506, %v3504
        %v3508 = vand.u32 %v3424, 65535
        %v3509 = vshra.s32 %v3424, 16
        %v3510 = vcvt.s32.f32 %v3508
        %v3511 = vcvt.s32.f32 %v3509
        %3512 = vmin.xlane.f32.xlu0 %v3511
        %v3513 = vpop.xlane.xlu0 %3512
        %vm3514 = vcmp.eq.f32.partialorder %v3511, %v3513
        %v3515 = vsel %vm3514, %v3510, inf
        %3516 = vmin.xlane.f32.xlu0 %v3515
        %v3517 = vpop.xlane.xlu0 %3516
        %v3518 = vcvt.f32.s32 %v3517
        %v3519 = vcvt.f32.s32 %v3513
        %v3520 = vshll.u32 %v3519, 16
        %v3521 = vadd.s32 %v3520, %v3518
        %v3522 = vand.u32 %v3425, 65535
        %v3523 = vshra.s32 %v3425, 16
        %v3524 = vcvt.s32.f32 %v3522
        %v3525 = vcvt.s32.f32 %v3523
        %3526 = vmin.xlane.f32.xlu0 %v3525
        %v3527 = vpop.xlane.xlu0 %3526
        %vm3528 = vcmp.eq.f32.partialorder %v3525, %v3527
        %v3529 = vsel %vm3528, %v3524, inf
        %3530 = vmin.xlane.f32.xlu0 %v3529
        %v3531 = vpop.xlane.xlu0 %3530
        %v3532 = vcvt.f32.s32 %v3531
        %v3533 = vcvt.f32.s32 %v3527
        %v3534 = vshll.u32 %v3533, 16
        %v3535 = vadd.s32 %v3534, %v3532
        %v3536 = vand.u32 %v3426, 65535
        %v3537 = vshra.s32 %v3426, 16
        %v3538 = vcvt.s32.f32 %v3536
        %v3539 = vcvt.s32.f32 %v3537
        %3540 = vmin.xlane.f32.xlu0 %v3539
        %v3541 = vpop.xlane.xlu0 %3540
        %vm3542 = vcmp.eq.f32.partialorder %v3539, %v3541
        %v3543 = vsel %vm3542, %v3538, inf
        %3544 = vmin.xlane.f32.xlu0 %v3543
        %v3545 = vpop.xlane.xlu0 %3544
        %v3546 = vcvt.f32.s32 %v3545
        %v3547 = vcvt.f32.s32 %v3541
        %v3548 = vshll.u32 %v3547, 16
        %v3549 = vadd.s32 %v3548, %v3546
        %v3550 = vand.u32 %v3427, 65535
        %v3551 = vshra.s32 %v3427, 16
        %v3552 = vcvt.s32.f32 %v3550
        %v3553 = vcvt.s32.f32 %v3551
        %3554 = vmin.xlane.f32.xlu0 %v3553
        %v3555 = vpop.xlane.xlu0 %3554
        %vm3556 = vcmp.eq.f32.partialorder %v3553, %v3555
        %v3557 = vsel %vm3556, %v3552, inf
        %3558 = vmin.xlane.f32.xlu0 %v3557
        %v3559 = vpop.xlane.xlu0 %3558
        %v3560 = vcvt.f32.s32 %v3559
        %v3561 = vcvt.f32.s32 %v3555
        %v3562 = vshll.u32 %v3561, 16
        %v3563 = vadd.s32 %v3562, %v3560
        %v3564 = vand.u32 %v3428, 65535
        %v3565 = vshra.s32 %v3428, 16
        %v3566 = vcvt.s32.f32 %v3564
        %v3567 = vcvt.s32.f32 %v3565
        %3568 = vmin.xlane.f32.xlu0 %v3567
        %v3569 = vpop.xlane.xlu0 %3568
        %vm3570 = vcmp.eq.f32.partialorder %v3567, %v3569
        %v3571 = vsel %vm3570, %v3566, inf
        %3572 = vmin.xlane.f32.xlu0 %v3571
        %v3573 = vpop.xlane.xlu0 %3572
        %v3574 = vcvt.f32.s32 %v3573
        %v3575 = vcvt.f32.s32 %v3569
        %v3576 = vshll.u32 %v3575, 16
        %v3577 = vadd.s32 %v3576, %v3574
        %v3578 = vand.u32 %v3429, 65535
        %v3579 = vshra.s32 %v3429, 16
        %v3580 = vcvt.s32.f32 %v3578
        %v3581 = vcvt.s32.f32 %v3579
        %3582 = vmin.xlane.f32.xlu0 %v3581
        %v3583 = vpop.xlane.xlu0 %3582
        %vm3584 = vcmp.eq.f32.partialorder %v3581, %v3583
        %v3585 = vsel %vm3584, %v3580, inf
        %3586 = vmin.xlane.f32.xlu0 %v3585
        %v3587 = vpop.xlane.xlu0 %3586
        %v3588 = vcvt.f32.s32 %v3587
        %v3589 = vcvt.f32.s32 %v3583
        %v3590 = vshll.u32 %v3589, 16
        %v3591 = vadd.s32 %v3590, %v3588
        %v3592 = vand.u32 %v3430, 65535
        %v3593 = vshra.s32 %v3430, 16
        %v3594 = vcvt.s32.f32 %v3592
        %v3595 = vcvt.s32.f32 %v3593
        %3596 = vmin.xlane.f32.xlu0 %v3595
        %v3597 = vpop.xlane.xlu0 %3596
        %vm3598 = vcmp.eq.f32.partialorder %v3595, %v3597
        %v3599 = vsel %vm3598, %v3594, inf
        %3600 = vmin.xlane.f32.xlu0 %v3599
        %v3601 = vpop.xlane.xlu0 %3600
        %v3602 = vcvt.f32.s32 %v3601
        %v3603 = vcvt.f32.s32 %v3597
        %v3604 = vshll.u32 %v3603, 16
        %v3605 = vadd.s32 %v3604, %v3602
        %v3606 = vand.u32 %v3431, 65535
        %v3607 = vshra.s32 %v3431, 16
        %v3608 = vcvt.s32.f32 %v3606
        %v3609 = vcvt.s32.f32 %v3607
        %3610 = vmin.xlane.f32.xlu0 %v3609
        %v3611 = vpop.xlane.xlu0 %3610
        %vm3612 = vcmp.eq.f32.partialorder %v3609, %v3611
        %v3613 = vsel %vm3612, %v3608, inf
        %3614 = vmin.xlane.f32.xlu0 %v3613
        %v3615 = vpop.xlane.xlu0 %3614
        %v3616 = vcvt.f32.s32 %v3615
        %v3617 = vcvt.f32.s32 %v3611
        %v3618 = vshll.u32 %v3617, 16
        %v3619 = vadd.s32 %v3618, %v3616
        %v3620 = vand.u32 %v3432, 65535
        %v3621 = vshra.s32 %v3432, 16
        %v3622 = vcvt.s32.f32 %v3620
        %v3623 = vcvt.s32.f32 %v3621
        %3624 = vmin.xlane.f32.xlu0 %v3623
        %v3625 = vpop.xlane.xlu0 %3624
        %vm3626 = vcmp.eq.f32.partialorder %v3623, %v3625
        %v3627 = vsel %vm3626, %v3622, inf
        %3628 = vmin.xlane.f32.xlu0 %v3627
        %v3629 = vpop.xlane.xlu0 %3628
        %v3630 = vcvt.f32.s32 %v3629
        %v3631 = vcvt.f32.s32 %v3625
        %v3632 = vshll.u32 %v3631, 16
        %v3633 = vadd.s32 %v3632, %v3630
        %v3634 = vand.u32 %v3433, 65535
        %v3635 = vshra.s32 %v3433, 16
        %v3636 = vcvt.s32.f32 %v3634
        %v3637 = vcvt.s32.f32 %v3635
        %3638 = vmin.xlane.f32.xlu0 %v3637
        %v3639 = vpop.xlane.xlu0 %3638
        %vm3640 = vcmp.eq.f32.partialorder %v3637, %v3639
        %v3641 = vsel %vm3640, %v3636, inf
        %3642 = vmin.xlane.f32.xlu0 %v3641
        %v3643 = vpop.xlane.xlu0 %3642
        %v3644 = vcvt.f32.s32 %v3643
        %v3645 = vcvt.f32.s32 %v3639
        %v3646 = vshll.u32 %v3645, 16
        %v3647 = vadd.s32 %v3646, %v3644
        %v3648 = vand.u32 %v3434, 65535
        %v3649 = vshra.s32 %v3434, 16
        %v3650 = vcvt.s32.f32 %v3648
        %v3651 = vcvt.s32.f32 %v3649
        %3652 = vmin.xlane.f32.xlu0 %v3651
        %v3653 = vpop.xlane.xlu0 %3652
        %vm3654 = vcmp.eq.f32.partialorder %v3651, %v3653
        %v3655 = vsel %vm3654, %v3650, inf
        %3656 = vmin.xlane.f32.xlu0 %v3655
        %v3657 = vpop.xlane.xlu0 %3656
        %v3658 = vcvt.f32.s32 %v3657
        %v3659 = vcvt.f32.s32 %v3653
        %v3660 = vshll.u32 %v3659, 16
        %v3661 = vadd.s32 %v3660, %v3658
        %v3662 = vand.u32 %v3435, 65535
        %v3663 = vshra.s32 %v3435, 16
        %v3664 = vcvt.s32.f32 %v3662
        %v3665 = vcvt.s32.f32 %v3663
        %3666 = vmin.xlane.f32.xlu0 %v3665
        %v3667 = vpop.xlane.xlu0 %3666
        %vm3668 = vcmp.eq.f32.partialorder %v3665, %v3667
        %v3669 = vsel %vm3668, %v3664, inf
        %3670 = vmin.xlane.f32.xlu0 %v3669
        %v3671 = vpop.xlane.xlu0 %3670
        %v3672 = vcvt.f32.s32 %v3671
        %v3673 = vcvt.f32.s32 %v3667
        %v3674 = vshll.u32 %v3673, 16
        %v3675 = vadd.s32 %v3674, %v3672
        %v3676 = vand.u32 %v3436, 65535
        %v3677 = vshra.s32 %v3436, 16
        %v3678 = vcvt.s32.f32 %v3676
        %v3679 = vcvt.s32.f32 %v3677
        %3680 = vmin.xlane.f32.xlu0 %v3679
        %v3681 = vpop.xlane.xlu0 %3680
        %vm3682 = vcmp.eq.f32.partialorder %v3679, %v3681
        %v3683 = vsel %vm3682, %v3678, inf
        %3684 = vmin.xlane.f32.xlu0 %v3683
        %v3685 = vpop.xlane.xlu0 %3684
        %v3686 = vcvt.f32.s32 %v3685
        %v3687 = vcvt.f32.s32 %v3681
        %v3688 = vshll.u32 %v3687, 16
        %v3689 = vadd.s32 %v3688, %v3686
        %v3690 = vand.u32 %v3437, 65535
        %v3691 = vshra.s32 %v3437, 16
        %v3692 = vcvt.s32.f32 %v3690
        %v3693 = vcvt.s32.f32 %v3691
        %3694 = vmin.xlane.f32.xlu0 %v3693
        %v3695 = vpop.xlane.xlu0 %3694
        %vm3696 = vcmp.eq.f32.partialorder %v3693, %v3695
        %v3697 = vsel %vm3696, %v3692, inf
        %3698 = vmin.xlane.f32.xlu0 %v3697
        %v3699 = vpop.xlane.xlu0 %3698
        %v3700 = vcvt.f32.s32 %v3699
        %v3701 = vcvt.f32.s32 %v3695
        %v3702 = vshll.u32 %v3701, 16
        %v3703 = vadd.s32 %v3702, %v3700
        %v3704 = vand.u32 %v3438, 65535
        %v3705 = vshra.s32 %v3438, 16
        %v3706 = vcvt.s32.f32 %v3704
        %v3707 = vcvt.s32.f32 %v3705
        %3708 = vmin.xlane.f32.xlu0 %v3707
        %v3709 = vpop.xlane.xlu0 %3708
        %vm3710 = vcmp.eq.f32.partialorder %v3707, %v3709
        %v3711 = vsel %vm3710, %v3706, inf
        %3712 = vmin.xlane.f32.xlu0 %v3711
        %v3713 = vpop.xlane.xlu0 %3712
        %v3714 = vcvt.f32.s32 %v3713
        %v3715 = vcvt.f32.s32 %v3709
        %v3716 = vshll.u32 %v3715, 16
        %v3717 = vadd.s32 %v3716, %v3714
        %v3718 = vand.u32 %v3439, 65535
        %v3719 = vshra.s32 %v3439, 16
        %v3720 = vcvt.s32.f32 %v3718
        %v3721 = vcvt.s32.f32 %v3719
        %3722 = vmin.xlane.f32.xlu0 %v3721
        %v3723 = vpop.xlane.xlu0 %3722
        %vm3724 = vcmp.eq.f32.partialorder %v3721, %v3723
        %v3725 = vsel %vm3724, %v3720, inf
        %3726 = vmin.xlane.f32.xlu0 %v3725
        %v3727 = vpop.xlane.xlu0 %3726
        %v3728 = vcvt.f32.s32 %v3727
        %v3729 = vcvt.f32.s32 %v3723
        %v3730 = vshll.u32 %v3729, 16
        %v3731 = vadd.s32 %v3730, %v3728
        %v3732 = vand.u32 %v3440, 65535
        %v3733 = vshra.s32 %v3440, 16
        %v3734 = vcvt.s32.f32 %v3732
        %v3735 = vcvt.s32.f32 %v3733
        %3736 = vmin.xlane.f32.xlu0 %v3735
        %v3737 = vpop.xlane.xlu0 %3736
        %vm3738 = vcmp.eq.f32.partialorder %v3735, %v3737
        %v3739 = vsel %vm3738, %v3734, inf
        %3740 = vmin.xlane.f32.xlu0 %v3739
        %v3741 = vpop.xlane.xlu0 %3740
        %v3742 = vcvt.f32.s32 %v3741
        %v3743 = vcvt.f32.s32 %v3737
        %v3744 = vshll.u32 %v3743, 16
        %v3745 = vadd.s32 %v3744, %v3742
        %v3746 = vand.u32 %v3441, 65535
        %v3747 = vshra.s32 %v3441, 16
        %v3748 = vcvt.s32.f32 %v3746
        %v3749 = vcvt.s32.f32 %v3747
        %3750 = vmin.xlane.f32.xlu0 %v3749
        %v3751 = vpop.xlane.xlu0 %3750
        %vm3752 = vcmp.eq.f32.partialorder %v3749, %v3751
        %v3753 = vsel %vm3752, %v3748, inf
        %3754 = vmin.xlane.f32.xlu0 %v3753
        %v3755 = vpop.xlane.xlu0 %3754
        %v3756 = vcvt.f32.s32 %v3755
        %v3757 = vcvt.f32.s32 %v3751
        %v3758 = vshll.u32 %v3757, 16
        %v3759 = vadd.s32 %v3758, %v3756
        %v3760 = vand.u32 %v3442, 65535
        %v3761 = vshra.s32 %v3442, 16
        %v3762 = vcvt.s32.f32 %v3760
        %v3763 = vcvt.s32.f32 %v3761
        %3764 = vmin.xlane.f32.xlu0 %v3763
        %v3765 = vpop.xlane.xlu0 %3764
        %vm3766 = vcmp.eq.f32.partialorder %v3763, %v3765
        %v3767 = vsel %vm3766, %v3762, inf
        %3768 = vmin.xlane.f32.xlu0 %v3767
        %v3769 = vpop.xlane.xlu0 %3768
        %v3770 = vcvt.f32.s32 %v3769
        %v3771 = vcvt.f32.s32 %v3765
        %v3772 = vshll.u32 %v3771, 16
        %v3773 = vadd.s32 %v3772, %v3770
        %v3774 = vand.u32 %v3443, 65535
        %v3775 = vshra.s32 %v3443, 16
        %v3776 = vcvt.s32.f32 %v3774
        %v3777 = vcvt.s32.f32 %v3775
        %3778 = vmin.xlane.f32.xlu0 %v3777
        %v3779 = vpop.xlane.xlu0 %3778
        %vm3780 = vcmp.eq.f32.partialorder %v3777, %v3779
        %v3781 = vsel %vm3780, %v3776, inf
        %3782 = vmin.xlane.f32.xlu0 %v3781
        %v3783 = vpop.xlane.xlu0 %3782
        %v3784 = vcvt.f32.s32 %v3783
        %v3785 = vcvt.f32.s32 %v3779
        %v3786 = vshll.u32 %v3785, 16
        %v3787 = vadd.s32 %v3786, %v3784
        %v3788 = vand.u32 %v3444, 65535
        %v3789 = vshra.s32 %v3444, 16
        %v3790 = vcvt.s32.f32 %v3788
        %v3791 = vcvt.s32.f32 %v3789
        %3792 = vmin.xlane.f32.xlu0 %v3791
        %v3793 = vpop.xlane.xlu0 %3792
        %vm3794 = vcmp.eq.f32.partialorder %v3791, %v3793
        %v3795 = vsel %vm3794, %v3790, inf
        %3796 = vmin.xlane.f32.xlu0 %v3795
        %v3797 = vpop.xlane.xlu0 %3796
        %v3798 = vcvt.f32.s32 %v3797
        %v3799 = vcvt.f32.s32 %v3793
        %v3800 = vshll.u32 %v3799, 16
        %v3801 = vadd.s32 %v3800, %v3798
        %v3802 = vand.u32 %v3445, 65535
        %v3803 = vshra.s32 %v3445, 16
        %v3804 = vcvt.s32.f32 %v3802
        %v3805 = vcvt.s32.f32 %v3803
        %3806 = vmin.xlane.f32.xlu0 %v3805
        %v3807 = vpop.xlane.xlu0 %3806
        %vm3808 = vcmp.eq.f32.partialorder %v3805, %v3807
        %v3809 = vsel %vm3808, %v3804, inf
        %3810 = vmin.xlane.f32.xlu0 %v3809
        %v3811 = vpop.xlane.xlu0 %3810
        %v3812 = vcvt.f32.s32 %v3811
        %v3813 = vcvt.f32.s32 %v3807
        %v3814 = vshll.u32 %v3813, 16
        %v3815 = vadd.s32 %v3814, %v3812
        %v3816 = vand.u32 %v3446, 65535
        %v3817 = vshra.s32 %v3446, 16
        %v3818 = vcvt.s32.f32 %v3816
        %v3819 = vcvt.s32.f32 %v3817
        %3820 = vmin.xlane.f32.xlu0 %v3819
        %v3821 = vpop.xlane.xlu0 %3820
        %vm3822 = vcmp.eq.f32.partialorder %v3819, %v3821
        %v3823 = vsel %vm3822, %v3818, inf
        %3824 = vmin.xlane.f32.xlu0 %v3823
        %v3825 = vpop.xlane.xlu0 %3824
        %v3826 = vcvt.f32.s32 %v3825
        %v3827 = vcvt.f32.s32 %v3821
        %v3828 = vshll.u32 %v3827, 16
        %v3829 = vadd.s32 %v3828, %v3826
        %v3830 = vand.u32 %v3447, 65535
        %v3831 = vshra.s32 %v3447, 16
        %v3832 = vcvt.s32.f32 %v3830
        %v3833 = vcvt.s32.f32 %v3831
        %3834 = vmin.xlane.f32.xlu0 %v3833
        %v3835 = vpop.xlane.xlu0 %3834
        %vm3836 = vcmp.eq.f32.partialorder %v3833, %v3835
        %v3837 = vsel %vm3836, %v3832, inf
        %3838 = vmin.xlane.f32.xlu0 %v3837
        %v3839 = vpop.xlane.xlu0 %3838
        %v3840 = vcvt.f32.s32 %v3839
        %v3841 = vcvt.f32.s32 %v3835
        %v3842 = vshll.u32 %v3841, 16
        %v3843 = vadd.s32 %v3842, %v3840
        %v3844 = vand.u32 %v3448, 65535
        %v3845 = vshra.s32 %v3448, 16
        %v3846 = vcvt.s32.f32 %v3844
        %v3847 = vcvt.s32.f32 %v3845
        %3848 = vmin.xlane.f32.xlu0 %v3847
        %v3849 = vpop.xlane.xlu0 %3848
        %vm3850 = vcmp.eq.f32.partialorder %v3847, %v3849
        %v3851 = vsel %vm3850, %v3846, inf
        %3852 = vmin.xlane.f32.xlu0 %v3851
        %v3853 = vpop.xlane.xlu0 %3852
        %v3854 = vcvt.f32.s32 %v3853
        %v3855 = vcvt.f32.s32 %v3849
        %v3856 = vshll.u32 %v3855, 16
        %v3857 = vadd.s32 %v3856, %v3854
        %v3858 = vand.u32 %v3449, 65535
        %v3859 = vshra.s32 %v3449, 16
        %v3860 = vcvt.s32.f32 %v3858
        %v3861 = vcvt.s32.f32 %v3859
        %3862 = vmin.xlane.f32.xlu0 %v3861
        %v3863 = vpop.xlane.xlu0 %3862
        %vm3864 = vcmp.eq.f32.partialorder %v3861, %v3863
        %v3865 = vsel %vm3864, %v3860, inf
        %3866 = vmin.xlane.f32.xlu0 %v3865
        %v3867 = vpop.xlane.xlu0 %3866
        %v3868 = vcvt.f32.s32 %v3867
        %v3869 = vcvt.f32.s32 %v3863
        %v3870 = vshll.u32 %v3869, 16
        %v3871 = vadd.s32 %v3870, %v3868
        %v3872 = vand.u32 %v3450, 65535
        %v3873 = vshra.s32 %v3450, 16
        %v3874 = vcvt.s32.f32 %v3872
        %v3875 = vcvt.s32.f32 %v3873
        %3876 = vmin.xlane.f32.xlu0 %v3875
        %v3877 = vpop.xlane.xlu0 %3876
        %vm3878 = vcmp.eq.f32.partialorder %v3875, %v3877
        %v3879 = vsel %vm3878, %v3874, inf
        %3880 = vmin.xlane.f32.xlu0 %v3879
        %v3881 = vpop.xlane.xlu0 %3880
        %v3882 = vcvt.f32.s32 %v3881
        %v3883 = vcvt.f32.s32 %v3877
        %v3884 = vshll.u32 %v3883, 16
        %v3885 = vadd.s32 %v3884, %v3882
        %v3886 = vand.u32 %v3451, 65535
        %v3887 = vshra.s32 %v3451, 16
        %v3888 = vcvt.s32.f32 %v3886
        %v3889 = vcvt.s32.f32 %v3887
        %3890 = vmin.xlane.f32.xlu0 %v3889
        %v3891 = vpop.xlane.xlu0 %3890
        %vm3892 = vcmp.eq.f32.partialorder %v3889, %v3891
        %v3893 = vsel %vm3892, %v3888, inf
        %3894 = vmin.xlane.f32.xlu0 %v3893
        %v3895 = vpop.xlane.xlu0 %3894
        %v3896 = vcvt.f32.s32 %v3895
        %v3897 = vcvt.f32.s32 %v3891
        %v3898 = vshll.u32 %v3897, 16
        %v3899 = vadd.s32 %v3898, %v3896
        %vm3900 = vcmp.eq.s32.totalorder %v1307, %v3465
        %vm3901 = vcmp.eq.s32.totalorder %v1307, %v3479
        %vm3902 = vcmp.eq.s32.totalorder %v1307, %v3493
        %vm3903 = vcmp.eq.s32.totalorder %v1307, %v3507
        %vm3904 = vcmp.eq.s32.totalorder %v1307, %v3521
        %vm3905 = vcmp.eq.s32.totalorder %v1307, %v3535
        %vm3906 = vcmp.eq.s32.totalorder %v1307, %v3549
        %vm3907 = vcmp.eq.s32.totalorder %v1307, %v3563
        %vm3908 = vcmp.eq.s32.totalorder %v1307, %v3577
        %vm3909 = vcmp.eq.s32.totalorder %v1307, %v3591
        %vm3910 = vcmp.eq.s32.totalorder %v1307, %v3605
        %vm3911 = vcmp.eq.s32.totalorder %v1307, %v3619
        %vm3912 = vcmp.eq.s32.totalorder %v1307, %v3633
        %vm3913 = vcmp.eq.s32.totalorder %v1307, %v3647
        %vm3914 = vcmp.eq.s32.totalorder %v1307, %v3661
        %vm3915 = vcmp.eq.s32.totalorder %v1307, %v3675
        %vm3916 = vcmp.eq.s32.totalorder %v1307, %v3689
        %vm3917 = vcmp.eq.s32.totalorder %v1307, %v3703
        %vm3918 = vcmp.eq.s32.totalorder %v1307, %v3717
        %vm3919 = vcmp.eq.s32.totalorder %v1307, %v3731
        %vm3920 = vcmp.eq.s32.totalorder %v1307, %v3745
        %vm3921 = vcmp.eq.s32.totalorder %v1307, %v3759
        %vm3922 = vcmp.eq.s32.totalorder %v1307, %v3773
        %vm3923 = vcmp.eq.s32.totalorder %v1307, %v3787
        %vm3924 = vcmp.eq.s32.totalorder %v1307, %v3801
        %vm3925 = vcmp.eq.s32.totalorder %v1307, %v3815
        %vm3926 = vcmp.eq.s32.totalorder %v1307, %v3829
        %vm3927 = vcmp.eq.s32.totalorder %v1307, %v3843
        %vm3928 = vcmp.eq.s32.totalorder %v1307, %v3857
        %vm3929 = vcmp.eq.s32.totalorder %v1307, %v3871
        %vm3930 = vcmp.eq.s32.totalorder %v1307, %v3885
        %vm3931 = vcmp.eq.s32.totalorder %v1307, %v3899
        %v3932 = vsel %vm3900, 1, 0
        %v3933 = vsel %vm3901, 1, 0
        %v3934 = vsel %vm3902, 1, 0
        %v3935 = vsel %vm3903, 1, 0
        %v3936 = vsel %vm3904, 1, 0
        %v3937 = vsel %vm3905, 1, 0
        %v3938 = vsel %vm3906, 1, 0
        %v3939 = vsel %vm3907, 1, 0
        %v3940 = vsel %vm3908, 1, 0
        %v3941 = vsel %vm3909, 1, 0
        %v3942 = vsel %vm3910, 1, 0
        %v3943 = vsel %vm3911, 1, 0
        %v3944 = vsel %vm3912, 1, 0
        %v3945 = vsel %vm3913, 1, 0
        %v3946 = vsel %vm3914, 1, 0
        %v3947 = vsel %vm3915, 1, 0
        %v3948 = vsel %vm3916, 1, 0
        %v3949 = vsel %vm3917, 1, 0
        %v3950 = vsel %vm3918, 1, 0
        %v3951 = vsel %vm3919, 1, 0
        %v3952 = vsel %vm3920, 1, 0
        %v3953 = vsel %vm3921, 1, 0
        %v3954 = vsel %vm3922, 1, 0
        %v3955 = vsel %vm3923, 1, 0
        %v3956 = vsel %vm3924, 1, 0
        %v3957 = vsel %vm3925, 1, 0
        %v3958 = vsel %vm3926, 1, 0
        %v3959 = vsel %vm3927, 1, 0
        %v3960 = vsel %vm3928, 1, 0
        %v3961 = vsel %vm3929, 1, 0
        %v3962 = vsel %vm3930, 1, 0
        %v3963 = vsel %vm3931, 1, 0
        %v3964 = vcvt.s32.f32 %v3932
        %v3965 = vcvt.s32.f32 %v3933
        %v3966 = vcvt.s32.f32 %v3934
        %v3967 = vcvt.s32.f32 %v3935
        %v3968 = vcvt.s32.f32 %v3936
        %v3969 = vcvt.s32.f32 %v3937
        %v3970 = vcvt.s32.f32 %v3938
        %v3971 = vcvt.s32.f32 %v3939
        %v3972 = vcvt.s32.f32 %v3940
        %v3973 = vcvt.s32.f32 %v3941
        %v3974 = vcvt.s32.f32 %v3942
        %v3975 = vcvt.s32.f32 %v3943
        %v3976 = vcvt.s32.f32 %v3944
        %v3977 = vcvt.s32.f32 %v3945
        %v3978 = vcvt.s32.f32 %v3946
        %v3979 = vcvt.s32.f32 %v3947
        %v3980 = vcvt.s32.f32 %v3948
        %v3981 = vcvt.s32.f32 %v3949
        %v3982 = vcvt.s32.f32 %v3950
        %v3983 = vcvt.s32.f32 %v3951
        %v3984 = vcvt.s32.f32 %v3952
        %v3985 = vcvt.s32.f32 %v3953
        %v3986 = vcvt.s32.f32 %v3954
        %v3987 = vcvt.s32.f32 %v3955
        %v3988 = vcvt.s32.f32 %v3956
        %v3989 = vcvt.s32.f32 %v3957
        %v3990 = vcvt.s32.f32 %v3958
        %v3991 = vcvt.s32.f32 %v3959
        %v3992 = vcvt.s32.f32 %v3960
        %v3993 = vcvt.s32.f32 %v3961
        %v3994 = vcvt.s32.f32 %v3962
        %v3995 = vcvt.s32.f32 %v3963
        %3996 = vmax.xlane.f32.xlu0 %v1181
        %v3997 = vpop.xlane.xlu0 %3996
        %3998 = vmax.xlane.f32.xlu0 %v1185
        %v3999 = vpop.xlane.xlu0 %3998
        %4000 = vmax.xlane.f32.xlu0 %v1189
        %v4001 = vpop.xlane.xlu0 %4000
        %4002 = vmax.xlane.f32.xlu0 %v1193
        %v4003 = vpop.xlane.xlu0 %4002
        %4004 = vmax.xlane.f32.xlu0 %v1197
        %v4005 = vpop.xlane.xlu0 %4004
        %4006 = vmax.xlane.f32.xlu0 %v1201
        %v4007 = vpop.xlane.xlu0 %4006
        %4008 = vmax.xlane.f32.xlu0 %v1205
        %v4009 = vpop.xlane.xlu0 %4008
        %4010 = vmax.xlane.f32.xlu0 %v1209
        %v4011 = vpop.xlane.xlu0 %4010
        %4012 = vmax.xlane.f32.xlu0 %v1213
        %v4013 = vpop.xlane.xlu0 %4012
        %4014 = vmax.xlane.f32.xlu0 %v1217
        %v4015 = vpop.xlane.xlu0 %4014
        %4016 = vmax.xlane.f32.xlu0 %v1221
        %v4017 = vpop.xlane.xlu0 %4016
        %4018 = vmax.xlane.f32.xlu0 %v1225
        %v4019 = vpop.xlane.xlu0 %4018
        %4020 = vmax.xlane.f32.xlu0 %v1229
        %v4021 = vpop.xlane.xlu0 %4020
        %4022 = vmax.xlane.f32.xlu0 %v1233
        %v4023 = vpop.xlane.xlu0 %4022
        %4024 = vmax.xlane.f32.xlu0 %v1237
        %v4025 = vpop.xlane.xlu0 %4024
        %4026 = vmax.xlane.f32.xlu0 %v1241
        %v4027 = vpop.xlane.xlu0 %4026
        %4028 = vmax.xlane.f32.xlu0 %v1245
        %v4029 = vpop.xlane.xlu0 %4028
        %4030 = vmax.xlane.f32.xlu0 %v1249
        %v4031 = vpop.xlane.xlu0 %4030
        %4032 = vmax.xlane.f32.xlu0 %v1253
        %v4033 = vpop.xlane.xlu0 %4032
        %4034 = vmax.xlane.f32.xlu0 %v1257
        %v4035 = vpop.xlane.xlu0 %4034
        %4036 = vmax.xlane.f32.xlu0 %v1261
        %v4037 = vpop.xlane.xlu0 %4036
        %4038 = vmax.xlane.f32.xlu0 %v1265
        %v4039 = vpop.xlane.xlu0 %4038
        %4040 = vmax.xlane.f32.xlu0 %v1269
        %v4041 = vpop.xlane.xlu0 %4040
        %4042 = vmax.xlane.f32.xlu0 %v1273
        %v4043 = vpop.xlane.xlu0 %4042
        %4044 = vmax.xlane.f32.xlu0 %v1277
        %v4045 = vpop.xlane.xlu0 %4044
        %4046 = vmax.xlane.f32.xlu0 %v1281
        %v4047 = vpop.xlane.xlu0 %4046
        %4048 = vmax.xlane.f32.xlu0 %v1285
        %v4049 = vpop.xlane.xlu0 %4048
        %4050 = vmax.xlane.f32.xlu0 %v1289
        %v4051 = vpop.xlane.xlu0 %4050
        %4052 = vmax.xlane.f32.xlu0 %v1293
        %v4053 = vpop.xlane.xlu0 %4052
        %4054 = vmax.xlane.f32.xlu0 %v1297
        %v4055 = vpop.xlane.xlu0 %4054
        %4056 = vmax.xlane.f32.xlu0 %v1301
        %v4057 = vpop.xlane.xlu0 %4056
        %4058 = vmax.xlane.f32.xlu0 %v1305
        %v4059 = vpop.xlane.xlu0 %4058
        %v4060 = vsub.f32 %v1181, %v3997
        %v4061 = vsub.f32 %v1185, %v3999
        %v4062 = vsub.f32 %v1189, %v4001
        %v4063 = vsub.f32 %v1193, %v4003
        %v4064 = vsub.f32 %v1197, %v4005
        %v4065 = vsub.f32 %v1201, %v4007
        %v4066 = vsub.f32 %v1205, %v4009
        %v4067 = vsub.f32 %v1209, %v4011
        %v4068 = vsub.f32 %v1213, %v4013
        %v4069 = vsub.f32 %v1217, %v4015
        %v4070 = vsub.f32 %v1221, %v4017
        %v4071 = vsub.f32 %v1225, %v4019
        %v4072 = vsub.f32 %v1229, %v4021
        %v4073 = vsub.f32 %v1233, %v4023
        %v4074 = vsub.f32 %v1237, %v4025
        %v4075 = vsub.f32 %v1241, %v4027
        %v4076 = vsub.f32 %v1245, %v4029
        %v4077 = vsub.f32 %v1249, %v4031
        %v4078 = vsub.f32 %v1253, %v4033
        %v4079 = vsub.f32 %v1257, %v4035
        %v4080 = vsub.f32 %v1261, %v4037
        %v4081 = vsub.f32 %v1265, %v4039
        %v4082 = vsub.f32 %v1269, %v4041
        %v4083 = vsub.f32 %v1273, %v4043
        %v4084 = vsub.f32 %v1277, %v4045
        %v4085 = vsub.f32 %v1281, %v4047
        %v4086 = vsub.f32 %v1285, %v4049
        %v4087 = vsub.f32 %v1289, %v4051
        %v4088 = vsub.f32 %v1293, %v4053
        %v4089 = vsub.f32 %v1297, %v4055
        %v4090 = vsub.f32 %v1301, %v4057
        %v4091 = vsub.f32 %v1305, %v4059
        %v4092 = vmul.f32 %v4060, 1.442695
        %v4093 = vpow.pop %v4092
        %v4094 = vmul.f32 %v4061, 1.442695
        %v4095 = vpow.pop %v4094
        %v4096 = vmul.f32 %v4062, 1.442695
        %v4097 = vpow.pop %v4096
        %v4098 = vmul.f32 %v4063, 1.442695
        %v4099 = vpow.pop %v4098
        %v4100 = vmul.f32 %v4064, 1.442695
        %v4101 = vpow.pop %v4100
        %v4102 = vmul.f32 %v4065, 1.442695
        %v4103 = vpow.pop %v4102
        %v4104 = vmul.f32 %v4066, 1.442695
        %v4105 = vpow.pop %v4104
        %v4106 = vmul.f32 %v4067, 1.442695
        %v4107 = vpow.pop %v4106
        %v4108 = vmul.f32 %v4068, 1.442695
        %v4109 = vpow.pop %v4108
        %v4110 = vmul.f32 %v4069, 1.442695
        %v4111 = vpow.pop %v4110
        %v4112 = vmul.f32 %v4070, 1.442695
        %v4113 = vpow.pop %v4112
        %v4114 = vmul.f32 %v4071, 1.442695
        %v4115 = vpow.pop %v4114
        %v4116 = vmul.f32 %v4072, 1.442695
        %v4117 = vpow.pop %v4116
        %v4118 = vmul.f32 %v4073, 1.442695
        %v4119 = vpow.pop %v4118
        %v4120 = vmul.f32 %v4074, 1.442695
        %v4121 = vpow.pop %v4120
        %v4122 = vmul.f32 %v4075, 1.442695
        %v4123 = vpow.pop %v4122
        %v4124 = vmul.f32 %v4076, 1.442695
        %v4125 = vpow.pop %v4124
        %v4126 = vmul.f32 %v4077, 1.442695
        %v4127 = vpow.pop %v4126
        %v4128 = vmul.f32 %v4078, 1.442695
        %v4129 = vpow.pop %v4128
        %v4130 = vmul.f32 %v4079, 1.442695
        %v4131 = vpow.pop %v4130
        %v4132 = vmul.f32 %v4080, 1.442695
        %v4133 = vpow.pop %v4132
        %v4134 = vmul.f32 %v4081, 1.442695
        %v4135 = vpow.pop %v4134
        %v4136 = vmul.f32 %v4082, 1.442695
        %v4137 = vpow.pop %v4136
        %v4138 = vmul.f32 %v4083, 1.442695
        %v4139 = vpow.pop %v4138
        %v4140 = vmul.f32 %v4084, 1.442695
        %v4141 = vpow.pop %v4140
        %v4142 = vmul.f32 %v4085, 1.442695
        %v4143 = vpow.pop %v4142
        %v4144 = vmul.f32 %v4086, 1.442695
        %v4145 = vpow.pop %v4144
        %v4146 = vmul.f32 %v4087, 1.442695
        %v4147 = vpow.pop %v4146
        %v4148 = vmul.f32 %v4088, 1.442695
        %v4149 = vpow.pop %v4148
        %v4150 = vmul.f32 %v4089, 1.442695
        %v4151 = vpow.pop %v4150
        %v4152 = vmul.f32 %v4090, 1.442695
        %v4153 = vpow.pop %v4152
        %v4154 = vmul.f32 %v4091, 1.442695
        %v4155 = vpow.pop %v4154
        %4156 = vadd.xlane.f32.xlu0 %v4093
        %v4157 = vpop.xlane.xlu0 %4156
        %4158 = vadd.xlane.f32.xlu0 %v4095
        %v4159 = vpop.xlane.xlu0 %4158
        %4160 = vadd.xlane.f32.xlu0 %v4097
        %v4161 = vpop.xlane.xlu0 %4160
        %4162 = vadd.xlane.f32.xlu0 %v4099
        %v4163 = vpop.xlane.xlu0 %4162
        %4164 = vadd.xlane.f32.xlu0 %v4101
        %v4165 = vpop.xlane.xlu0 %4164
        %4166 = vadd.xlane.f32.xlu0 %v4103
        %v4167 = vpop.xlane.xlu0 %4166
        %4168 = vadd.xlane.f32.xlu0 %v4105
        %v4169 = vpop.xlane.xlu0 %4168
        %4170 = vadd.xlane.f32.xlu0 %v4107
        %v4171 = vpop.xlane.xlu0 %4170
        %4172 = vadd.xlane.f32.xlu0 %v4109
        %v4173 = vpop.xlane.xlu0 %4172
        %4174 = vadd.xlane.f32.xlu0 %v4111
        %v4175 = vpop.xlane.xlu0 %4174
        %4176 = vadd.xlane.f32.xlu0 %v4113
        %v4177 = vpop.xlane.xlu0 %4176
        %4178 = vadd.xlane.f32.xlu0 %v4115
        %v4179 = vpop.xlane.xlu0 %4178
        %4180 = vadd.xlane.f32.xlu0 %v4117
        %v4181 = vpop.xlane.xlu0 %4180
        %4182 = vadd.xlane.f32.xlu0 %v4119
        %v4183 = vpop.xlane.xlu0 %4182
        %4184 = vadd.xlane.f32.xlu0 %v4121
        %v4185 = vpop.xlane.xlu0 %4184
        %4186 = vadd.xlane.f32.xlu0 %v4123
        %v4187 = vpop.xlane.xlu0 %4186
        %4188 = vadd.xlane.f32.xlu0 %v4125
        %v4189 = vpop.xlane.xlu0 %4188
        %4190 = vadd.xlane.f32.xlu0 %v4127
        %v4191 = vpop.xlane.xlu0 %4190
        %4192 = vadd.xlane.f32.xlu0 %v4129
        %v4193 = vpop.xlane.xlu0 %4192
        %4194 = vadd.xlane.f32.xlu0 %v4131
        %v4195 = vpop.xlane.xlu0 %4194
        %4196 = vadd.xlane.f32.xlu0 %v4133
        %v4197 = vpop.xlane.xlu0 %4196
        %4198 = vadd.xlane.f32.xlu0 %v4135
        %v4199 = vpop.xlane.xlu0 %4198
        %4200 = vadd.xlane.f32.xlu0 %v4137
        %v4201 = vpop.xlane.xlu0 %4200
        %4202 = vadd.xlane.f32.xlu0 %v4139
        %v4203 = vpop.xlane.xlu0 %4202
        %4204 = vadd.xlane.f32.xlu0 %v4141
        %v4205 = vpop.xlane.xlu0 %4204
        %4206 = vadd.xlane.f32.xlu0 %v4143
        %v4207 = vpop.xlane.xlu0 %4206
        %4208 = vadd.xlane.f32.xlu0 %v4145
        %v4209 = vpop.xlane.xlu0 %4208
        %4210 = vadd.xlane.f32.xlu0 %v4147
        %v4211 = vpop.xlane.xlu0 %4210
        %4212 = vadd.xlane.f32.xlu0 %v4149
        %v4213 = vpop.xlane.xlu0 %4212
        %4214 = vadd.xlane.f32.xlu0 %v4151
        %v4215 = vpop.xlane.xlu0 %4214
        %4216 = vadd.xlane.f32.xlu0 %v4153
        %v4217 = vpop.xlane.xlu0 %4216
        %4218 = vadd.xlane.f32.xlu0 %v4155
        %v4219 = vpop.xlane.xlu0 %4218
        %v4220 = vrcp.pop %v4157
        %v4221 = vrcp.pop %v4159
        %v4222 = vrcp.pop %v4161
        %v4223 = vrcp.pop %v4163
        %v4224 = vrcp.pop %v4165
        %v4225 = vrcp.pop %v4167
        %v4226 = vrcp.pop %v4169
        %v4227 = vrcp.pop %v4171
        %v4228 = vrcp.pop %v4173
        %v4229 = vrcp.pop %v4175
        %v4230 = vrcp.pop %v4177
        %v4231 = vrcp.pop %v4179
        %v4232 = vrcp.pop %v4181
        %v4233 = vrcp.pop %v4183
        %v4234 = vrcp.pop %v4185
        %v4235 = vrcp.pop %v4187
        %v4236 = vrcp.pop %v4189
        %v4237 = vrcp.pop %v4191
        %v4238 = vrcp.pop %v4193
        %v4239 = vrcp.pop %v4195
        %v4240 = vrcp.pop %v4197
        %v4241 = vrcp.pop %v4199
        %v4242 = vrcp.pop %v4201
        %v4243 = vrcp.pop %v4203
        %v4244 = vrcp.pop %v4205
        %v4245 = vrcp.pop %v4207
        %v4246 = vrcp.pop %v4209
        %v4247 = vrcp.pop %v4211
        %v4248 = vrcp.pop %v4213
        %v4249 = vrcp.pop %v4215
        %v4250 = vrcp.pop %v4217
        %v4251 = vrcp.pop %v4219
        %v4252 = vmul.f32 %v4093, %v4220
        %v4253 = vmul.f32 %v4095, %v4221
        %v4254 = vmul.f32 %v4097, %v4222
        %v4255 = vmul.f32 %v4099, %v4223
        %v4256 = vmul.f32 %v4101, %v4224
        %v4257 = vmul.f32 %v4103, %v4225
        %v4258 = vmul.f32 %v4105, %v4226
        %v4259 = vmul.f32 %v4107, %v4227
        %v4260 = vmul.f32 %v4109, %v4228
        %v4261 = vmul.f32 %v4111, %v4229
        %v4262 = vmul.f32 %v4113, %v4230
        %v4263 = vmul.f32 %v4115, %v4231
        %v4264 = vmul.f32 %v4117, %v4232
        %v4265 = vmul.f32 %v4119, %v4233
        %v4266 = vmul.f32 %v4121, %v4234
        %v4267 = vmul.f32 %v4123, %v4235
        %v4268 = vmul.f32 %v4125, %v4236
        %v4269 = vmul.f32 %v4127, %v4237
        %v4270 = vmul.f32 %v4129, %v4238
        %v4271 = vmul.f32 %v4131, %v4239
        %v4272 = vmul.f32 %v4133, %v4240
        %v4273 = vmul.f32 %v4135, %v4241
        %v4274 = vmul.f32 %v4137, %v4242
        %v4275 = vmul.f32 %v4139, %v4243
        %v4276 = vmul.f32 %v4141, %v4244
        %v4277 = vmul.f32 %v4143, %v4245
        %v4278 = vmul.f32 %v4145, %v4246
        %v4279 = vmul.f32 %v4147, %v4247
        %v4280 = vmul.f32 %v4149, %v4248
        %v4281 = vmul.f32 %v4151, %v4249
        %v4282 = vmul.f32 %v4153, %v4250
        %v4283 = vmul.f32 %v4155, %v4251
        %vm4284 = vcmp.eq.f32.partialorder %v1181, %v3997
        %vm4285 = vcmp.eq.f32.partialorder %v1185, %v3999
        %vm4286 = vcmp.eq.f32.partialorder %v1189, %v4001
        %vm4287 = vcmp.eq.f32.partialorder %v1193, %v4003
        %vm4288 = vcmp.eq.f32.partialorder %v1197, %v4005
        %vm4289 = vcmp.eq.f32.partialorder %v1201, %v4007
        %vm4290 = vcmp.eq.f32.partialorder %v1205, %v4009
        %vm4291 = vcmp.eq.f32.partialorder %v1209, %v4011
        %vm4292 = vcmp.eq.f32.partialorder %v1213, %v4013
        %vm4293 = vcmp.eq.f32.partialorder %v1217, %v4015
        %vm4294 = vcmp.eq.f32.partialorder %v1221, %v4017
        %vm4295 = vcmp.eq.f32.partialorder %v1225, %v4019
        %vm4296 = vcmp.eq.f32.partialorder %v1229, %v4021
        %vm4297 = vcmp.eq.f32.partialorder %v1233, %v4023
        %vm4298 = vcmp.eq.f32.partialorder %v1237, %v4025
        %vm4299 = vcmp.eq.f32.partialorder %v1241, %v4027
        %vm4300 = vcmp.eq.f32.partialorder %v1245, %v4029
        %vm4301 = vcmp.eq.f32.partialorder %v1249, %v4031
        %vm4302 = vcmp.eq.f32.partialorder %v1253, %v4033
        %vm4303 = vcmp.eq.f32.partialorder %v1257, %v4035
        %vm4304 = vcmp.eq.f32.partialorder %v1261, %v4037
        %vm4305 = vcmp.eq.f32.partialorder %v1265, %v4039
        %vm4306 = vcmp.eq.f32.partialorder %v1269, %v4041
        %vm4307 = vcmp.eq.f32.partialorder %v1273, %v4043
        %vm4308 = vcmp.eq.f32.partialorder %v1277, %v4045
        %vm4309 = vcmp.eq.f32.partialorder %v1281, %v4047
        %vm4310 = vcmp.eq.f32.partialorder %v1285, %v4049
        %vm4311 = vcmp.eq.f32.partialorder %v1289, %v4051
        %vm4312 = vcmp.eq.f32.partialorder %v1293, %v4053
        %vm4313 = vcmp.eq.f32.partialorder %v1297, %v4055
        %vm4314 = vcmp.eq.f32.partialorder %v1301, %v4057
        %vm4315 = vcmp.eq.f32.partialorder %v1305, %v4059
        %v4316 = vsel %vm4284, %v1307, 128
        %v4317 = vsel %vm4285, %v1307, 128
        %v4318 = vsel %vm4286, %v1307, 128
        %v4319 = vsel %vm4287, %v1307, 128
        %v4320 = vsel %vm4288, %v1307, 128
        %v4321 = vsel %vm4289, %v1307, 128
        %v4322 = vsel %vm4290, %v1307, 128
        %v4323 = vsel %vm4291, %v1307, 128
        %v4324 = vsel %vm4292, %v1307, 128
        %v4325 = vsel %vm4293, %v1307, 128
        %v4326 = vsel %vm4294, %v1307, 128
        %v4327 = vsel %vm4295, %v1307, 128
        %v4328 = vsel %vm4296, %v1307, 128
        %v4329 = vsel %vm4297, %v1307, 128
        %v4330 = vsel %vm4298, %v1307, 128
        %v4331 = vsel %vm4299, %v1307, 128
        %v4332 = vsel %vm4300, %v1307, 128
        %v4333 = vsel %vm4301, %v1307, 128
        %v4334 = vsel %vm4302, %v1307, 128
        %v4335 = vsel %vm4303, %v1307, 128
        %v4336 = vsel %vm4304, %v1307, 128
        %v4337 = vsel %vm4305, %v1307, 128
        %v4338 = vsel %vm4306, %v1307, 128
        %v4339 = vsel %vm4307, %v1307, 128
        %v4340 = vsel %vm4308, %v1307, 128
        %v4341 = vsel %vm4309, %v1307, 128
        %v4342 = vsel %vm4310, %v1307, 128
        %v4343 = vsel %vm4311, %v1307, 128
        %v4344 = vsel %vm4312, %v1307, 128
        %v4345 = vsel %vm4313, %v1307, 128
        %v4346 = vsel %vm4314, %v1307, 128
        %v4347 = vsel %vm4315, %v1307, 128
        %v4348 = vand.u32 %v4316, 65535
        %v4349 = vshra.s32 %v4316, 16
        %v4350 = vcvt.s32.f32 %v4348
        %v4351 = vcvt.s32.f32 %v4349
        %4352 = vmin.xlane.f32.xlu0 %v4351
        %v4353 = vpop.xlane.xlu0 %4352
        %vm4354 = vcmp.eq.f32.partialorder %v4351, %v4353
        %v4355 = vsel %vm4354, %v4350, inf
        %4356 = vmin.xlane.f32.xlu0 %v4355
        %v4357 = vpop.xlane.xlu0 %4356
        %v4358 = vcvt.f32.s32 %v4357
        %v4359 = vcvt.f32.s32 %v4353
        %v4360 = vshll.u32 %v4359, 16
        %v4361 = vadd.s32 %v4360, %v4358
        %v4362 = vand.u32 %v4317, 65535
        %v4363 = vshra.s32 %v4317, 16
        %v4364 = vcvt.s32.f32 %v4362
        %v4365 = vcvt.s32.f32 %v4363
        %4366 = vmin.xlane.f32.xlu0 %v4365
        %v4367 = vpop.xlane.xlu0 %4366
        %vm4368 = vcmp.eq.f32.partialorder %v4365, %v4367
        %v4369 = vsel %vm4368, %v4364, inf
        %4370 = vmin.xlane.f32.xlu0 %v4369
        %v4371 = vpop.xlane.xlu0 %4370
        %v4372 = vcvt.f32.s32 %v4371
        %v4373 = vcvt.f32.s32 %v4367
        %v4374 = vshll.u32 %v4373, 16
        %v4375 = vadd.s32 %v4374, %v4372
        %v4376 = vand.u32 %v4318, 65535
        %v4377 = vshra.s32 %v4318, 16
        %v4378 = vcvt.s32.f32 %v4376
        %v4379 = vcvt.s32.f32 %v4377
        %4380 = vmin.xlane.f32.xlu0 %v4379
        %v4381 = vpop.xlane.xlu0 %4380
        %vm4382 = vcmp.eq.f32.partialorder %v4379, %v4381
        %v4383 = vsel %vm4382, %v4378, inf
        %4384 = vmin.xlane.f32.xlu0 %v4383
        %v4385 = vpop.xlane.xlu0 %4384
        %v4386 = vcvt.f32.s32 %v4385
        %v4387 = vcvt.f32.s32 %v4381
        %v4388 = vshll.u32 %v4387, 16
        %v4389 = vadd.s32 %v4388, %v4386
        %v4390 = vand.u32 %v4319, 65535
        %v4391 = vshra.s32 %v4319, 16
        %v4392 = vcvt.s32.f32 %v4390
        %v4393 = vcvt.s32.f32 %v4391
        %4394 = vmin.xlane.f32.xlu0 %v4393
        %v4395 = vpop.xlane.xlu0 %4394
        %vm4396 = vcmp.eq.f32.partialorder %v4393, %v4395
        %v4397 = vsel %vm4396, %v4392, inf
        %4398 = vmin.xlane.f32.xlu0 %v4397
        %v4399 = vpop.xlane.xlu0 %4398
        %v4400 = vcvt.f32.s32 %v4399
        %v4401 = vcvt.f32.s32 %v4395
        %v4402 = vshll.u32 %v4401, 16
        %v4403 = vadd.s32 %v4402, %v4400
        %v4404 = vand.u32 %v4320, 65535
        %v4405 = vshra.s32 %v4320, 16
        %v4406 = vcvt.s32.f32 %v4404
        %v4407 = vcvt.s32.f32 %v4405
        %4408 = vmin.xlane.f32.xlu0 %v4407
        %v4409 = vpop.xlane.xlu0 %4408
        %vm4410 = vcmp.eq.f32.partialorder %v4407, %v4409
        %v4411 = vsel %vm4410, %v4406, inf
        %4412 = vmin.xlane.f32.xlu0 %v4411
        %v4413 = vpop.xlane.xlu0 %4412
        %v4414 = vcvt.f32.s32 %v4413
        %v4415 = vcvt.f32.s32 %v4409
        %v4416 = vshll.u32 %v4415, 16
        %v4417 = vadd.s32 %v4416, %v4414
        %v4418 = vand.u32 %v4321, 65535
        %v4419 = vshra.s32 %v4321, 16
        %v4420 = vcvt.s32.f32 %v4418
        %v4421 = vcvt.s32.f32 %v4419
        %4422 = vmin.xlane.f32.xlu0 %v4421
        %v4423 = vpop.xlane.xlu0 %4422
        %vm4424 = vcmp.eq.f32.partialorder %v4421, %v4423
        %v4425 = vsel %vm4424, %v4420, inf
        %4426 = vmin.xlane.f32.xlu0 %v4425
        %v4427 = vpop.xlane.xlu0 %4426
        %v4428 = vcvt.f32.s32 %v4427
        %v4429 = vcvt.f32.s32 %v4423
        %v4430 = vshll.u32 %v4429, 16
        %v4431 = vadd.s32 %v4430, %v4428
        %v4432 = vand.u32 %v4322, 65535
        %v4433 = vshra.s32 %v4322, 16
        %v4434 = vcvt.s32.f32 %v4432
        %v4435 = vcvt.s32.f32 %v4433
        %4436 = vmin.xlane.f32.xlu0 %v4435
        %v4437 = vpop.xlane.xlu0 %4436
        %vm4438 = vcmp.eq.f32.partialorder %v4435, %v4437
        %v4439 = vsel %vm4438, %v4434, inf
        %4440 = vmin.xlane.f32.xlu0 %v4439
        %v4441 = vpop.xlane.xlu0 %4440
        %v4442 = vcvt.f32.s32 %v4441
        %v4443 = vcvt.f32.s32 %v4437
        %v4444 = vshll.u32 %v4443, 16
        %v4445 = vadd.s32 %v4444, %v4442
        %v4446 = vand.u32 %v4323, 65535
        %v4447 = vshra.s32 %v4323, 16
        %v4448 = vcvt.s32.f32 %v4446
        %v4449 = vcvt.s32.f32 %v4447
        %4450 = vmin.xlane.f32.xlu0 %v4449
        %v4451 = vpop.xlane.xlu0 %4450
        %vm4452 = vcmp.eq.f32.partialorder %v4449, %v4451
        %v4453 = vsel %vm4452, %v4448, inf
        %4454 = vmin.xlane.f32.xlu0 %v4453
        %v4455 = vpop.xlane.xlu0 %4454
        %v4456 = vcvt.f32.s32 %v4455
        %v4457 = vcvt.f32.s32 %v4451
        %v4458 = vshll.u32 %v4457, 16
        %v4459 = vadd.s32 %v4458, %v4456
        %v4460 = vand.u32 %v4324, 65535
        %v4461 = vshra.s32 %v4324, 16
        %v4462 = vcvt.s32.f32 %v4460
        %v4463 = vcvt.s32.f32 %v4461
        %4464 = vmin.xlane.f32.xlu0 %v4463
        %v4465 = vpop.xlane.xlu0 %4464
        %vm4466 = vcmp.eq.f32.partialorder %v4463, %v4465
        %v4467 = vsel %vm4466, %v4462, inf
        %4468 = vmin.xlane.f32.xlu0 %v4467
        %v4469 = vpop.xlane.xlu0 %4468
        %v4470 = vcvt.f32.s32 %v4469
        %v4471 = vcvt.f32.s32 %v4465
        %v4472 = vshll.u32 %v4471, 16
        %v4473 = vadd.s32 %v4472, %v4470
        %v4474 = vand.u32 %v4325, 65535
        %v4475 = vshra.s32 %v4325, 16
        %v4476 = vcvt.s32.f32 %v4474
        %v4477 = vcvt.s32.f32 %v4475
        %4478 = vmin.xlane.f32.xlu0 %v4477
        %v4479 = vpop.xlane.xlu0 %4478
        %vm4480 = vcmp.eq.f32.partialorder %v4477, %v4479
        %v4481 = vsel %vm4480, %v4476, inf
        %4482 = vmin.xlane.f32.xlu0 %v4481
        %v4483 = vpop.xlane.xlu0 %4482
        %v4484 = vcvt.f32.s32 %v4483
        %v4485 = vcvt.f32.s32 %v4479
        %v4486 = vshll.u32 %v4485, 16
        %v4487 = vadd.s32 %v4486, %v4484
        %v4488 = vand.u32 %v4326, 65535
        %v4489 = vshra.s32 %v4326, 16
        %v4490 = vcvt.s32.f32 %v4488
        %v4491 = vcvt.s32.f32 %v4489
        %4492 = vmin.xlane.f32.xlu0 %v4491
        %v4493 = vpop.xlane.xlu0 %4492
        %vm4494 = vcmp.eq.f32.partialorder %v4491, %v4493
        %v4495 = vsel %vm4494, %v4490, inf
        %4496 = vmin.xlane.f32.xlu0 %v4495
        %v4497 = vpop.xlane.xlu0 %4496
        %v4498 = vcvt.f32.s32 %v4497
        %v4499 = vcvt.f32.s32 %v4493
        %v4500 = vshll.u32 %v4499, 16
        %v4501 = vadd.s32 %v4500, %v4498
        %v4502 = vand.u32 %v4327, 65535
        %v4503 = vshra.s32 %v4327, 16
        %v4504 = vcvt.s32.f32 %v4502
        %v4505 = vcvt.s32.f32 %v4503
        %4506 = vmin.xlane.f32.xlu0 %v4505
        %v4507 = vpop.xlane.xlu0 %4506
        %vm4508 = vcmp.eq.f32.partialorder %v4505, %v4507
        %v4509 = vsel %vm4508, %v4504, inf
        %4510 = vmin.xlane.f32.xlu0 %v4509
        %v4511 = vpop.xlane.xlu0 %4510
        %v4512 = vcvt.f32.s32 %v4511
        %v4513 = vcvt.f32.s32 %v4507
        %v4514 = vshll.u32 %v4513, 16
        %v4515 = vadd.s32 %v4514, %v4512
        %v4516 = vand.u32 %v4328, 65535
        %v4517 = vshra.s32 %v4328, 16
        %v4518 = vcvt.s32.f32 %v4516
        %v4519 = vcvt.s32.f32 %v4517
        %4520 = vmin.xlane.f32.xlu0 %v4519
        %v4521 = vpop.xlane.xlu0 %4520
        %vm4522 = vcmp.eq.f32.partialorder %v4519, %v4521
        %v4523 = vsel %vm4522, %v4518, inf
        %4524 = vmin.xlane.f32.xlu0 %v4523
        %v4525 = vpop.xlane.xlu0 %4524
        %v4526 = vcvt.f32.s32 %v4525
        %v4527 = vcvt.f32.s32 %v4521
        %v4528 = vshll.u32 %v4527, 16
        %v4529 = vadd.s32 %v4528, %v4526
        %v4530 = vand.u32 %v4329, 65535
        %v4531 = vshra.s32 %v4329, 16
        %v4532 = vcvt.s32.f32 %v4530
        %v4533 = vcvt.s32.f32 %v4531
        %4534 = vmin.xlane.f32.xlu0 %v4533
        %v4535 = vpop.xlane.xlu0 %4534
        %vm4536 = vcmp.eq.f32.partialorder %v4533, %v4535
        %v4537 = vsel %vm4536, %v4532, inf
        %4538 = vmin.xlane.f32.xlu0 %v4537
        %v4539 = vpop.xlane.xlu0 %4538
        %v4540 = vcvt.f32.s32 %v4539
        %v4541 = vcvt.f32.s32 %v4535
        %v4542 = vshll.u32 %v4541, 16
        %v4543 = vadd.s32 %v4542, %v4540
        %v4544 = vand.u32 %v4330, 65535
        %v4545 = vshra.s32 %v4330, 16
        %v4546 = vcvt.s32.f32 %v4544
        %v4547 = vcvt.s32.f32 %v4545
        %4548 = vmin.xlane.f32.xlu0 %v4547
        %v4549 = vpop.xlane.xlu0 %4548
        %vm4550 = vcmp.eq.f32.partialorder %v4547, %v4549
        %v4551 = vsel %vm4550, %v4546, inf
        %4552 = vmin.xlane.f32.xlu0 %v4551
        %v4553 = vpop.xlane.xlu0 %4552
        %v4554 = vcvt.f32.s32 %v4553
        %v4555 = vcvt.f32.s32 %v4549
        %v4556 = vshll.u32 %v4555, 16
        %v4557 = vadd.s32 %v4556, %v4554
        %v4558 = vand.u32 %v4331, 65535
        %v4559 = vshra.s32 %v4331, 16
        %v4560 = vcvt.s32.f32 %v4558
        %v4561 = vcvt.s32.f32 %v4559
        %4562 = vmin.xlane.f32.xlu0 %v4561
        %v4563 = vpop.xlane.xlu0 %4562
        %vm4564 = vcmp.eq.f32.partialorder %v4561, %v4563
        %v4565 = vsel %vm4564, %v4560, inf
        %4566 = vmin.xlane.f32.xlu0 %v4565
        %v4567 = vpop.xlane.xlu0 %4566
        %v4568 = vcvt.f32.s32 %v4567
        %v4569 = vcvt.f32.s32 %v4563
        %v4570 = vshll.u32 %v4569, 16
        %v4571 = vadd.s32 %v4570, %v4568
        %v4572 = vand.u32 %v4332, 65535
        %v4573 = vshra.s32 %v4332, 16
        %v4574 = vcvt.s32.f32 %v4572
        %v4575 = vcvt.s32.f32 %v4573
        %4576 = vmin.xlane.f32.xlu0 %v4575
        %v4577 = vpop.xlane.xlu0 %4576
        %vm4578 = vcmp.eq.f32.partialorder %v4575, %v4577
        %v4579 = vsel %vm4578, %v4574, inf
        %4580 = vmin.xlane.f32.xlu0 %v4579
        %v4581 = vpop.xlane.xlu0 %4580
        %v4582 = vcvt.f32.s32 %v4581
        %v4583 = vcvt.f32.s32 %v4577
        %v4584 = vshll.u32 %v4583, 16
        %v4585 = vadd.s32 %v4584, %v4582
        %v4586 = vand.u32 %v4333, 65535
        %v4587 = vshra.s32 %v4333, 16
        %v4588 = vcvt.s32.f32 %v4586
        %v4589 = vcvt.s32.f32 %v4587
        %4590 = vmin.xlane.f32.xlu0 %v4589
        %v4591 = vpop.xlane.xlu0 %4590
        %vm4592 = vcmp.eq.f32.partialorder %v4589, %v4591
        %v4593 = vsel %vm4592, %v4588, inf
        %4594 = vmin.xlane.f32.xlu0 %v4593
        %v4595 = vpop.xlane.xlu0 %4594
        %v4596 = vcvt.f32.s32 %v4595
        %v4597 = vcvt.f32.s32 %v4591
        %v4598 = vshll.u32 %v4597, 16
        %v4599 = vadd.s32 %v4598, %v4596
        %v4600 = vand.u32 %v4334, 65535
        %v4601 = vshra.s32 %v4334, 16
        %v4602 = vcvt.s32.f32 %v4600
        %v4603 = vcvt.s32.f32 %v4601
        %4604 = vmin.xlane.f32.xlu0 %v4603
        %v4605 = vpop.xlane.xlu0 %4604
        %vm4606 = vcmp.eq.f32.partialorder %v4603, %v4605
        %v4607 = vsel %vm4606, %v4602, inf
        %4608 = vmin.xlane.f32.xlu0 %v4607
        %v4609 = vpop.xlane.xlu0 %4608
        %v4610 = vcvt.f32.s32 %v4609
        %v4611 = vcvt.f32.s32 %v4605
        %v4612 = vshll.u32 %v4611, 16
        %v4613 = vadd.s32 %v4612, %v4610
        %v4614 = vand.u32 %v4335, 65535
        %v4615 = vshra.s32 %v4335, 16
        %v4616 = vcvt.s32.f32 %v4614
        %v4617 = vcvt.s32.f32 %v4615
        %4618 = vmin.xlane.f32.xlu0 %v4617
        %v4619 = vpop.xlane.xlu0 %4618
        %vm4620 = vcmp.eq.f32.partialorder %v4617, %v4619
        %v4621 = vsel %vm4620, %v4616, inf
        %4622 = vmin.xlane.f32.xlu0 %v4621
        %v4623 = vpop.xlane.xlu0 %4622
        %v4624 = vcvt.f32.s32 %v4623
        %v4625 = vcvt.f32.s32 %v4619
        %v4626 = vshll.u32 %v4625, 16
        %v4627 = vadd.s32 %v4626, %v4624
        %v4628 = vand.u32 %v4336, 65535
        %v4629 = vshra.s32 %v4336, 16
        %v4630 = vcvt.s32.f32 %v4628
        %v4631 = vcvt.s32.f32 %v4629
        %4632 = vmin.xlane.f32.xlu0 %v4631
        %v4633 = vpop.xlane.xlu0 %4632
        %vm4634 = vcmp.eq.f32.partialorder %v4631, %v4633
        %v4635 = vsel %vm4634, %v4630, inf
        %4636 = vmin.xlane.f32.xlu0 %v4635
        %v4637 = vpop.xlane.xlu0 %4636
        %v4638 = vcvt.f32.s32 %v4637
        %v4639 = vcvt.f32.s32 %v4633
        %v4640 = vshll.u32 %v4639, 16
        %v4641 = vadd.s32 %v4640, %v4638
        %v4642 = vand.u32 %v4337, 65535
        %v4643 = vshra.s32 %v4337, 16
        %v4644 = vcvt.s32.f32 %v4642
        %v4645 = vcvt.s32.f32 %v4643
        %4646 = vmin.xlane.f32.xlu0 %v4645
        %v4647 = vpop.xlane.xlu0 %4646
        %vm4648 = vcmp.eq.f32.partialorder %v4645, %v4647
        %v4649 = vsel %vm4648, %v4644, inf
        %4650 = vmin.xlane.f32.xlu0 %v4649
        %v4651 = vpop.xlane.xlu0 %4650
        %v4652 = vcvt.f32.s32 %v4651
        %v4653 = vcvt.f32.s32 %v4647
        %v4654 = vshll.u32 %v4653, 16
        %v4655 = vadd.s32 %v4654, %v4652
        %v4656 = vand.u32 %v4338, 65535
        %v4657 = vshra.s32 %v4338, 16
        %v4658 = vcvt.s32.f32 %v4656
        %v4659 = vcvt.s32.f32 %v4657
        %4660 = vmin.xlane.f32.xlu0 %v4659
        %v4661 = vpop.xlane.xlu0 %4660
        %vm4662 = vcmp.eq.f32.partialorder %v4659, %v4661
        %v4663 = vsel %vm4662, %v4658, inf
        %4664 = vmin.xlane.f32.xlu0 %v4663
        %v4665 = vpop.xlane.xlu0 %4664
        %v4666 = vcvt.f32.s32 %v4665
        %v4667 = vcvt.f32.s32 %v4661
        %v4668 = vshll.u32 %v4667, 16
        %v4669 = vadd.s32 %v4668, %v4666
        %v4670 = vand.u32 %v4339, 65535
        %v4671 = vshra.s32 %v4339, 16
        %v4672 = vcvt.s32.f32 %v4670
        %v4673 = vcvt.s32.f32 %v4671
        %4674 = vmin.xlane.f32.xlu0 %v4673
        %v4675 = vpop.xlane.xlu0 %4674
        %vm4676 = vcmp.eq.f32.partialorder %v4673, %v4675
        %v4677 = vsel %vm4676, %v4672, inf
        %4678 = vmin.xlane.f32.xlu0 %v4677
        %v4679 = vpop.xlane.xlu0 %4678
        %v4680 = vcvt.f32.s32 %v4679
        %v4681 = vcvt.f32.s32 %v4675
        %v4682 = vshll.u32 %v4681, 16
        %v4683 = vadd.s32 %v4682, %v4680
        %v4684 = vand.u32 %v4340, 65535
        %v4685 = vshra.s32 %v4340, 16
        %v4686 = vcvt.s32.f32 %v4684
        %v4687 = vcvt.s32.f32 %v4685
        %4688 = vmin.xlane.f32.xlu0 %v4687
        %v4689 = vpop.xlane.xlu0 %4688
        %vm4690 = vcmp.eq.f32.partialorder %v4687, %v4689
        %v4691 = vsel %vm4690, %v4686, inf
        %4692 = vmin.xlane.f32.xlu0 %v4691
        %v4693 = vpop.xlane.xlu0 %4692
        %v4694 = vcvt.f32.s32 %v4693
        %v4695 = vcvt.f32.s32 %v4689
        %v4696 = vshll.u32 %v4695, 16
        %v4697 = vadd.s32 %v4696, %v4694
        %v4698 = vand.u32 %v4341, 65535
        %v4699 = vshra.s32 %v4341, 16
        %v4700 = vcvt.s32.f32 %v4698
        %v4701 = vcvt.s32.f32 %v4699
        %4702 = vmin.xlane.f32.xlu0 %v4701
        %v4703 = vpop.xlane.xlu0 %4702
        %vm4704 = vcmp.eq.f32.partialorder %v4701, %v4703
        %v4705 = vsel %vm4704, %v4700, inf
        %4706 = vmin.xlane.f32.xlu0 %v4705
        %v4707 = vpop.xlane.xlu0 %4706
        %v4708 = vcvt.f32.s32 %v4707
        %v4709 = vcvt.f32.s32 %v4703
        %v4710 = vshll.u32 %v4709, 16
        %v4711 = vadd.s32 %v4710, %v4708
        %v4712 = vand.u32 %v4342, 65535
        %v4713 = vshra.s32 %v4342, 16
        %v4714 = vcvt.s32.f32 %v4712
        %v4715 = vcvt.s32.f32 %v4713
        %4716 = vmin.xlane.f32.xlu0 %v4715
        %v4717 = vpop.xlane.xlu0 %4716
        %vm4718 = vcmp.eq.f32.partialorder %v4715, %v4717
        %v4719 = vsel %vm4718, %v4714, inf
        %4720 = vmin.xlane.f32.xlu0 %v4719
        %v4721 = vpop.xlane.xlu0 %4720
        %v4722 = vcvt.f32.s32 %v4721
        %v4723 = vcvt.f32.s32 %v4717
        %v4724 = vshll.u32 %v4723, 16
        %v4725 = vadd.s32 %v4724, %v4722
        %v4726 = vand.u32 %v4343, 65535
        %v4727 = vshra.s32 %v4343, 16
        %v4728 = vcvt.s32.f32 %v4726
        %v4729 = vcvt.s32.f32 %v4727
        %4730 = vmin.xlane.f32.xlu0 %v4729
        %v4731 = vpop.xlane.xlu0 %4730
        %vm4732 = vcmp.eq.f32.partialorder %v4729, %v4731
        %v4733 = vsel %vm4732, %v4728, inf
        %4734 = vmin.xlane.f32.xlu0 %v4733
        %v4735 = vpop.xlane.xlu0 %4734
        %v4736 = vcvt.f32.s32 %v4735
        %v4737 = vcvt.f32.s32 %v4731
        %v4738 = vshll.u32 %v4737, 16
        %v4739 = vadd.s32 %v4738, %v4736
        %v4740 = vand.u32 %v4344, 65535
        %v4741 = vshra.s32 %v4344, 16
        %v4742 = vcvt.s32.f32 %v4740
        %v4743 = vcvt.s32.f32 %v4741
        %4744 = vmin.xlane.f32.xlu0 %v4743
        %v4745 = vpop.xlane.xlu0 %4744
        %vm4746 = vcmp.eq.f32.partialorder %v4743, %v4745
        %v4747 = vsel %vm4746, %v4742, inf
        %4748 = vmin.xlane.f32.xlu0 %v4747
        %v4749 = vpop.xlane.xlu0 %4748
        %v4750 = vcvt.f32.s32 %v4749
        %v4751 = vcvt.f32.s32 %v4745
        %v4752 = vshll.u32 %v4751, 16
        %v4753 = vadd.s32 %v4752, %v4750
        %v4754 = vand.u32 %v4345, 65535
        %v4755 = vshra.s32 %v4345, 16
        %v4756 = vcvt.s32.f32 %v4754
        %v4757 = vcvt.s32.f32 %v4755
        %4758 = vmin.xlane.f32.xlu0 %v4757
        %v4759 = vpop.xlane.xlu0 %4758
        %vm4760 = vcmp.eq.f32.partialorder %v4757, %v4759
        %v4761 = vsel %vm4760, %v4756, inf
        %4762 = vmin.xlane.f32.xlu0 %v4761
        %v4763 = vpop.xlane.xlu0 %4762
        %v4764 = vcvt.f32.s32 %v4763
        %v4765 = vcvt.f32.s32 %v4759
        %v4766 = vshll.u32 %v4765, 16
        %v4767 = vadd.s32 %v4766, %v4764
        %v4768 = vand.u32 %v4346, 65535
        %v4769 = vshra.s32 %v4346, 16
        %v4770 = vcvt.s32.f32 %v4768
        %v4771 = vcvt.s32.f32 %v4769
        %4772 = vmin.xlane.f32.xlu0 %v4771
        %v4773 = vpop.xlane.xlu0 %4772
        %vm4774 = vcmp.eq.f32.partialorder %v4771, %v4773
        %v4775 = vsel %vm4774, %v4770, inf
        %4776 = vmin.xlane.f32.xlu0 %v4775
        %v4777 = vpop.xlane.xlu0 %4776
        %v4778 = vcvt.f32.s32 %v4777
        %v4779 = vcvt.f32.s32 %v4773
        %v4780 = vshll.u32 %v4779, 16
        %v4781 = vadd.s32 %v4780, %v4778
        %v4782 = vand.u32 %v4347, 65535
        %v4783 = vshra.s32 %v4347, 16
        %v4784 = vcvt.s32.f32 %v4782
        %v4785 = vcvt.s32.f32 %v4783
        %4786 = vmin.xlane.f32.xlu0 %v4785
        %v4787 = vpop.xlane.xlu0 %4786
        %vm4788 = vcmp.eq.f32.partialorder %v4785, %v4787
        %v4789 = vsel %vm4788, %v4784, inf
        %4790 = vmin.xlane.f32.xlu0 %v4789
        %v4791 = vpop.xlane.xlu0 %4790
        %v4792 = vcvt.f32.s32 %v4791
        %v4793 = vcvt.f32.s32 %v4787
        %v4794 = vshll.u32 %v4793, 16
        %v4795 = vadd.s32 %v4794, %v4792
        %vm4796 = vcmp.eq.s32.totalorder %v1307, %v4361
        %vm4797 = vcmp.eq.s32.totalorder %v1307, %v4375
        %vm4798 = vcmp.eq.s32.totalorder %v1307, %v4389
        %vm4799 = vcmp.eq.s32.totalorder %v1307, %v4403
        %vm4800 = vcmp.eq.s32.totalorder %v1307, %v4417
        %vm4801 = vcmp.eq.s32.totalorder %v1307, %v4431
        %vm4802 = vcmp.eq.s32.totalorder %v1307, %v4445
        %vm4803 = vcmp.eq.s32.totalorder %v1307, %v4459
        %vm4804 = vcmp.eq.s32.totalorder %v1307, %v4473
        %vm4805 = vcmp.eq.s32.totalorder %v1307, %v4487
        %vm4806 = vcmp.eq.s32.totalorder %v1307, %v4501
        %vm4807 = vcmp.eq.s32.totalorder %v1307, %v4515
        %vm4808 = vcmp.eq.s32.totalorder %v1307, %v4529
        %vm4809 = vcmp.eq.s32.totalorder %v1307, %v4543
        %vm4810 = vcmp.eq.s32.totalorder %v1307, %v4557
        %vm4811 = vcmp.eq.s32.totalorder %v1307, %v4571
        %vm4812 = vcmp.eq.s32.totalorder %v1307, %v4585
        %vm4813 = vcmp.eq.s32.totalorder %v1307, %v4599
        %vm4814 = vcmp.eq.s32.totalorder %v1307, %v4613
        %vm4815 = vcmp.eq.s32.totalorder %v1307, %v4627
        %vm4816 = vcmp.eq.s32.totalorder %v1307, %v4641
        %vm4817 = vcmp.eq.s32.totalorder %v1307, %v4655
        %vm4818 = vcmp.eq.s32.totalorder %v1307, %v4669
        %vm4819 = vcmp.eq.s32.totalorder %v1307, %v4683
        %vm4820 = vcmp.eq.s32.totalorder %v1307, %v4697
        %vm4821 = vcmp.eq.s32.totalorder %v1307, %v4711
        %vm4822 = vcmp.eq.s32.totalorder %v1307, %v4725
        %vm4823 = vcmp.eq.s32.totalorder %v1307, %v4739
        %vm4824 = vcmp.eq.s32.totalorder %v1307, %v4753
        %vm4825 = vcmp.eq.s32.totalorder %v1307, %v4767
        %vm4826 = vcmp.eq.s32.totalorder %v1307, %v4781
        %vm4827 = vcmp.eq.s32.totalorder %v1307, %v4795
        %v4828 = vsel %vm4796, 1, 0
        %v4829 = vsel %vm4797, 1, 0
        %v4830 = vsel %vm4798, 1, 0
        %v4831 = vsel %vm4799, 1, 0
        %v4832 = vsel %vm4800, 1, 0
        %v4833 = vsel %vm4801, 1, 0
        %v4834 = vsel %vm4802, 1, 0
        %v4835 = vsel %vm4803, 1, 0
        %v4836 = vsel %vm4804, 1, 0
        %v4837 = vsel %vm4805, 1, 0
        %v4838 = vsel %vm4806, 1, 0
        %v4839 = vsel %vm4807, 1, 0
        %v4840 = vsel %vm4808, 1, 0
        %v4841 = vsel %vm4809, 1, 0
        %v4842 = vsel %vm4810, 1, 0
        %v4843 = vsel %vm4811, 1, 0
        %v4844 = vsel %vm4812, 1, 0
        %v4845 = vsel %vm4813, 1, 0
        %v4846 = vsel %vm4814, 1, 0
        %v4847 = vsel %vm4815, 1, 0
        %v4848 = vsel %vm4816, 1, 0
        %v4849 = vsel %vm4817, 1, 0
        %v4850 = vsel %vm4818, 1, 0
        %v4851 = vsel %vm4819, 1, 0
        %v4852 = vsel %vm4820, 1, 0
        %v4853 = vsel %vm4821, 1, 0
        %v4854 = vsel %vm4822, 1, 0
        %v4855 = vsel %vm4823, 1, 0
        %v4856 = vsel %vm4824, 1, 0
        %v4857 = vsel %vm4825, 1, 0
        %v4858 = vsel %vm4826, 1, 0
        %v4859 = vsel %vm4827, 1, 0
        %v4860 = vcvt.s32.f32 %v4828
        %v4861 = vcvt.s32.f32 %v4829
        %v4862 = vcvt.s32.f32 %v4830
        %v4863 = vcvt.s32.f32 %v4831
        %v4864 = vcvt.s32.f32 %v4832
        %v4865 = vcvt.s32.f32 %v4833
        %v4866 = vcvt.s32.f32 %v4834
        %v4867 = vcvt.s32.f32 %v4835
        %v4868 = vcvt.s32.f32 %v4836
        %v4869 = vcvt.s32.f32 %v4837
        %v4870 = vcvt.s32.f32 %v4838
        %v4871 = vcvt.s32.f32 %v4839
        %v4872 = vcvt.s32.f32 %v4840
        %v4873 = vcvt.s32.f32 %v4841
        %v4874 = vcvt.s32.f32 %v4842
        %v4875 = vcvt.s32.f32 %v4843
        %v4876 = vcvt.s32.f32 %v4844
        %v4877 = vcvt.s32.f32 %v4845
        %v4878 = vcvt.s32.f32 %v4846
        %v4879 = vcvt.s32.f32 %v4847
        %v4880 = vcvt.s32.f32 %v4848
        %v4881 = vcvt.s32.f32 %v4849
        %v4882 = vcvt.s32.f32 %v4850
        %v4883 = vcvt.s32.f32 %v4851
        %v4884 = vcvt.s32.f32 %v4852
        %v4885 = vcvt.s32.f32 %v4853
        %v4886 = vcvt.s32.f32 %v4854
        %v4887 = vcvt.s32.f32 %v4855
        %v4888 = vcvt.s32.f32 %v4856
        %v4889 = vcvt.s32.f32 %v4857
        %v4890 = vcvt.s32.f32 %v4858
        %v4891 = vcvt.s32.f32 %v4859
        %4892 = vst [vmem:[%s352] sm:$0xff] %v1564
        %4893 = vst [vmem:[%s352 + $0x8] sm:$0xff] %v2460
        %4894 = vst [vmem:[%s352 + $0x10] sm:$0xff] %v3356
        %4895 = vst [vmem:[%s352 + $0x18] sm:$0xff] %v4252
        %4896 = vst [vmem:[%s352 + $0x20] sm:$0xff] %v1565
        %4897 = vst [vmem:[%s352 + $0x28] sm:$0xff] %v2461
        %4898 = vst [vmem:[%s352 + $0x30] sm:$0xff] %v3357
        %4899 = vst [vmem:[%s352 + $0x38] sm:$0xff] %v4253
        %4900 = vst [vmem:[%s352 + $0x40] sm:$0xff] %v1566
        %4901 = vst [vmem:[%s352 + $0x48] sm:$0xff] %v2462
        %4902 = vst [vmem:[%s352 + $0x50] sm:$0xff] %v3358
        %4903 = vst [vmem:[%s352 + $0x58] sm:$0xff] %v4254
        %4904 = vst [vmem:[%s352 + $0x60] sm:$0xff] %v1567
        %4905 = vst [vmem:[%s352 + $0x68] sm:$0xff] %v2463
        %4906 = vst [vmem:[%s352 + $0x70] sm:$0xff] %v3359
        %4907 = vst [vmem:[%s352 + $0x78] sm:$0xff] %v4255
        %4908 = vst [vmem:[%s352 + $0x80] sm:$0xff] %v1568
        %4909 = vst [vmem:[%s352 + $0x88] sm:$0xff] %v2464
        %4910 = vst [vmem:[%s352 + $0x90] sm:$0xff] %v3360
        %4911 = vst [vmem:[%s352 + $0x98] sm:$0xff] %v4256
        %4912 = vst [vmem:[%s352 + $0xa0] sm:$0xff] %v1569
        %4913 = vst [vmem:[%s352 + $0xa8] sm:$0xff] %v2465
        %4914 = vst [vmem:[%s352 + $0xb0] sm:$0xff] %v3361
        %4915 = vst [vmem:[%s352 + $0xb8] sm:$0xff] %v4257
        %4916 = vst [vmem:[%s352 + $0xc0] sm:$0xff] %v1570
        %4917 = vst [vmem:[%s352 + $0xc8] sm:$0xff] %v2466
        %4918 = vst [vmem:[%s352 + $0xd0] sm:$0xff] %v3362
        %4919 = vst [vmem:[%s352 + $0xd8] sm:$0xff] %v4258
        %4920 = vst [vmem:[%s352 + $0xe0] sm:$0xff] %v1571
        %4921 = vst [vmem:[%s352 + $0xe8] sm:$0xff] %v2467
        %4922 = vst [vmem:[%s352 + $0xf0] sm:$0xff] %v3363
        %4923 = vst [vmem:[%s352 + $0xf8] sm:$0xff] %v4259
        %4924 = vst [vmem:[%s352 + $0x100] sm:$0xff] %v1572
        %4925 = vst [vmem:[%s352 + $0x108] sm:$0xff] %v2468
        %4926 = vst [vmem:[%s352 + $0x110] sm:$0xff] %v3364
        %4927 = vst [vmem:[%s352 + $0x118] sm:$0xff] %v4260
        %4928 = vst [vmem:[%s352 + $0x120] sm:$0xff] %v1573
        %4929 = vst [vmem:[%s352 + $0x128] sm:$0xff] %v2469
        %4930 = vst [vmem:[%s352 + $0x130] sm:$0xff] %v3365
        %4931 = vst [vmem:[%s352 + $0x138] sm:$0xff] %v4261
        %4932 = vst [vmem:[%s352 + $0x140] sm:$0xff] %v1574
        %4933 = vst [vmem:[%s352 + $0x148] sm:$0xff] %v2470
        %4934 = vst [vmem:[%s352 + $0x150] sm:$0xff] %v3366
        %4935 = vst [vmem:[%s352 + $0x158] sm:$0xff] %v4262
        %4936 = vst [vmem:[%s352 + $0x160] sm:$0xff] %v1575
        %4937 = vst [vmem:[%s352 + $0x168] sm:$0xff] %v2471
        %4938 = vst [vmem:[%s352 + $0x170] sm:$0xff] %v3367
        %4939 = vst [vmem:[%s352 + $0x178] sm:$0xff] %v4263
        %4940 = vst [vmem:[%s352 + $0x180] sm:$0xff] %v1576
        %4941 = vst [vmem:[%s352 + $0x188] sm:$0xff] %v2472
        %4942 = vst [vmem:[%s352 + $0x190] sm:$0xff] %v3368
        %4943 = vst [vmem:[%s352 + $0x198] sm:$0xff] %v4264
        %4944 = vst [vmem:[%s352 + $0x1a0] sm:$0xff] %v1577
        %4945 = vst [vmem:[%s352 + $0x1a8] sm:$0xff] %v2473
        %4946 = vst [vmem:[%s352 + $0x1b0] sm:$0xff] %v3369
        %4947 = vst [vmem:[%s352 + $0x1b8] sm:$0xff] %v4265
        %4948 = vst [vmem:[%s352 + $0x1c0] sm:$0xff] %v1578
        %4949 = vst [vmem:[%s352 + $0x1c8] sm:$0xff] %v2474
        %4950 = vst [vmem:[%s352 + $0x1d0] sm:$0xff] %v3370
        %4951 = vst [vmem:[%s352 + $0x1d8] sm:$0xff] %v4266
        %4952 = vst [vmem:[%s352 + $0x1e0] sm:$0xff] %v1579
        %4953 = vst [vmem:[%s352 + $0x1e8] sm:$0xff] %v2475
        %4954 = vst [vmem:[%s352 + $0x1f0] sm:$0xff] %v3371
        %4955 = vst [vmem:[%s352 + $0x1f8] sm:$0xff] %v4267
        %4956 = vst [vmem:[%s352 + $0x200] sm:$0xff] %v1580
        %4957 = vst [vmem:[%s352 + $0x208] sm:$0xff] %v2476
        %4958 = vst [vmem:[%s352 + $0x210] sm:$0xff] %v3372
        %4959 = vst [vmem:[%s352 + $0x218] sm:$0xff] %v4268
        %4960 = vst [vmem:[%s352 + $0x220] sm:$0xff] %v1581
        %4961 = vst [vmem:[%s352 + $0x228] sm:$0xff] %v2477
        %4962 = vst [vmem:[%s352 + $0x230] sm:$0xff] %v3373
        %4963 = vst [vmem:[%s352 + $0x238] sm:$0xff] %v4269
        %4964 = vst [vmem:[%s352 + $0x240] sm:$0xff] %v1582
        %4965 = vst [vmem:[%s352 + $0x248] sm:$0xff] %v2478
        %4966 = vst [vmem:[%s352 + $0x250] sm:$0xff] %v3374
        %4967 = vst [vmem:[%s352 + $0x258] sm:$0xff] %v4270
        %4968 = vst [vmem:[%s352 + $0x260] sm:$0xff] %v1583
        %4969 = vst [vmem:[%s352 + $0x268] sm:$0xff] %v2479
        %4970 = vst [vmem:[%s352 + $0x270] sm:$0xff] %v3375
        %4971 = vst [vmem:[%s352 + $0x278] sm:$0xff] %v4271
        %4972 = vst [vmem:[%s352 + $0x280] sm:$0xff] %v1584
        %4973 = vst [vmem:[%s352 + $0x288] sm:$0xff] %v2480
        %4974 = vst [vmem:[%s352 + $0x290] sm:$0xff] %v3376
        %4975 = vst [vmem:[%s352 + $0x298] sm:$0xff] %v4272
        %4976 = vst [vmem:[%s352 + $0x2a0] sm:$0xff] %v1585
        %4977 = vst [vmem:[%s352 + $0x2a8] sm:$0xff] %v2481
        %4978 = vst [vmem:[%s352 + $0x2b0] sm:$0xff] %v3377
        %4979 = vst [vmem:[%s352 + $0x2b8] sm:$0xff] %v4273
        %4980 = vst [vmem:[%s352 + $0x2c0] sm:$0xff] %v1586
        %4981 = vst [vmem:[%s352 + $0x2c8] sm:$0xff] %v2482
        %4982 = vst [vmem:[%s352 + $0x2d0] sm:$0xff] %v3378
        %4983 = vst [vmem:[%s352 + $0x2d8] sm:$0xff] %v4274
        %4984 = vst [vmem:[%s352 + $0x2e0] sm:$0xff] %v1587
        %4985 = vst [vmem:[%s352 + $0x2e8] sm:$0xff] %v2483
        %4986 = vst [vmem:[%s352 + $0x2f0] sm:$0xff] %v3379
        %4987 = vst [vmem:[%s352 + $0x2f8] sm:$0xff] %v4275
        %4988 = vst [vmem:[%s352 + $0x300] sm:$0xff] %v1588
        %4989 = vst [vmem:[%s352 + $0x308] sm:$0xff] %v2484
        %4990 = vst [vmem:[%s352 + $0x310] sm:$0xff] %v3380
        %4991 = vst [vmem:[%s352 + $0x318] sm:$0xff] %v4276
        %4992 = vst [vmem:[%s352 + $0x320] sm:$0xff] %v1589
        %4993 = vst [vmem:[%s352 + $0x328] sm:$0xff] %v2485
        %4994 = vst [vmem:[%s352 + $0x330] sm:$0xff] %v3381
        %4995 = vst [vmem:[%s352 + $0x338] sm:$0xff] %v4277
        %4996 = vst [vmem:[%s352 + $0x340] sm:$0xff] %v1590
        %4997 = vst [vmem:[%s352 + $0x348] sm:$0xff] %v2486
        %4998 = vst [vmem:[%s352 + $0x350] sm:$0xff] %v3382
        %4999 = vst [vmem:[%s352 + $0x358] sm:$0xff] %v4278
        %5000 = vst [vmem:[%s352 + $0x360] sm:$0xff] %v1591
        %5001 = vst [vmem:[%s352 + $0x368] sm:$0xff] %v2487
        %5002 = vst [vmem:[%s352 + $0x370] sm:$0xff] %v3383
        %5003 = vst [vmem:[%s352 + $0x378] sm:$0xff] %v4279
        %5004 = vst [vmem:[%s352 + $0x380] sm:$0xff] %v1592
        %5005 = vst [vmem:[%s352 + $0x388] sm:$0xff] %v2488
        %5006 = vst [vmem:[%s352 + $0x390] sm:$0xff] %v3384
        %5007 = vst [vmem:[%s352 + $0x398] sm:$0xff] %v4280
        %5008 = vst [vmem:[%s352 + $0x3a0] sm:$0xff] %v1593
        %5009 = vst [vmem:[%s352 + $0x3a8] sm:$0xff] %v2489
        %5010 = vst [vmem:[%s352 + $0x3b0] sm:$0xff] %v3385
        %5011 = vst [vmem:[%s352 + $0x3b8] sm:$0xff] %v4281
        %5012 = vst [vmem:[%s352 + $0x3c0] sm:$0xff] %v1594
        %5013 = vst [vmem:[%s352 + $0x3c8] sm:$0xff] %v2490
        %5014 = vst [vmem:[%s352 + $0x3d0] sm:$0xff] %v3386
        %5015 = vst [vmem:[%s352 + $0x3d8] sm:$0xff] %v4282
        %5016 = vst [vmem:[%s352 + $0x3e0] sm:$0xff] %v1595
        %5017 = vst [vmem:[%s352 + $0x3e8] sm:$0xff] %v2491
        %5018 = vst [vmem:[%s352 + $0x3f0] sm:$0xff] %v3387
        %5019 = vst [vmem:[%s352 + $0x3f8] sm:$0xff] %v4283
        %v5020 = vld [vmem:[#allocation9] sm:$0xff]
        %v5021 = vld [vmem:[#allocation9 + $0x8] sm:$0xff]
        %v5022 = vld [vmem:[#allocation9 + $0x10] sm:$0xff]
        %v5023 = vld [vmem:[#allocation9 + $0x18] sm:$0xff]
        %v5024 = vld [vmem:[#allocation9 + $0x20] sm:$0xff]
        %v5025 = vld [vmem:[#allocation9 + $0x28] sm:$0xff]
        %v5026 = vld [vmem:[#allocation9 + $0x30] sm:$0xff]
        %v5027 = vld [vmem:[#allocation9 + $0x38] sm:$0xff]
        %v5028 = vld [vmem:[#allocation9 + $0x40] sm:$0xff]
        %v5029 = vld [vmem:[#allocation9 + $0x48] sm:$0xff]
        %v5030 = vld [vmem:[#allocation9 + $0x50] sm:$0xff]
        %v5031 = vld [vmem:[#allocation9 + $0x58] sm:$0xff]
        %v5032 = vld [vmem:[#allocation9 + $0x60] sm:$0xff]
        %v5033 = vld [vmem:[#allocation9 + $0x68] sm:$0xff]
        %v5034 = vld [vmem:[#allocation9 + $0x70] sm:$0xff]
        %v5035 = vld [vmem:[#allocation9 + $0x78] sm:$0xff]
        %5036 = vmatpush.xpose.msra.mxu0 %v2187
        %5037 = vmatpush.xpose.msra.mxu0 %v2186
        %5038 = vmatpush.xpose.msra.mxu0 %v2185
        %5039 = vmatpush.xpose.msra.mxu0 %v2184
        %5040 = vmatpush.xpose.msra.mxu0 %v2183
        %5041 = vmatpush.xpose.msra.mxu0 %v2182
        %5042 = vmatpush.xpose.msra.mxu0 %v2181
        %5043 = vmatpush.xpose.msra.mxu0 %v2180
        %5044 = vmatpush.xpose.msra.mxu0 %v2179
        %5045 = vmatpush.xpose.msra.mxu0 %v2178
        %5046 = vmatpush.xpose.msra.mxu0 %v2177
        %5047 = vmatpush.xpose.msra.mxu0 %v2176
        %5048 = vmatpush.xpose.msra.mxu0 %v2175
        %5049 = vmatpush.xpose.msra.mxu0 %v2174
        %5050 = vmatpush.xpose.msra.mxu0 %v2173
        %5051 = vmatpush.xpose.msra.mxu0 %v2172
        %5052 = vmatmul.f32.gmra.mxu0 %v5020
        %v5053 = vpop.f32.mrf.mxu0
        %v5054 = vadd.f32 0.0, %v5053
        %5055 = vmatmul.f32.gmra.mxu0 %v5024
        %v5056 = vpop.f32.mrf.mxu0
        %v5057 = vadd.f32 0.0, %v5056
        %5058 = vmatmul.f32.gmra.mxu0 %v5028
        %v5059 = vpop.f32.mrf.mxu0
        %v5060 = vadd.f32 0.0, %v5059
        %5061 = vmatmul.f32.gmra.mxu0 %v5032
        %v5062 = vpop.f32.mrf.mxu0
        %v5063 = vadd.f32 0.0, %v5062
        %5064 = vdwg.mxu0
        %5065 = vmatpush.xpose.msra.mxu0 %v3083
        %5066 = vmatpush.xpose.msra.mxu0 %v3082
        %5067 = vmatpush.xpose.msra.mxu0 %v3081
        %5068 = vmatpush.xpose.msra.mxu0 %v3080
        %5069 = vmatpush.xpose.msra.mxu0 %v3079
        %5070 = vmatpush.xpose.msra.mxu0 %v3078
        %5071 = vmatpush.xpose.msra.mxu0 %v3077
        %5072 = vmatpush.xpose.msra.mxu0 %v3076
        %5073 = vmatpush.xpose.msra.mxu0 %v3075
        %5074 = vmatpush.xpose.msra.mxu0 %v3074
        %5075 = vmatpush.xpose.msra.mxu0 %v3073
        %5076 = vmatpush.xpose.msra.mxu0 %v3072
        %5077 = vmatpush.xpose.msra.mxu0 %v3071
        %5078 = vmatpush.xpose.msra.mxu0 %v3070
        %5079 = vmatpush.xpose.msra.mxu0 %v3069
        %5080 = vmatpush.xpose.msra.mxu0 %v3068
        %5081 = vmatmul.f32.gmra.mxu0 %v5021
        %v5082 = vpop.f32.mrf.mxu0
        %v5083 = vadd.f32 %v5054, %v5082
        %5084 = vmatmul.f32.gmra.mxu0 %v5025
        %v5085 = vpop.f32.mrf.mxu0
        %v5086 = vadd.f32 %v5057, %v5085
        %5087 = vmatmul.f32.gmra.mxu0 %v5029
        %v5088 = vpop.f32.mrf.mxu0
        %v5089 = vadd.f32 %v5060, %v5088
        %5090 = vmatmul.f32.gmra.mxu0 %v5033
        %v5091 = vpop.f32.mrf.mxu0
        %v5092 = vadd.f32 %v5063, %v5091
        %5093 = vdwg.mxu0
        %5094 = vmatpush.xpose.msra.mxu0 %v3979
        %5095 = vmatpush.xpose.msra.mxu0 %v3978
        %5096 = vmatpush.xpose.msra.mxu0 %v3977
        %5097 = vmatpush.xpose.msra.mxu0 %v3976
        %5098 = vmatpush.xpose.msra.mxu0 %v3975
        %5099 = vmatpush.xpose.msra.mxu0 %v3974
        %5100 = vmatpush.xpose.msra.mxu0 %v3973
        %5101 = vmatpush.xpose.msra.mxu0 %v3972
        %5102 = vmatpush.xpose.msra.mxu0 %v3971
        %5103 = vmatpush.xpose.msra.mxu0 %v3970
        %5104 = vmatpush.xpose.msra.mxu0 %v3969
        %5105 = vmatpush.xpose.msra.mxu0 %v3968
        %5106 = vmatpush.xpose.msra.mxu0 %v3967
        %5107 = vmatpush.xpose.msra.mxu0 %v3966
        %5108 = vmatpush.xpose.msra.mxu0 %v3965
        %5109 = vmatpush.xpose.msra.mxu0 %v3964
        %5110 = vmatmul.f32.gmra.mxu0 %v5022
        %v5111 = vpop.f32.mrf.mxu0
        %v5112 = vadd.f32 %v5083, %v5111
        %5113 = vmatmul.f32.gmra.mxu0 %v5026
        %v5114 = vpop.f32.mrf.mxu0
        %v5115 = vadd.f32 %v5086, %v5114
        %5116 = vmatmul.f32.gmra.mxu0 %v5030
        %v5117 = vpop.f32.mrf.mxu0
        %v5118 = vadd.f32 %v5089, %v5117
        %5119 = vmatmul.f32.gmra.mxu0 %v5034
        %v5120 = vpop.f32.mrf.mxu0
        %v5121 = vadd.f32 %v5092, %v5120
        %5122 = vdwg.mxu0
        %5123 = vmatpush.xpose.msra.mxu0 %v4875
        %5124 = vmatpush.xpose.msra.mxu0 %v4874
        %5125 = vmatpush.xpose.msra.mxu0 %v4873
        %5126 = vmatpush.xpose.msra.mxu0 %v4872
        %5127 = vmatpush.xpose.msra.mxu0 %v4871
        %5128 = vmatpush.xpose.msra.mxu0 %v4870
        %5129 = vmatpush.xpose.msra.mxu0 %v4869
        %5130 = vmatpush.xpose.msra.mxu0 %v4868
        %5131 = vmatpush.xpose.msra.mxu0 %v4867
        %5132 = vmatpush.xpose.msra.mxu0 %v4866
        %5133 = vmatpush.xpose.msra.mxu0 %v4865
        %5134 = vmatpush.xpose.msra.mxu0 %v4864
        %5135 = vmatpush.xpose.msra.mxu0 %v4863
        %5136 = vmatpush.xpose.msra.mxu0 %v4862
        %5137 = vmatpush.xpose.msra.mxu0 %v4861
        %5138 = vmatpush.xpose.msra.mxu0 %v4860
        %5139 = vmatmul.f32.gmra.mxu0 %v5023
        %v5140 = vpop.f32.mrf.mxu0
        %v5141 = vadd.f32 %v5112, %v5140
        %5142 = vmatmul.f32.gmra.mxu0 %v5027
        %v5143 = vpop.f32.mrf.mxu0
        %v5144 = vadd.f32 %v5115, %v5143
        %5145 = vmatmul.f32.gmra.mxu0 %v5031
        %v5146 = vpop.f32.mrf.mxu0
        %v5147 = vadd.f32 %v5118, %v5146
        %5148 = vmatmul.f32.gmra.mxu0 %v5035
        %v5149 = vpop.f32.mrf.mxu0
        %v5150 = vadd.f32 %v5121, %v5149
        %5151 = vdwg.mxu0
        %5152 = vmatpush.xpose.msra.mxu0 %v2203
        %5153 = vmatpush.xpose.msra.mxu0 %v2202
        %5154 = vmatpush.xpose.msra.mxu0 %v2201
        %5155 = vmatpush.xpose.msra.mxu0 %v2200
        %5156 = vmatpush.xpose.msra.mxu0 %v2199
        %5157 = vmatpush.xpose.msra.mxu0 %v2198
        %5158 = vmatpush.xpose.msra.mxu0 %v2197
        %5159 = vmatpush.xpose.msra.mxu0 %v2196
        %5160 = vmatpush.xpose.msra.mxu0 %v2195
        %5161 = vmatpush.xpose.msra.mxu0 %v2194
        %5162 = vmatpush.xpose.msra.mxu0 %v2193
        %5163 = vmatpush.xpose.msra.mxu0 %v2192
        %5164 = vmatpush.xpose.msra.mxu0 %v2191
        %5165 = vmatpush.xpose.msra.mxu0 %v2190
        %5166 = vmatpush.xpose.msra.mxu0 %v2189
        %5167 = vmatpush.xpose.msra.mxu0 %v2188
        %5168 = vmatmul.f32.gmra.mxu0 %v5020
        %v5169 = vpop.f32.mrf.mxu0
        %v5170 = vadd.f32 0.0, %v5169
        %5171 = vmatmul.f32.gmra.mxu0 %v5024
        %v5172 = vpop.f32.mrf.mxu0
        %v5173 = vadd.f32 0.0, %v5172
        %5174 = vmatmul.f32.gmra.mxu0 %v5028
        %v5175 = vpop.f32.mrf.mxu0
        %v5176 = vadd.f32 0.0, %v5175
        %5177 = vmatmul.f32.gmra.mxu0 %v5032
        %v5178 = vpop.f32.mrf.mxu0
        %v5179 = vadd.f32 0.0, %v5178
        %5180 = vdwg.mxu0
        %5181 = vmatpush.xpose.msra.mxu0 %v3099
        %5182 = vmatpush.xpose.msra.mxu0 %v3098
        %5183 = vmatpush.xpose.msra.mxu0 %v3097
        %5184 = vmatpush.xpose.msra.mxu0 %v3096
        %5185 = vmatpush.xpose.msra.mxu0 %v3095
        %5186 = vmatpush.xpose.msra.mxu0 %v3094
        %5187 = vmatpush.xpose.msra.mxu0 %v3093
        %5188 = vmatpush.xpose.msra.mxu0 %v3092
        %5189 = vmatpush.xpose.msra.mxu0 %v3091
        %5190 = vmatpush.xpose.msra.mxu0 %v3090
        %5191 = vmatpush.xpose.msra.mxu0 %v3089
        %5192 = vmatpush.xpose.msra.mxu0 %v3088
        %5193 = vmatpush.xpose.msra.mxu0 %v3087
        %5194 = vmatpush.xpose.msra.mxu0 %v3086
        %5195 = vmatpush.xpose.msra.mxu0 %v3085
        %5196 = vmatpush.xpose.msra.mxu0 %v3084
        %5197 = vmatmul.f32.gmra.mxu0 %v5021
        %v5198 = vpop.f32.mrf.mxu0
        %v5199 = vadd.f32 %v5170, %v5198
        %5200 = vmatmul.f32.gmra.mxu0 %v5025
        %v5201 = vpop.f32.mrf.mxu0
        %v5202 = vadd.f32 %v5173, %v5201
        %5203 = vmatmul.f32.gmra.mxu0 %v5029
        %v5204 = vpop.f32.mrf.mxu0
        %v5205 = vadd.f32 %v5176, %v5204
        %5206 = vmatmul.f32.gmra.mxu0 %v5033
        %v5207 = vpop.f32.mrf.mxu0
        %v5208 = vadd.f32 %v5179, %v5207
        %5209 = vdwg.mxu0
        %5210 = vmatpush.xpose.msra.mxu0 %v3995
        %5211 = vmatpush.xpose.msra.mxu0 %v3994
        %5212 = vmatpush.xpose.msra.mxu0 %v3993
        %5213 = vmatpush.xpose.msra.mxu0 %v3992
        %5214 = vmatpush.xpose.msra.mxu0 %v3991
        %5215 = vmatpush.xpose.msra.mxu0 %v3990
        %5216 = vmatpush.xpose.msra.mxu0 %v3989
        %5217 = vmatpush.xpose.msra.mxu0 %v3988
        %5218 = vmatpush.xpose.msra.mxu0 %v3987
        %5219 = vmatpush.xpose.msra.mxu0 %v3986
        %5220 = vmatpush.xpose.msra.mxu0 %v3985
        %5221 = vmatpush.xpose.msra.mxu0 %v3984
        %5222 = vmatpush.xpose.msra.mxu0 %v3983
        %5223 = vmatpush.xpose.msra.mxu0 %v3982
        %5224 = vmatpush.xpose.msra.mxu0 %v3981
        %5225 = vmatpush.xpose.msra.mxu0 %v3980
        %5226 = vmatmul.f32.gmra.mxu0 %v5022
        %v5227 = vpop.f32.mrf.mxu0
        %v5228 = vadd.f32 %v5199, %v5227
        %5229 = vmatmul.f32.gmra.mxu0 %v5026
        %v5230 = vpop.f32.mrf.mxu0
        %v5231 = vadd.f32 %v5202, %v5230
        %5232 = vmatmul.f32.gmra.mxu0 %v5030
        %v5233 = vpop.f32.mrf.mxu0
        %v5234 = vadd.f32 %v5205, %v5233
        %5235 = vmatmul.f32.gmra.mxu0 %v5034
        %v5236 = vpop.f32.mrf.mxu0
        %v5237 = vadd.f32 %v5208, %v5236
        %5238 = vdwg.mxu0
        %5239 = vmatpush.xpose.msra.mxu0 %v4891
        %5240 = vmatpush.xpose.msra.mxu0 %v4890
        %5241 = vmatpush.xpose.msra.mxu0 %v4889
        %5242 = vmatpush.xpose.msra.mxu0 %v4888
        %5243 = vmatpush.xpose.msra.mxu0 %v4887
        %5244 = vmatpush.xpose.msra.mxu0 %v4886
        %5245 = vmatpush.xpose.msra.mxu0 %v4885
        %5246 = vmatpush.xpose.msra.mxu0 %v4884
        %5247 = vmatpush.xpose.msra.mxu0 %v4883
        %5248 = vmatpush.xpose.msra.mxu0 %v4882
        %5249 = vmatpush.xpose.msra.mxu0 %v4881
        %5250 = vmatpush.xpose.msra.mxu0 %v4880
        %5251 = vmatpush.xpose.msra.mxu0 %v4879
        %5252 = vmatpush.xpose.msra.mxu0 %v4878
        %5253 = vmatpush.xpose.msra.mxu0 %v4877
        %5254 = vmatpush.xpose.msra.mxu0 %v4876
        %5255 = vmatmul.f32.gmra.mxu0 %v5023
        %v5256 = vpop.f32.mrf.mxu0
        %v5257 = vadd.f32 %v5228, %v5256
        %5258 = vmatmul.f32.gmra.mxu0 %v5027
        %v5259 = vpop.f32.mrf.mxu0
        %v5260 = vadd.f32 %v5231, %v5259
        %5261 = vmatmul.f32.gmra.mxu0 %v5031
        %v5262 = vpop.f32.mrf.mxu0
        %v5263 = vadd.f32 %v5234, %v5262
        %5264 = vmatmul.f32.gmra.mxu0 %v5035
        %v5265 = vpop.f32.mrf.mxu0
        %v5266 = vadd.f32 %v5237, %v5265
        %5267 = vdwg.mxu0
        %5268 = vst [vmem:[%s345] sm:$0xff] %v5141
        %5269 = vst [vmem:[%s345 + $0x8] sm:$0xff] %v5257
        %5270 = vst [vmem:[%s345 + $0x10] sm:$0xff] %v5144
        %5271 = vst [vmem:[%s345 + $0x18] sm:$0xff] %v5260
        %5272 = vst [vmem:[%s345 + $0x20] sm:$0xff] %v5147
        %5273 = vst [vmem:[%s345 + $0x28] sm:$0xff] %v5263
        %5274 = vst [vmem:[%s345 + $0x30] sm:$0xff] %v5150
        %5275 = vst [vmem:[%s345 + $0x38] sm:$0xff] %v5266
        %v5276 = vsub.f32 %v5141, %v531
        %v5277 = vsub.f32 %v5257, %v532
        %v5278 = vsub.f32 %v5144, %v533
        %v5279 = vsub.f32 %v5260, %v534
        %v5280 = vsub.f32 %v5147, %v535
        %v5281 = vsub.f32 %v5263, %v536
        %v5282 = vsub.f32 %v5150, %v537
        %v5283 = vsub.f32 %v5266, %v538
        %v5284 = vmul.f32 %v5276, %v5276
        %v5285 = vmul.f32 %v5277, %v5277
        %v5286 = vmul.f32 %v5278, %v5278
        %v5287 = vmul.f32 %v5279, %v5279
        %v5288 = vmul.f32 %v5280, %v5280
        %v5289 = vmul.f32 %v5281, %v5281
        %v5290 = vmul.f32 %v5282, %v5282
        %v5291 = vmul.f32 %v5283, %v5283
        %v5292 = vadd.f32 %v5284, %v5285
        %v5293 = vadd.f32 %v5292, %v5286
        %v5294 = vadd.f32 %v5293, %v5287
        %v5295 = vadd.f32 %v5294, %v5288
        %v5296 = vadd.f32 %v5295, %v5289
        %v5297 = vadd.f32 %v5296, %v5290
        %v5298 = vadd.f32 %v5297, %v5291
        %5299 = vadd.xlane.f32.xlu0 %v5298
        %v5300 = vpop.xlane.xlu0 %5299
        %v5301 = vrot.slane %v5300, 4
        %v5302 = vadd.f32 %v5300, %v5301
        %v5303 = vrot.slane %v5302, 2
        %v5304 = vadd.f32 %v5302, %v5303
        %v5305 = vrot.slane %v5304, 1
        %v5306 = vadd.f32 %v5304, %v5305
        %s5307 = vtos %v5306
        %v5308 = vstv %s5307
        %v5309 = vadd.f32 %v5308, 0.0
        %5310 = vst [vmem:[%s358] sm:$0x1] %v5309
        %s5311 = sand.u32 %s142, 1
        %s5312 = scalar_lea.sflag [#allocation5], %s5311
        %s5313 = sand.u32 %s142, 1
        %s5314 = smul.addr %s5313, 64
        %s5315 = scalar_lea.vmem [#allocation11], %s5314
        %s5316 = sand.u32 %s29, 1
        %s5317 = scalar_lea.sflag [#allocation13], %s5316
        %s5318 = sand.u32 %s170, 1
        %s5319 = smul.addr %s5318, 1024
        %s5320 = scalar_lea.vmem [#allocation12], %s5319
        %s5321 = sand.u32 %s29, 1
        %s5322 = scalar_lea.sflag [#allocation13], %s5321
        %s5323 = sand.u32 %s198, 1
        %s5324 = scalar_lea.vmem [#allocation14], %s5323
        // Predicated region
        $region53: #{tpu_custom_call.1} parent=35 // pred_check
          %p5325 = pneg %p152
        $region54: #{tpu_custom_call.1} parent=35 // pred_check_branch
          %5327 = sbr.rel (%p5325) target = $region56
        $region55: #{tpu_custom_call.1} parent=35 // pred_region
          %s5328 = smul.u32 2, %s34
          %5330 = vsyncadd %s5312, 0
          %s5331 = smul.addr %s33, 8
          %s5332 = sadd.s32 %s5328, %s5331
          %s5333 = smul.addr %s5332, 8
          %s5334 = scalar_lea.hbm %s4, %s5333
          %s5335 = sshll.u32 %s5315, 4
          %s5336 = int_to_ptr.vmem [resolvable:$true] %s5335
          %s5337 = sshll.u32 %s5334, 4
          %s5338 = int_to_ptr.hbm [resolvable:$true] %s5337
          %5343 = dma.vmem_to_hbm [thread:$0]  %s5336, 1024, %s5338, %s5312, 256, 256, 16
        $region56: #{tpu_custom_call.1} parent=35 // pred_fallthru
          _
        // Predicated region
        $region57: #{tpu_custom_call.1} parent=35 // pred_check
          %p5344 = pneg %p180
        $region58: #{tpu_custom_call.1} parent=35 // pred_check_branch
          %5346 = sbr.rel (%p5344) target = $region60
        $region59: #{tpu_custom_call.1} parent=35 // pred_region
          %s5347 = smul.u32 32, %s34
          %5349 = vsyncadd %s5317, 0
          %s5350 = smul.addr %s5347, 4
          %s5351 = smul.addr %s33, 128
          %s5352 = sadd.s32 %s5350, %s5351
          %s5353 = smul.addr %s5352, 8
          %s5354 = scalar_lea.hbm %s5, %s5353
          %s5355 = sshll.u32 %s5320, 4
          %s5356 = int_to_ptr.vmem [resolvable:$true] %s5355
          %s5357 = sshll.u32 %s5354, 4
          %s5358 = int_to_ptr.hbm [resolvable:$true] %s5357
          %5363 = dma.vmem_to_hbm [thread:$0]  %s5356, 16384, %s5358, %s5317, 512, 512, 32
        $region60: #{tpu_custom_call.1} parent=35 // pred_fallthru
          _
        // Predicated region
        $region61: #{tpu_custom_call.1} parent=35 // pred_check
          %p5364 = pneg %p208
        $region62: #{tpu_custom_call.1} parent=35 // pred_check_branch
          %5366 = sbr.rel (%p5364) target = $region64
        $region63: #{tpu_custom_call.1} parent=35 // pred_region
          %s5367 = sadd.s32 %s33, %s34
          %5369 = vsyncadd %s5322, 0
          %s5370 = scalar_lea.hbm %s6, %s5367
          %s5372 = sshll.u32 %s5324, 4
          %s5373 = int_to_ptr.vmem [resolvable:$true] %s5372
          %s5374 = sshll.u32 %s5370, 4
          %s5375 = int_to_ptr.hbm [resolvable:$true] %s5374
          %5377 = dma.vmem_to_hbm [thread:$0]  %s5373, 16, %s5375, %s5322
        $region64: #{tpu_custom_call.1} parent=35 // pred_fallthru
          _
      $region36: #{tpu_custom_call.1} parent=5 // pred_fallthru
        _
      %p5378 = scmp.le.s32.totalorder 2, %s24
      // Predicated region
      $region65: #{tpu_custom_call.1} parent=5 // pred_check
        %p5379 = pneg %p5378
      $region66: #{tpu_custom_call.1} parent=5 // pred_check_branch
        %5381 = sbr.rel (%p5379) target = $region68
      $region67: #{tpu_custom_call.1} parent=5 // pred_region
        %s5382 = ssub.s32 %s24, 2
        // Predicated region
        $region69: #{tpu_custom_call.1} parent=67 // pred_check
          %p5383 = pneg %p158
        $region70: #{tpu_custom_call.1} parent=67 // pred_check_branch
          %5385 = sbr.rel (%p5383) target = $region72
        $region71: #{tpu_custom_call.1} parent=67 // pred_region
          %s5386 = sand.u32 %s143, 1
          %s5387 = scalar_lea.sflag [#allocation5], %s5386
          %s5388 = sand.u32 %s143, 1
          %s5389 = smul.addr %s5388, 64
          %s5390 = scalar_lea.vmem [#allocation11], %s5389
          %5392 = dma.done %s5387, 1024
        $region72: #{tpu_custom_call.1} parent=67 // pred_fallthru
          _
        // Predicated region
        $region73: #{tpu_custom_call.1} parent=67 // pred_check
          %p5393 = pneg %p186
        $region74: #{tpu_custom_call.1} parent=67 // pred_check_branch
          %5395 = sbr.rel (%p5393) target = $region76
        $region75: #{tpu_custom_call.1} parent=67 // pred_region
          %s5396 = sand.u32 %s30, 1
          %s5397 = scalar_lea.sflag [#allocation13], %s5396
          %s5398 = sand.u32 %s171, 1
          %s5399 = smul.addr %s5398, 1024
          %s5400 = scalar_lea.vmem [#allocation12], %s5399
          %5402 = dma.done %s5397, 16384
        $region76: #{tpu_custom_call.1} parent=67 // pred_fallthru
          _
        // Predicated region
        $region77: #{tpu_custom_call.1} parent=67 // pred_check
          %p5403 = pneg %p214
        $region78: #{tpu_custom_call.1} parent=67 // pred_check_branch
          %5405 = sbr.rel (%p5403) target = $region80
        $region79: #{tpu_custom_call.1} parent=67 // pred_region
          %s5406 = sand.u32 %s30, 1
          %s5407 = scalar_lea.sflag [#allocation13], %s5406
          %s5408 = sand.u32 %s199, 1
          %s5409 = scalar_lea.vmem [#allocation14], %s5408
          %5411 = dma.done %s5407, 16
        $region80: #{tpu_custom_call.1} parent=67 // pred_fallthru
          _
      $region68: #{tpu_custom_call.1} parent=5 // pred_fallthru
        _
    $region6: #{tpu_custom_call.1} parent=1 // loop_footer
      %s28 = sadd.s32 1, %s24
    $region7: #{tpu_custom_call.1} parent=1 // loop_footer_branch
      %23 = sbr.rel target = $region3
    $region8: #{tpu_custom_call.1} parent=1 // loop_exit
      _
    %5412 = vsyncpa [#allocation4], 1
    %s5413 = scalar_lea.sflag [#allocation4], 1
    %5414 = vsyncpa %s5413, 1
    %5415 = vsyncpa [#allocation7], 1
    %5416 = vsyncpa [#allocation10], 1
    %5417 = vsyncpa [#allocation5], 1
    %s5418 = scalar_lea.sflag [#allocation5], 1
    %5419 = vsyncpa %s5418, 1
    %5420 = vsyncpa [#allocation13], 1
    %s5421 = scalar_lea.sflag [#allocation13], 1
    %5422 = vsyncpa %s5421, 1

</llo_original>
